<compile_context>
chip_gen: v7x
topology: tpu7x:2x2x1
jax: 0.10.0
libtpu: 0.0.40
codegen_flags: <defaults>
</compile_context>

<pallas_src>
import functools

import jax
import jax.numpy as jnp
from jax.experimental import pallas as pl
from jax.experimental.pallas import tpu as pltpu


# ---------------------------------------------------------------------------
# Fused kernel: embed + prefix (layer 0 only) + one transformer layer per grid step.
# Grid = (batch_blocks, num_layers); residual stream resident in VMEM scratch.
# ---------------------------------------------------------------------------
def _mapper_kernel(
    x_ref, lin_w_ref, lin_b_ref, pref_ref,
    ln1w_ref, ln1b_ref, wqkv_ref, wp_ref, bp_ref,
    ln2w_ref, ln2b_ref, w1_ref, b1_ref, w2_ref, b2_ref,
    o_ref, h_ref,
    *, num_heads: int, clip_length: int, eps: float,
):
    layer = pl.program_id(1)
    Bt, N, C = h_ref.shape
    H = num_heads
    D = C // H
    n_prefix = N - clip_length

    # ---- layer 0: initial Linear(dim_clip -> clip_length*E) + learned prefix ----------
    @pl.when(layer == 0)
    def _():
        xv = x_ref[:, 0, :].astype(jnp.bfloat16)
        emb = jnp.dot(xv, lin_w_ref[...], preferred_element_type=jnp.float32) + lin_b_ref[...]
        h_ref[:, :clip_length, :] = emb.reshape(Bt, clip_length, C)
        h_ref[:, clip_length:, :] = jnp.broadcast_to(pref_ref[...][None], (Bt, n_prefix, C))

    x = h_ref[...].reshape(Bt * N, C)                       # residual stream (f32)

    def layer_norm(z, w_r, b_r):
        mu = jnp.mean(z, axis=-1, keepdims=True)
        var = jnp.maximum(jnp.mean(z * z, axis=-1, keepdims=True) - mu * mu, 0.0)
        return (z - mu) * jax.lax.rsqrt(var + eps) * w_r[0] + b_r[0]

    # ---- attention ----------------------------------------------------------------------
    xn = layer_norm(x, ln1w_ref, ln1b_ref).astype(jnp.bfloat16)
    qkv = jnp.dot(xn, wqkv_ref[0], preferred_element_type=jnp.float32)   # (Bt*N, 3C) f32
    q = qkv[:, :C].astype(jnp.bfloat16).reshape(Bt, N, C)    # 1/sqrt(D) pre-folded into wq
    k = qkv[:, C:2 * C].astype(jnp.bfloat16).reshape(Bt, N, C)
    v = qkv[:, 2 * C:].astype(jnp.bfloat16).reshape(Bt, N, C)

    outs = []
    for h in range(H):                    # static 8-head unroll, each einsum batched over Bt
        sl = slice(h * D, (h + 1) * D)
        s = jnp.einsum("bnd,bmd->bnm", q[:, :, sl], k[:, :, sl],
                       preferred_element_type=jnp.float32)
        s = s - jnp.max(s, axis=-1, keepdims=True)
        e = jnp.exp(s)
        inv = pl.reciprocal(jnp.sum(e, axis=-1, keepdims=True), approx=True)
        p = (e * inv).astype(jnp.bfloat16)                   # softmax over keys
        outs.append(jnp.einsum("bnm,bmd->bnd", p, v[:, :, sl],
                               preferred_element_type=jnp.float32))
    attn = jnp.concatenate(outs, axis=-1).reshape(Bt * N, C).astype(jnp.bfloat16)

    x = x + jnp.dot(attn, wp_ref[0], preferred_element_type=jnp.float32) + bp_ref[0]

    # ---- MLP ----------------------------------------------------------------------------
    xn2 = layer_norm(x, ln2w_ref, ln2b_ref).astype(jnp.bfloat16)
    hdn = jnp.dot(xn2, w1_ref[0], preferred_element_type=jnp.float32) + b1_ref[0]
    hdn = jnp.maximum(hdn, 0.0).astype(jnp.bfloat16)         # relu (dropout = identity)
    x = x + jnp.dot(hdn, w2_ref[0], preferred_element_type=jnp.float32) + b2_ref[0]

    h_new = x.reshape(Bt, N, C)
    h_ref[...] = h_new                                       # residual stays in VMEM

    @pl.when(layer == pl.num_programs(1) - 1)
    def _():
        o_ref[...] = h_new[:, clip_length:, :].astype(o_ref.dtype)   # module returns suffix


# ---------------------------------------------------------------------------
# Host-side helpers
# ---------------------------------------------------------------------------
def _tpu_generation():
    """Best-effort probe: (2 TensorCores per device?, VMEM capacity bytes)."""
    kind = ""
    try:
        kind = jax.devices()[0].device_kind.lower()
    except Exception:
        pass
    is_v7 = "v7" in kind
    two_cores = is_v7 or ("v4" in kind) or ("v5p" in kind)
    vmem_cap = (64 << 20) if is_v7 else (128 << 20)
    try:
        vmem_cap = int(pltpu.get_tpu_info().vmem_capacity_bytes)
    except Exception:
        pass
    return two_cores, vmem_cap


def _pick_block_b(B: int, N: int, two_cores: bool) -> int:
    """Batch rows per grid step: aim for ~256 matmul rows (Bt*N); only force >=2
    grid steps when the chip has 2 TensorCores (grid is a serial loop otherwise)."""
    target = max(1, 256 // max(N, 1))
    divs = [d for d in range(1, B + 1) if B % d == 0]
    fit = [d for d in divs if d <= target] or [1]
    if two_cores:
        split = [d for d in fit if B // d >= 2]
        if split:
            return max(split)
    return max(fit)


def _vmem_limit_bytes(bt, N, C, HID, dim_clip, cl_e, n_prefix, vmem_cap):
    layer_w = 2 * (C * 3 * C + C * C + C * HID + HID * C)   # bf16 matmul weights / layer
    layer_w += 4 * (6 * C + HID)                             # f32 LN scale/bias + biases
    const_w = 2 * dim_clip * cl_e + 4 * cl_e + 4 * n_prefix * C
    act = 4 * bt * N * C                                     # residual scratch (f32)
    io = 4 * bt * dim_clip + 4 * bt * n_prefix * C
    need = 2 * (layer_w + io) + const_w + act + (8 << 20)    # x2 for double buffering
    cap = (48 << 20) if vmem_cap <= (64 << 20) else (100 << 20)
    return int(min(cap, max(32 << 20, need)))


def prepare_params(raw, *, num_heads: int):
    """One-time host-side prep (call OUTSIDE the hot path): stack per-layer weights with a
    leading layer dim, fold 1/sqrt(D) into wq, fuse wq/wk/wv, cast matmul weights to bf16."""
    E = raw["prefix_const"].shape[1]
    scale = (E // num_heads) ** (-0.5)
    bf = jnp.bfloat16

    def stack(key, cast=None):
        a = jnp.stack([lp[key] for lp in raw["layers"]], axis=0)
        return a.astype(cast) if cast is not None else a.astype(jnp.float32)

    wqkv = jnp.stack(
        [jnp.concatenate([lp["wq"] * scale, lp["wk"], lp["wv"]], axis=1)
         for lp in raw["layers"]], axis=0).astype(bf)
    return {
        "lin_w": raw["lin_w"].astype(bf),
        "lin_b": raw["lin_b"].astype(jnp.float32),
        "prefix_const": raw["prefix_const"].astype(jnp.float32),
        "ln1_w": stack("ln1_w"), "ln1_b": stack("ln1_b"),
        "wqkv": wqkv,
        "wp": stack("wp", bf), "bp": stack("bp"),
        "ln2_w": stack("ln2_w"), "ln2_b": stack("ln2_b"),
        "w1": stack("w1", bf), "b1": stack("b1"),
        "w2": stack("w2", bf), "b2": stack("b2"),
    }


def transformer_mapper(x, prep, *, num_heads: int, clip_length: int, eps: float = 1e-5):
    B, dim_clip = x.shape
    L, E, E3 = prep["wqkv"].shape
    assert E3 == 3 * E and E % num_heads == 0
    n_prefix = prep["prefix_const"].shape[0]
    N = clip_length + n_prefix
    HID = prep["w1"].shape[2]
    cl_e = prep["lin_w"].shape[1]

    two_cores, vmem_cap = _tpu_generation()
    bt = _pick_block_b(B, N, two_cores)
    x3 = x.reshape(B, 1, dim_clip)

    def batch3(b, l):   # activation blocks: follow the batch axis only
        return (b, 0, 0)

    def const2(b, l):   # grid-invariant (resident) inputs
        return (0, 0)

    def layer3(b, l):   # per-layer stacked weights: follow the layer axis
        return (l, 0, 0)

    in_specs = [
        pl.BlockSpec((bt, 1, dim_clip), batch3),                # x
        pl.BlockSpec(prep["lin_w"].shape, const2),              # lin_w (bf16)
        pl.BlockSpec(prep["lin_b"].shape, const2),              # lin_b
        pl.BlockSpec(prep["prefix_const"].shape, const2),       # prefix_const
        pl.BlockSpec((1, 1, E), layer3),                        # ln1_w
        pl.BlockSpec((1, 1, E), layer3),                        # ln1_b
        pl.BlockSpec((1, E, 3 * E), layer3),                    # wqkv (bf16, wq pre-scaled)
        pl.BlockSpec((1, E, E), layer3),                        # wp (bf16)
        pl.BlockSpec((1, 1, E), layer3),                        # bp
        pl.BlockSpec((1, 1, E), layer3),                        # ln2_w
        pl.BlockSpec((1, 1, E), layer3),                        # ln2_b
        pl.BlockSpec((1, E, HID), layer3),                      # w1 (bf16)
        pl.BlockSpec((1, 1, HID), layer3),                      # b1
        pl.BlockSpec((1, HID, E), layer3),                      # w2 (bf16)
        pl.BlockSpec((1, 1, E), layer3),                        # b2
    ]

    kernel = functools.partial(_mapper_kernel, num_heads=num_heads,
                               clip_length=clip_length, eps=eps)
    return pl.pallas_call(
        kernel,
        out_shape=jax.ShapeDtypeStruct((B, n_prefix, E), jnp.float32),
        grid_spec=pltpu.PrefetchScalarGridSpec(
            num_scalar_prefetch=0,
            grid=(B // bt, L),                                  # layer axis last (sequential)
            in_specs=in_specs,
            out_specs=pl.BlockSpec((bt, n_prefix, E), batch3),
            scratch_shapes=[pltpu.VMEM((bt, N, E), jnp.float32)],   # resident residual stream
        ),
        compiler_params=pltpu.CompilerParams(
            dimension_semantics=("parallel", "arbitrary"),
            vmem_limit_bytes=_vmem_limit_bytes(bt, N, E, HID, dim_clip, cl_e,
                                               n_prefix, vmem_cap),
        ),
    )(x3, prep["lin_w"], prep["lin_b"], prep["prefix_const"],
      prep["ln1_w"], prep["ln1_b"], prep["wqkv"], prep["wp"], prep["bp"],
      prep["ln2_w"], prep["ln2_b"], prep["w1"], prep["b1"], prep["w2"], prep["b2"])


# ---------------------------------------------------------------------------
# Pure-JAX f32 reference (mirrors the PyTorch forward) for a correctness check.
# ---------------------------------------------------------------------------
def _reference_mapper(x, params, *, num_heads: int, clip_length: int, eps: float = 1e-5):
    B = x.shape[0]
    n_prefix, E = params["prefix_const"].shape
    emb = (x @ params["lin_w"] + params["lin_b"][0]).reshape(B, clip_length, E)
    pref = jnp.broadcast_to(params["prefix_const"][None], (B, n_prefix, E))
    h = jnp.concatenate([emb, pref], axis=1)
    H = num_heads

    def ln(z, w, b):
        mu = jnp.mean(z, -1, keepdims=True)
        var = jnp.mean((z - mu) ** 2, -1, keepdims=True)
        return (z - mu) / jnp.sqrt(var + eps) * w[0] + b[0]

    for p in params["layers"]:
        Bh, N, C = h.shape
        D = C // H
        scale = D ** (-0.5)
        xn = ln(h, p["ln1_w"], p["ln1_b"])
        q = (xn @ p["wq"]).reshape(Bh, N, H, D)
        k = (xn @ p["wk"]).reshape(Bh, N, H, D)
        v = (xn @ p["wv"]).reshape(Bh, N, H, D)
        att = jnp.einsum("bnhd,bmhd->bnmh", q, k) * scale
        att = jax.nn.softmax(att, axis=2)
        out = jnp.einsum("bnmh,bmhd->bnhd", att, v).reshape(Bh, N, C)
        h = h + out @ p["wp"] + p["bp"][0]
        xn2 = ln(h, p["ln2_w"], p["ln2_b"])
        hid = jax.nn.relu(xn2 @ p["w1"] + p["b1"][0])
        h = h + hid @ p["w2"] + p["b2"][0]
    return h[:, clip_length:]


if __name__ == "__main__":
    # Small TransformerMapper config: heads=8 (hardcoded), mlp_ratio=2.0, dropout=0 (eval).
    B = 2
    DIM_CLIP = 64
    E = 128              # dim_embedding
    HEADS = 8
    CLIP_LEN = 8
    PREFIX_LEN = 8
    LAYERS = 2
    HID = int(E * 2.0)

    key = jax.random.PRNGKey(0)
    keys = iter(jax.random.split(key, 9 * LAYERS + 8))

    def rnd(shape, s=0.1):
        return (s * jax.random.normal(next(keys), shape)).astype(jnp.float32)

    layers = []
    for _ in range(LAYERS):
        layers.append({
            "ln1_w": jnp.ones((1, E), jnp.float32),
            "ln1_b": jnp.zeros((1, E), jnp.float32),
            "wq": rnd((E, E)),       # to_queries (bias=False), pre-transposed (in, out)
            "wk": rnd((E, E)),       # first half of to_keys_values (bias=False)
            "wv": rnd((E, E)),       # second half of to_keys_values
            "wp": rnd((E, E)),       # project weight (pre-transposed)
            "bp": rnd((1, E)),       # project bias
            "ln2_w": jnp.ones((1, E), jnp.float32),
            "ln2_b": jnp.zeros((1, E), jnp.float32),
            "w1": rnd((E, HID)),
            "b1": rnd((1, HID)),
            "w2": rnd((HID, E)),
            "b2": rnd((1, E)),
        })
    raw_params = {
        "lin_w": rnd((DIM_CLIP, CLIP_LEN * E)),   # TransformerMapper.linear (pre-transposed)
        "lin_b": rnd((1, CLIP_LEN * E)),
        "prefix_const": rnd((PREFIX_LEN, E), s=1.0),
        "layers": layers,
    }
    x = rnd((B, DIM_CLIP), s=1.0)

    prep = prepare_params(raw_params, num_heads=HEADS)       # one-time weight prep (no per-call recast)
    mapper = jax.jit(functools.partial(transformer_mapper,
                                       num_heads=HEADS, clip_length=CLIP_LEN))
    out = jax.block_until_ready(mapper(x, prep))

    ref = _reference_mapper(x, raw_params, num_heads=HEADS, clip_length=CLIP_LEN)
    assert out.shape == (B, PREFIX_LEN, E), out.shape
    max_err = float(jnp.max(jnp.abs(out - ref)))
    rel_err = float(jnp.linalg.norm(out - ref) / jnp.linalg.norm(ref))
    # bf16 matmul inputs with f32 accumulation -> small, bounded mismatch vs f32 ref.
    assert rel_err < 5e-2 and max_err < 2.5e-1, (max_err, rel_err)
    print("KERNEL_OK")
</pallas_src>

<mosaic_0001>
module attributes {stable_mosaic.version = 11 : i64} {
  func.func @_mapper_kernel(%arg0: i32, %arg1: i32, %arg2: memref<2x1x64xf32, #tpu.memory_space<vmem>>, %arg3: memref<64x1024xbf16, #tpu.memory_space<vmem>>, %arg4: memref<1x1024xf32, #tpu.memory_space<vmem>>, %arg5: memref<8x128xf32, #tpu.memory_space<vmem>>, %arg6: memref<1x1x128xf32, #tpu.memory_space<vmem>>, %arg7: memref<1x1x128xf32, #tpu.memory_space<vmem>>, %arg8: memref<1x128x384xbf16, #tpu.memory_space<vmem>>, %arg9: memref<1x128x128xbf16, #tpu.memory_space<vmem>>, %arg10: memref<1x1x128xf32, #tpu.memory_space<vmem>>, %arg11: memref<1x1x128xf32, #tpu.memory_space<vmem>>, %arg12: memref<1x1x128xf32, #tpu.memory_space<vmem>>, %arg13: memref<1x128x256xbf16, #tpu.memory_space<vmem>>, %arg14: memref<1x1x256xf32, #tpu.memory_space<vmem>>, %arg15: memref<1x256x128xbf16, #tpu.memory_space<vmem>>, %arg16: memref<1x1x128xf32, #tpu.memory_space<vmem>>, %arg17: memref<2x8x128xf32, #tpu.memory_space<vmem>>, %arg18: memref<2x16x128xf32, #tpu.memory_space<vmem>>) attributes {dimension_semantics = [#tpu.dimension_semantics<parallel>, #tpu.dimension_semantics<arbitrary>], iteration_bounds = array<i64: 1, 2>, scalar_prefetch = 0 : i64, scratch_operands = 1 : i64, tpu.core_type = #tpu.core_type<tc>, window_params = [{transform_indices = @transform_0, window_bounds = array<i64: 2, 1, 64>}, {pipeline_mode = #tpu.pipeline_mode<synchronous>, transform_indices = @transform_1, window_bounds = array<i64: 64, 1024>}, {pipeline_mode = #tpu.pipeline_mode<synchronous>, transform_indices = @transform_2, window_bounds = array<i64: 1, 1024>}, {pipeline_mode = #tpu.pipeline_mode<synchronous>, transform_indices = @transform_3, window_bounds = array<i64: 8, 128>}, {transform_indices = @transform_4, window_bounds = array<i64: 1, 1, 128>}, {transform_indices = @transform_5, window_bounds = array<i64: 1, 1, 128>}, {transform_indices = @transform_6, window_bounds = array<i64: 1, 128, 384>}, {transform_indices = @transform_7, window_bounds = array<i64: 1, 128, 128>}, {transform_indices = @transform_8, window_bounds = array<i64: 1, 1, 128>}, {transform_indices = @transform_9, window_bounds = array<i64: 1, 1, 128>}, {transform_indices = @transform_10, window_bounds = array<i64: 1, 1, 128>}, {transform_indices = @transform_11, window_bounds = array<i64: 1, 128, 256>}, {transform_indices = @transform_12, window_bounds = array<i64: 1, 1, 256>}, {transform_indices = @transform_13, window_bounds = array<i64: 1, 256, 128>}, {transform_indices = @transform_14, window_bounds = array<i64: 1, 1, 128>}, {transform_indices = @transform_15, window_bounds = array<i64: 2, 8, 128>}]} {
    %c0_i32 = arith.constant 0 : i32
    %0 = arith.cmpi eq, %arg1, %c0_i32 : i32
    %1 = arith.extui %0 : i1 to i32
    %c0_i32_0 = arith.constant 0 : i32
    %2 = arith.cmpi ne, %1, %c0_i32_0 : i32
    scf.if %2 {
      %c0_88 = arith.constant 0 : index
      %c0_89 = arith.constant 0 : index
      %c0_90 = arith.constant 0 : index
      %237 = vector.load %arg2[%c0_88, %c0_89, %c0_90] : memref<2x1x64xf32, #tpu.memory_space<vmem>>, vector<2x1x64xf32>
      %238 = vector.shape_cast %237 : vector<2x1x64xf32> to vector<2x64xf32>
      %239 = arith.truncf %238 : vector<2x64xf32> to vector<2x64xbf16>
      %c0_91 = arith.constant 0 : index
      %c0_92 = arith.constant 0 : index
      %240 = vector.load %arg3[%c0_91, %c0_92] : memref<64x1024xbf16, #tpu.memory_space<vmem>>, vector<64x1024xbf16>
      %cst_93 = arith.constant dense<0.000000e+00> : vector<2x1024xf32>
      %241 = tpu.matmul %239, %240, %cst_93 {dimension_numbers = #tpu.dot_dimension_numbers<[1], [0], [0], [1], [0, 0, 1, 1], [], []>} : vector<2x64xbf16>, vector<64x1024xbf16>, vector<2x1024xf32> -> vector<2x1024xf32>
      %c0_94 = arith.constant 0 : index
      %c0_95 = arith.constant 0 : index
      %242 = vector.load %arg4[%c0_94, %c0_95] : memref<1x1024xf32, #tpu.memory_space<vmem>>, vector<1x1024xf32>
      %243 = vector.broadcast %242 : vector<1x1024xf32> to vector<2x1024xf32>
      %244 = arith.addf %241, %243 : vector<2x1024xf32>
      %245 = vector.shape_cast %244 : vector<2x1024xf32> to vector<2x8x128xf32>
      %c0_96 = arith.constant 0 : index
      %c0_97 = arith.constant 0 : index
      %c0_98 = arith.constant 0 : index
      %246 = vector.load %arg18[%c0_96, %c0_97, %c0_98] : memref<2x16x128xf32, #tpu.memory_space<vmem>>, vector<2x8x128xf32>
      tpu.vector_store %arg18[%c0_96, %c0_97, %c0_98], %245 {strides = array<i32>} : memref<2x16x128xf32, #tpu.memory_space<vmem>>, vector<2x8x128xf32>,
      %c0_99 = arith.constant 0 : index
      %c0_100 = arith.constant 0 : index
      %247 = vector.load %arg5[%c0_99, %c0_100] : memref<8x128xf32, #tpu.memory_space<vmem>>, vector<8x128xf32>
      %248 = vector.shape_cast %247 : vector<8x128xf32> to vector<1x8x128xf32>
      %249 = vector.shape_cast %248 : vector<1x8x128xf32> to vector<1x8x128xf32>
      %250 = vector.broadcast %249 : vector<1x8x128xf32> to vector<2x8x128xf32>
      %c0_101 = arith.constant 0 : index
      %c8 = arith.constant 8 : index
      %c0_102 = arith.constant 0 : index
      %251 = vector.load %arg18[%c0_101, %c8, %c0_102] : memref<2x16x128xf32, #tpu.memory_space<vmem>>, vector<2x8x128xf32>
      tpu.vector_store %arg18[%c0_101, %c8, %c0_102], %250 {strides = array<i32>} : memref<2x16x128xf32, #tpu.memory_space<vmem>>, vector<2x8x128xf32>,
    } else {
    }
    %c0 = arith.constant 0 : index
    %c0_1 = arith.constant 0 : index
    %c0_2 = arith.constant 0 : index
    %3 = vector.load %arg18[%c0, %c0_1, %c0_2] : memref<2x16x128xf32, #tpu.memory_space<vmem>>, vector<2x16x128xf32>
    %4 = vector.shape_cast %3 : vector<2x16x128xf32> to vector<32x128xf32>
    %cst = arith.constant dense<0.000000e+00> : vector<32xf32>
    %5 = vector.multi_reduction <add>, %4, %cst [1] : vector<32x128xf32> to vector<32xf32>
    %6 = vector.shape_cast %5 : vector<32xf32> to vector<32x1xf32>
    %cst_3 = arith.constant 1.280000e+02 : f32
    %7 = vector.broadcast %cst_3 : f32 to vector<32x1xf32>
    %8 = arith.divf %6, %7 : vector<32x1xf32>
    %9 = arith.mulf %4, %4 : vector<32x128xf32>
    %cst_4 = arith.constant dense<0.000000e+00> : vector<32xf32>
    %10 = vector.multi_reduction <add>, %9, %cst_4 [1] : vector<32x128xf32> to vector<32xf32>
    %11 = vector.shape_cast %10 : vector<32xf32> to vector<32x1xf32>
    %cst_5 = arith.constant 1.280000e+02 : f32
    %12 = vector.broadcast %cst_5 : f32 to vector<32x1xf32>
    %13 = arith.divf %11, %12 : vector<32x1xf32>
    %14 = arith.mulf %8, %8 : vector<32x1xf32>
    %15 = arith.subf %13, %14 : vector<32x1xf32>
    %cst_6 = arith.constant 0.000000e+00 : f32
    %16 = vector.broadcast %cst_6 : f32 to vector<32x1xf32>
    %17 = arith.maximumf %15, %16 : vector<32x1xf32>
    %18 = vector.broadcast %8 : vector<32x1xf32> to vector<32x128xf32>
    %19 = arith.subf %4, %18 : vector<32x128xf32>
    %cst_7 = arith.constant 9.99999974E-6 : f32
    %20 = vector.broadcast %cst_7 : f32 to vector<32x1xf32>
    %21 = arith.addf %17, %20 : vector<32x1xf32>
    %22 = math.rsqrt %21 : vector<32x1xf32>
    %23 = vector.broadcast %22 : vector<32x1xf32> to vector<32x128xf32>
    %24 = arith.mulf %19, %23 : vector<32x128xf32>
    %c0_8 = arith.constant 0 : index
    %c0_9 = arith.constant 0 : index
    %c0_10 = arith.constant 0 : index
    %25 = vector.load %arg6[%c0_8, %c0_9, %c0_10] : memref<1x1x128xf32, #tpu.memory_space<vmem>>, vector<1x1x128xf32>
    %26 = vector.shape_cast %25 : vector<1x1x128xf32> to vector<1x128xf32>
    %27 = vector.broadcast %26 : vector<1x128xf32> to vector<32x128xf32>
    %28 = arith.mulf %24, %27 : vector<32x128xf32>
    %c0_11 = arith.constant 0 : index
    %c0_12 = arith.constant 0 : index
    %c0_13 = arith.constant 0 : index
    %29 = vector.load %arg7[%c0_11, %c0_12, %c0_13] : memref<1x1x128xf32, #tpu.memory_space<vmem>>, vector<1x1x128xf32>
    %30 = vector.shape_cast %29 : vector<1x1x128xf32> to vector<1x128xf32>
    %31 = vector.broadcast %30 : vector<1x128xf32> to vector<32x128xf32>
    %32 = arith.addf %28, %31 : vector<32x128xf32>
    %33 = arith.truncf %32 : vector<32x128xf32> to vector<32x128xbf16>
    %c0_14 = arith.constant 0 : index
    %c0_15 = arith.constant 0 : index
    %c0_16 = arith.constant 0 : index
    %34 = vector.load %arg8[%c0_14, %c0_15, %c0_16] : memref<1x128x384xbf16, #tpu.memory_space<vmem>>, vector<1x128x384xbf16>
    %35 = vector.shape_cast %34 : vector<1x128x384xbf16> to vector<128x384xbf16>
    %cst_17 = arith.constant dense<0.000000e+00> : vector<32x384xf32>
    %36 = tpu.matmul %33, %35, %cst_17 {dimension_numbers = #tpu.dot_dimension_numbers<[1], [0], [0], [1], [0, 0, 1, 1], [], []>} : vector<32x128xbf16>, vector<128x384xbf16>, vector<32x384xf32> -> vector<32x384xf32>
    %37 = vector.extract_strided_slice %36 {offsets = [0, 0], sizes = [32, 128], strides = [1, 1]} : vector<32x384xf32> to vector<32x128xf32>
    %38 = arith.truncf %37 : vector<32x128xf32> to vector<32x128xbf16>
    %39 = vector.shape_cast %38 : vector<32x128xbf16> to vector<2x16x128xbf16>
    %40 = vector.extract_strided_slice %36 {offsets = [0, 128], sizes = [32, 128], strides = [1, 1]} : vector<32x384xf32> to vector<32x128xf32>
    %41 = arith.truncf %40 : vector<32x128xf32> to vector<32x128xbf16>
    %42 = vector.shape_cast %41 : vector<32x128xbf16> to vector<2x16x128xbf16>
    %43 = vector.extract_strided_slice %36 {offsets = [0, 256], sizes = [32, 128], strides = [1, 1]} : vector<32x384xf32> to vector<32x128xf32>
    %44 = arith.truncf %43 : vector<32x128xf32> to vector<32x128xbf16>
    %45 = vector.shape_cast %44 : vector<32x128xbf16> to vector<2x16x128xbf16>
    %46 = vector.extract_strided_slice %39 {offsets = [0, 0, 0], sizes = [2, 16, 16], strides = [1, 1, 1]} : vector<2x16x128xbf16> to vector<2x16x16xbf16>
    %47 = vector.extract_strided_slice %42 {offsets = [0, 0, 0], sizes = [2, 16, 16], strides = [1, 1, 1]} : vector<2x16x128xbf16> to vector<2x16x16xbf16>
    "tpu.trace_start"() <{level = 10 : i32, message = "bnd,bmd->bnm"}> : () -> ()
    %cst_18 = arith.constant dense<0.000000e+00> : vector<2x16x16xf32>
    %48 = tpu.matmul %46, %47, %cst_18 {dimension_numbers = #tpu.dot_dimension_numbers<[2], [2], [1], [1], [0, 0, 0, 1, 1, 1], [0], [0]>} : vector<2x16x16xbf16>, vector<2x16x16xbf16>, vector<2x16x16xf32> -> vector<2x16x16xf32>
    "tpu.trace_stop"() : () -> ()
    %cst_19 = arith.constant dense<0xFF800000> : vector<2x16xf32>
    %49 = vector.multi_reduction <maximumf>, %48, %cst_19 [2] : vector<2x16x16xf32> to vector<2x16xf32>
    %50 = vector.shape_cast %49 : vector<2x16xf32> to vector<2x16x1xf32>
    %51 = vector.broadcast %50 : vector<2x16x1xf32> to vector<2x16x16xf32>
    %52 = arith.subf %48, %51 : vector<2x16x16xf32>
    %53 = math.exp %52 : vector<2x16x16xf32>
    %cst_20 = arith.constant dense<0.000000e+00> : vector<2x16xf32>
    %54 = vector.multi_reduction <add>, %53, %cst_20 [2] : vector<2x16x16xf32> to vector<2x16xf32>
    %55 = vector.shape_cast %54 : vector<2x16xf32> to vector<2x16x1xf32>
    %56 = tpu.reciprocal %55 {approx = true} : vector<2x16x1xf32> -> vector<2x16x1xf32>
    %57 = vector.broadcast %56 : vector<2x16x1xf32> to vector<2x16x16xf32>
    %58 = arith.mulf %53, %57 : vector<2x16x16xf32>
    %59 = arith.truncf %58 : vector<2x16x16xf32> to vector<2x16x16xbf16>
    %60 = vector.extract_strided_slice %45 {offsets = [0, 0, 0], sizes = [2, 16, 16], strides = [1, 1, 1]} : vector<2x16x128xbf16> to vector<2x16x16xbf16>
    "tpu.trace_start"() <{level = 10 : i32, message = "bnm,bmd->bnd"}> : () -> ()
    %cst_21 = arith.constant dense<0.000000e+00> : vector<2x16x16xf32>
    %61 = tpu.matmul %59, %60, %cst_21 {dimension_numbers = #tpu.dot_dimension_numbers<[2], [1], [1], [2], [0, 0, 0, 1, 1, 2], [0], [0]>} : vector<2x16x16xbf16>, vector<2x16x16xbf16>, vector<2x16x16xf32> -> vector<2x16x16xf32>
    "tpu.trace_stop"() : () -> ()
    %62 = vector.extract_strided_slice %39 {offsets = [0, 0, 16], sizes = [2, 16, 16], strides = [1, 1, 1]} : vector<2x16x128xbf16> to vector<2x16x16xbf16>
    %63 = vector.extract_strided_slice %42 {offsets = [0, 0, 16], sizes = [2, 16, 16], strides = [1, 1, 1]} : vector<2x16x128xbf16> to vector<2x16x16xbf16>
    "tpu.trace_start"() <{level = 10 : i32, message = "bnd,bmd->bnm"}> : () -> ()
    %cst_22 = arith.constant dense<0.000000e+00> : vector<2x16x16xf32>
    %64 = tpu.matmul %62, %63, %cst_22 {dimension_numbers = #tpu.dot_dimension_numbers<[2], [2], [1], [1], [0, 0, 0, 1, 1, 1], [0], [0]>} : vector<2x16x16xbf16>, vector<2x16x16xbf16>, vector<2x16x16xf32> -> vector<2x16x16xf32>
    "tpu.trace_stop"() : () -> ()
    %cst_23 = arith.constant dense<0xFF800000> : vector<2x16xf32>
    %65 = vector.multi_reduction <maximumf>, %64, %cst_23 [2] : vector<2x16x16xf32> to vector<2x16xf32>
    %66 = vector.shape_cast %65 : vector<2x16xf32> to vector<2x16x1xf32>
    %67 = vector.broadcast %66 : vector<2x16x1xf32> to vector<2x16x16xf32>
    %68 = arith.subf %64, %67 : vector<2x16x16xf32>
    %69 = math.exp %68 : vector<2x16x16xf32>
    %cst_24 = arith.constant dense<0.000000e+00> : vector<2x16xf32>
    %70 = vector.multi_reduction <add>, %69, %cst_24 [2] : vector<2x16x16xf32> to vector<2x16xf32>
    %71 = vector.shape_cast %70 : vector<2x16xf32> to vector<2x16x1xf32>
    %72 = tpu.reciprocal %71 {approx = true} : vector<2x16x1xf32> -> vector<2x16x1xf32>
    %73 = vector.broadcast %72 : vector<2x16x1xf32> to vector<2x16x16xf32>
    %74 = arith.mulf %69, %73 : vector<2x16x16xf32>
    %75 = arith.truncf %74 : vector<2x16x16xf32> to vector<2x16x16xbf16>
    %76 = vector.extract_strided_slice %45 {offsets = [0, 0, 16], sizes = [2, 16, 16], strides = [1, 1, 1]} : vector<2x16x128xbf16> to vector<2x16x16xbf16>
    "tpu.trace_start"() <{level = 10 : i32, message = "bnm,bmd->bnd"}> : () -> ()
    %cst_25 = arith.constant dense<0.000000e+00> : vector<2x16x16xf32>
    %77 = tpu.matmul %75, %76, %cst_25 {dimension_numbers = #tpu.dot_dimension_numbers<[2], [1], [1], [2], [0, 0, 0, 1, 1, 2], [0], [0]>} : vector<2x16x16xbf16>, vector<2x16x16xbf16>, vector<2x16x16xf32> -> vector<2x16x16xf32>
    "tpu.trace_stop"() : () -> ()
    %78 = vector.extract_strided_slice %39 {offsets = [0, 0, 32], sizes = [2, 16, 16], strides = [1, 1, 1]} : vector<2x16x128xbf16> to vector<2x16x16xbf16>
    %79 = vector.extract_strided_slice %42 {offsets = [0, 0, 32], sizes = [2, 16, 16], strides = [1, 1, 1]} : vector<2x16x128xbf16> to vector<2x16x16xbf16>
    "tpu.trace_start"() <{level = 10 : i32, message = "bnd,bmd->bnm"}> : () -> ()
    %cst_26 = arith.constant dense<0.000000e+00> : vector<2x16x16xf32>
    %80 = tpu.matmul %78, %79, %cst_26 {dimension_numbers = #tpu.dot_dimension_numbers<[2], [2], [1], [1], [0, 0, 0, 1, 1, 1], [0], [0]>} : vector<2x16x16xbf16>, vector<2x16x16xbf16>, vector<2x16x16xf32> -> vector<2x16x16xf32>
    "tpu.trace_stop"() : () -> ()
    %cst_27 = arith.constant dense<0xFF800000> : vector<2x16xf32>
    %81 = vector.multi_reduction <maximumf>, %80, %cst_27 [2] : vector<2x16x16xf32> to vector<2x16xf32>
    %82 = vector.shape_cast %81 : vector<2x16xf32> to vector<2x16x1xf32>
    %83 = vector.broadcast %82 : vector<2x16x1xf32> to vector<2x16x16xf32>
    %84 = arith.subf %80, %83 : vector<2x16x16xf32>
    %85 = math.exp %84 : vector<2x16x16xf32>
    %cst_28 = arith.constant dense<0.000000e+00> : vector<2x16xf32>
    %86 = vector.multi_reduction <add>, %85, %cst_28 [2] : vector<2x16x16xf32> to vector<2x16xf32>
    %87 = vector.shape_cast %86 : vector<2x16xf32> to vector<2x16x1xf32>
    %88 = tpu.reciprocal %87 {approx = true} : vector<2x16x1xf32> -> vector<2x16x1xf32>
    %89 = vector.broadcast %88 : vector<2x16x1xf32> to vector<2x16x16xf32>
    %90 = arith.mulf %85, %89 : vector<2x16x16xf32>
    %91 = arith.truncf %90 : vector<2x16x16xf32> to vector<2x16x16xbf16>
    %92 = vector.extract_strided_slice %45 {offsets = [0, 0, 32], sizes = [2, 16, 16], strides = [1, 1, 1]} : vector<2x16x128xbf16> to vector<2x16x16xbf16>
    "tpu.trace_start"() <{level = 10 : i32, message = "bnm,bmd->bnd"}> : () -> ()
    %cst_29 = arith.constant dense<0.000000e+00> : vector<2x16x16xf32>
    %93 = tpu.matmul %91, %92, %cst_29 {dimension_numbers = #tpu.dot_dimension_numbers<[2], [1], [1], [2], [0, 0, 0, 1, 1, 2], [0], [0]>} : vector<2x16x16xbf16>, vector<2x16x16xbf16>, vector<2x16x16xf32> -> vector<2x16x16xf32>
    "tpu.trace_stop"() : () -> ()
    %94 = vector.extract_strided_slice %39 {offsets = [0, 0, 48], sizes = [2, 16, 16], strides = [1, 1, 1]} : vector<2x16x128xbf16> to vector<2x16x16xbf16>
    %95 = vector.extract_strided_slice %42 {offsets = [0, 0, 48], sizes = [2, 16, 16], strides = [1, 1, 1]} : vector<2x16x128xbf16> to vector<2x16x16xbf16>
    "tpu.trace_start"() <{level = 10 : i32, message = "bnd,bmd->bnm"}> : () -> ()
    %cst_30 = arith.constant dense<0.000000e+00> : vector<2x16x16xf32>
    %96 = tpu.matmul %94, %95, %cst_30 {dimension_numbers = #tpu.dot_dimension_numbers<[2], [2], [1], [1], [0, 0, 0, 1, 1, 1], [0], [0]>} : vector<2x16x16xbf16>, vector<2x16x16xbf16>, vector<2x16x16xf32> -> vector<2x16x16xf32>
    "tpu.trace_stop"() : () -> ()
    %cst_31 = arith.constant dense<0xFF800000> : vector<2x16xf32>
    %97 = vector.multi_reduction <maximumf>, %96, %cst_31 [2] : vector<2x16x16xf32> to vector<2x16xf32>
    %98 = vector.shape_cast %97 : vector<2x16xf32> to vector<2x16x1xf32>
    %99 = vector.broadcast %98 : vector<2x16x1xf32> to vector<2x16x16xf32>
    %100 = arith.subf %96, %99 : vector<2x16x16xf32>
    %101 = math.exp %100 : vector<2x16x16xf32>
    %cst_32 = arith.constant dense<0.000000e+00> : vector<2x16xf32>
    %102 = vector.multi_reduction <add>, %101, %cst_32 [2] : vector<2x16x16xf32> to vector<2x16xf32>
    %103 = vector.shape_cast %102 : vector<2x16xf32> to vector<2x16x1xf32>
    %104 = tpu.reciprocal %103 {approx = true} : vector<2x16x1xf32> -> vector<2x16x1xf32>
    %105 = vector.broadcast %104 : vector<2x16x1xf32> to vector<2x16x16xf32>
    %106 = arith.mulf %101, %105 : vector<2x16x16xf32>
    %107 = arith.truncf %106 : vector<2x16x16xf32> to vector<2x16x16xbf16>
    %108 = vector.extract_strided_slice %45 {offsets = [0, 0, 48], sizes = [2, 16, 16], strides = [1, 1, 1]} : vector<2x16x128xbf16> to vector<2x16x16xbf16>
    "tpu.trace_start"() <{level = 10 : i32, message = "bnm,bmd->bnd"}> : () -> ()
    %cst_33 = arith.constant dense<0.000000e+00> : vector<2x16x16xf32>
    %109 = tpu.matmul %107, %108, %cst_33 {dimension_numbers = #tpu.dot_dimension_numbers<[2], [1], [1], [2], [0, 0, 0, 1, 1, 2], [0], [0]>} : vector<2x16x16xbf16>, vector<2x16x16xbf16>, vector<2x16x16xf32> -> vector<2x16x16xf32>
    "tpu.trace_stop"() : () -> ()
    %110 = vector.extract_strided_slice %39 {offsets = [0, 0, 64], sizes = [2, 16, 16], strides = [1, 1, 1]} : vector<2x16x128xbf16> to vector<2x16x16xbf16>
    %111 = vector.extract_strided_slice %42 {offsets = [0, 0, 64], sizes = [2, 16, 16], strides = [1, 1, 1]} : vector<2x16x128xbf16> to vector<2x16x16xbf16>
    "tpu.trace_start"() <{level = 10 : i32, message = "bnd,bmd->bnm"}> : () -> ()
    %cst_34 = arith.constant dense<0.000000e+00> : vector<2x16x16xf32>
    %112 = tpu.matmul %110, %111, %cst_34 {dimension_numbers = #tpu.dot_dimension_numbers<[2], [2], [1], [1], [0, 0, 0, 1, 1, 1], [0], [0]>} : vector<2x16x16xbf16>, vector<2x16x16xbf16>, vector<2x16x16xf32> -> vector<2x16x16xf32>
    "tpu.trace_stop"() : () -> ()
    %cst_35 = arith.constant dense<0xFF800000> : vector<2x16xf32>
    %113 = vector.multi_reduction <maximumf>, %112, %cst_35 [2] : vector<2x16x16xf32> to vector<2x16xf32>
    %114 = vector.shape_cast %113 : vector<2x16xf32> to vector<2x16x1xf32>
    %115 = vector.broadcast %114 : vector<2x16x1xf32> to vector<2x16x16xf32>
    %116 = arith.subf %112, %115 : vector<2x16x16xf32>
    %117 = math.exp %116 : vector<2x16x16xf32>
    %cst_36 = arith.constant dense<0.000000e+00> : vector<2x16xf32>
    %118 = vector.multi_reduction <add>, %117, %cst_36 [2] : vector<2x16x16xf32> to vector<2x16xf32>
    %119 = vector.shape_cast %118 : vector<2x16xf32> to vector<2x16x1xf32>
    %120 = tpu.reciprocal %119 {approx = true} : vector<2x16x1xf32> -> vector<2x16x1xf32>
    %121 = vector.broadcast %120 : vector<2x16x1xf32> to vector<2x16x16xf32>
    %122 = arith.mulf %117, %121 : vector<2x16x16xf32>
    %123 = arith.truncf %122 : vector<2x16x16xf32> to vector<2x16x16xbf16>
    %124 = vector.extract_strided_slice %45 {offsets = [0, 0, 64], sizes = [2, 16, 16], strides = [1, 1, 1]} : vector<2x16x128xbf16> to vector<2x16x16xbf16>
    "tpu.trace_start"() <{level = 10 : i32, message = "bnm,bmd->bnd"}> : () -> ()
    %cst_37 = arith.constant dense<0.000000e+00> : vector<2x16x16xf32>
    %125 = tpu.matmul %123, %124, %cst_37 {dimension_numbers = #tpu.dot_dimension_numbers<[2], [1], [1], [2], [0, 0, 0, 1, 1, 2], [0], [0]>} : vector<2x16x16xbf16>, vector<2x16x16xbf16>, vector<2x16x16xf32> -> vector<2x16x16xf32>
    "tpu.trace_stop"() : () -> ()
    %126 = vector.extract_strided_slice %39 {offsets = [0, 0, 80], sizes = [2, 16, 16], strides = [1, 1, 1]} : vector<2x16x128xbf16> to vector<2x16x16xbf16>
    %127 = vector.extract_strided_slice %42 {offsets = [0, 0, 80], sizes = [2, 16, 16], strides = [1, 1, 1]} : vector<2x16x128xbf16> to vector<2x16x16xbf16>
    "tpu.trace_start"() <{level = 10 : i32, message = "bnd,bmd->bnm"}> : () -> ()
    %cst_38 = arith.constant dense<0.000000e+00> : vector<2x16x16xf32>
    %128 = tpu.matmul %126, %127, %cst_38 {dimension_numbers = #tpu.dot_dimension_numbers<[2], [2], [1], [1], [0, 0, 0, 1, 1, 1], [0], [0]>} : vector<2x16x16xbf16>, vector<2x16x16xbf16>, vector<2x16x16xf32> -> vector<2x16x16xf32>
    "tpu.trace_stop"() : () -> ()
    %cst_39 = arith.constant dense<0xFF800000> : vector<2x16xf32>
    %129 = vector.multi_reduction <maximumf>, %128, %cst_39 [2] : vector<2x16x16xf32> to vector<2x16xf32>
    %130 = vector.shape_cast %129 : vector<2x16xf32> to vector<2x16x1xf32>
    %131 = vector.broadcast %130 : vector<2x16x1xf32> to vector<2x16x16xf32>
    %132 = arith.subf %128, %131 : vector<2x16x16xf32>
    %133 = math.exp %132 : vector<2x16x16xf32>
    %cst_40 = arith.constant dense<0.000000e+00> : vector<2x16xf32>
    %134 = vector.multi_reduction <add>, %133, %cst_40 [2] : vector<2x16x16xf32> to vector<2x16xf32>
    %135 = vector.shape_cast %134 : vector<2x16xf32> to vector<2x16x1xf32>
    %136 = tpu.reciprocal %135 {approx = true} : vector<2x16x1xf32> -> vector<2x16x1xf32>
    %137 = vector.broadcast %136 : vector<2x16x1xf32> to vector<2x16x16xf32>
    %138 = arith.mulf %133, %137 : vector<2x16x16xf32>
    %139 = arith.truncf %138 : vector<2x16x16xf32> to vector<2x16x16xbf16>
    %140 = vector.extract_strided_slice %45 {offsets = [0, 0, 80], sizes = [2, 16, 16], strides = [1, 1, 1]} : vector<2x16x128xbf16> to vector<2x16x16xbf16>
    "tpu.trace_start"() <{level = 10 : i32, message = "bnm,bmd->bnd"}> : () -> ()
    %cst_41 = arith.constant dense<0.000000e+00> : vector<2x16x16xf32>
    %141 = tpu.matmul %139, %140, %cst_41 {dimension_numbers = #tpu.dot_dimension_numbers<[2], [1], [1], [2], [0, 0, 0, 1, 1, 2], [0], [0]>} : vector<2x16x16xbf16>, vector<2x16x16xbf16>, vector<2x16x16xf32> -> vector<2x16x16xf32>
    "tpu.trace_stop"() : () -> ()
    %142 = vector.extract_strided_slice %39 {offsets = [0, 0, 96], sizes = [2, 16, 16], strides = [1, 1, 1]} : vector<2x16x128xbf16> to vector<2x16x16xbf16>
    %143 = vector.extract_strided_slice %42 {offsets = [0, 0, 96], sizes = [2, 16, 16], strides = [1, 1, 1]} : vector<2x16x128xbf16> to vector<2x16x16xbf16>
    "tpu.trace_start"() <{level = 10 : i32, message = "bnd,bmd->bnm"}> : () -> ()
    %cst_42 = arith.constant dense<0.000000e+00> : vector<2x16x16xf32>
    %144 = tpu.matmul %142, %143, %cst_42 {dimension_numbers = #tpu.dot_dimension_numbers<[2], [2], [1], [1], [0, 0, 0, 1, 1, 1], [0], [0]>} : vector<2x16x16xbf16>, vector<2x16x16xbf16>, vector<2x16x16xf32> -> vector<2x16x16xf32>
    "tpu.trace_stop"() : () -> ()
    %cst_43 = arith.constant dense<0xFF800000> : vector<2x16xf32>
    %145 = vector.multi_reduction <maximumf>, %144, %cst_43 [2] : vector<2x16x16xf32> to vector<2x16xf32>
    %146 = vector.shape_cast %145 : vector<2x16xf32> to vector<2x16x1xf32>
    %147 = vector.broadcast %146 : vector<2x16x1xf32> to vector<2x16x16xf32>
    %148 = arith.subf %144, %147 : vector<2x16x16xf32>
    %149 = math.exp %148 : vector<2x16x16xf32>
    %cst_44 = arith.constant dense<0.000000e+00> : vector<2x16xf32>
    %150 = vector.multi_reduction <add>, %149, %cst_44 [2] : vector<2x16x16xf32> to vector<2x16xf32>
    %151 = vector.shape_cast %150 : vector<2x16xf32> to vector<2x16x1xf32>
    %152 = tpu.reciprocal %151 {approx = true} : vector<2x16x1xf32> -> vector<2x16x1xf32>
    %153 = vector.broadcast %152 : vector<2x16x1xf32> to vector<2x16x16xf32>
    %154 = arith.mulf %149, %153 : vector<2x16x16xf32>
    %155 = arith.truncf %154 : vector<2x16x16xf32> to vector<2x16x16xbf16>
    %156 = vector.extract_strided_slice %45 {offsets = [0, 0, 96], sizes = [2, 16, 16], strides = [1, 1, 1]} : vector<2x16x128xbf16> to vector<2x16x16xbf16>
    "tpu.trace_start"() <{level = 10 : i32, message = "bnm,bmd->bnd"}> : () -> ()
    %cst_45 = arith.constant dense<0.000000e+00> : vector<2x16x16xf32>
    %157 = tpu.matmul %155, %156, %cst_45 {dimension_numbers = #tpu.dot_dimension_numbers<[2], [1], [1], [2], [0, 0, 0, 1, 1, 2], [0], [0]>} : vector<2x16x16xbf16>, vector<2x16x16xbf16>, vector<2x16x16xf32> -> vector<2x16x16xf32>
    "tpu.trace_stop"() : () -> ()
    %158 = vector.extract_strided_slice %39 {offsets = [0, 0, 112], sizes = [2, 16, 16], strides = [1, 1, 1]} : vector<2x16x128xbf16> to vector<2x16x16xbf16>
    %159 = vector.extract_strided_slice %42 {offsets = [0, 0, 112], sizes = [2, 16, 16], strides = [1, 1, 1]} : vector<2x16x128xbf16> to vector<2x16x16xbf16>
    "tpu.trace_start"() <{level = 10 : i32, message = "bnd,bmd->bnm"}> : () -> ()
    %cst_46 = arith.constant dense<0.000000e+00> : vector<2x16x16xf32>
    %160 = tpu.matmul %158, %159, %cst_46 {dimension_numbers = #tpu.dot_dimension_numbers<[2], [2], [1], [1], [0, 0, 0, 1, 1, 1], [0], [0]>} : vector<2x16x16xbf16>, vector<2x16x16xbf16>, vector<2x16x16xf32> -> vector<2x16x16xf32>
    "tpu.trace_stop"() : () -> ()
    %cst_47 = arith.constant dense<0xFF800000> : vector<2x16xf32>
    %161 = vector.multi_reduction <maximumf>, %160, %cst_47 [2] : vector<2x16x16xf32> to vector<2x16xf32>
    %162 = vector.shape_cast %161 : vector<2x16xf32> to vector<2x16x1xf32>
    %163 = vector.broadcast %162 : vector<2x16x1xf32> to vector<2x16x16xf32>
    %164 = arith.subf %160, %163 : vector<2x16x16xf32>
    %165 = math.exp %164 : vector<2x16x16xf32>
    %cst_48 = arith.constant dense<0.000000e+00> : vector<2x16xf32>
    %166 = vector.multi_reduction <add>, %165, %cst_48 [2] : vector<2x16x16xf32> to vector<2x16xf32>
    %167 = vector.shape_cast %166 : vector<2x16xf32> to vector<2x16x1xf32>
    %168 = tpu.reciprocal %167 {approx = true} : vector<2x16x1xf32> -> vector<2x16x1xf32>
    %169 = vector.broadcast %168 : vector<2x16x1xf32> to vector<2x16x16xf32>
    %170 = arith.mulf %165, %169 : vector<2x16x16xf32>
    %171 = arith.truncf %170 : vector<2x16x16xf32> to vector<2x16x16xbf16>
    %172 = vector.extract_strided_slice %45 {offsets = [0, 0, 112], sizes = [2, 16, 16], strides = [1, 1, 1]} : vector<2x16x128xbf16> to vector<2x16x16xbf16>
    "tpu.trace_start"() <{level = 10 : i32, message = "bnm,bmd->bnd"}> : () -> ()
    %cst_49 = arith.constant dense<0.000000e+00> : vector<2x16x16xf32>
    %173 = tpu.matmul %171, %172, %cst_49 {dimension_numbers = #tpu.dot_dimension_numbers<[2], [1], [1], [2], [0, 0, 0, 1, 1, 2], [0], [0]>} : vector<2x16x16xbf16>, vector<2x16x16xbf16>, vector<2x16x16xf32> -> vector<2x16x16xf32>
    "tpu.trace_stop"() : () -> ()
    %174 = tpu.concatenate %61, %77, %93, %109, %125, %141, %157, %173 in 2 : vector<2x16x16xf32>, vector<2x16x16xf32>, vector<2x16x16xf32>, vector<2x16x16xf32>, vector<2x16x16xf32>, vector<2x16x16xf32>, vector<2x16x16xf32>, vector<2x16x16xf32> -> vector<2x16x128xf32>
    %175 = vector.shape_cast %174 : vector<2x16x128xf32> to vector<32x128xf32>
    %176 = arith.truncf %175 : vector<32x128xf32> to vector<32x128xbf16>
    %c0_50 = arith.constant 0 : index
    %c0_51 = arith.constant 0 : index
    %c0_52 = arith.constant 0 : index
    %177 = vector.load %arg9[%c0_50, %c0_51, %c0_52] : memref<1x128x128xbf16, #tpu.memory_space<vmem>>, vector<1x128x128xbf16>
    %178 = vector.shape_cast %177 : vector<1x128x128xbf16> to vector<128x128xbf16>
    %cst_53 = arith.constant dense<0.000000e+00> : vector<32x128xf32>
    %179 = tpu.matmul %176, %178, %cst_53 {dimension_numbers = #tpu.dot_dimension_numbers<[1], [0], [0], [1], [0, 0, 1, 1], [], []>} : vector<32x128xbf16>, vector<128x128xbf16>, vector<32x128xf32> -> vector<32x128xf32>
    %180 = arith.addf %4, %179 : vector<32x128xf32>
    %c0_54 = arith.constant 0 : index
    %c0_55 = arith.constant 0 : index
    %c0_56 = arith.constant 0 : index
    %181 = vector.load %arg10[%c0_54, %c0_55, %c0_56] : memref<1x1x128xf32, #tpu.memory_space<vmem>>, vector<1x1x128xf32>
    %182 = vector.shape_cast %181 : vector<1x1x128xf32> to vector<1x128xf32>
    %183 = vector.broadcast %182 : vector<1x128xf32> to vector<32x128xf32>
    %184 = arith.addf %180, %183 : vector<32x128xf32>
    %cst_57 = arith.constant dense<0.000000e+00> : vector<32xf32>
    %185 = vector.multi_reduction <add>, %184, %cst_57 [1] : vector<32x128xf32> to vector<32xf32>
    %186 = vector.shape_cast %185 : vector<32xf32> to vector<32x1xf32>
    %cst_58 = arith.constant 1.280000e+02 : f32
    %187 = vector.broadcast %cst_58 : f32 to vector<32x1xf32>
    %188 = arith.divf %186, %187 : vector<32x1xf32>
    %189 = arith.mulf %184, %184 : vector<32x128xf32>
    %cst_59 = arith.constant dense<0.000000e+00> : vector<32xf32>
    %190 = vector.multi_reduction <add>, %189, %cst_59 [1] : vector<32x128xf32> to vector<32xf32>
    %191 = vector.shape_cast %190 : vector<32xf32> to vector<32x1xf32>
    %cst_60 = arith.constant 1.280000e+02 : f32
    %192 = vector.broadcast %cst_60 : f32 to vector<32x1xf32>
    %193 = arith.divf %191, %192 : vector<32x1xf32>
    %194 = arith.mulf %188, %188 : vector<32x1xf32>
    %195 = arith.subf %193, %194 : vector<32x1xf32>
    %cst_61 = arith.constant 0.000000e+00 : f32
    %196 = vector.broadcast %cst_61 : f32 to vector<32x1xf32>
    %197 = arith.maximumf %195, %196 : vector<32x1xf32>
    %198 = vector.broadcast %188 : vector<32x1xf32> to vector<32x128xf32>
    %199 = arith.subf %184, %198 : vector<32x128xf32>
    %cst_62 = arith.constant 9.99999974E-6 : f32
    %200 = vector.broadcast %cst_62 : f32 to vector<32x1xf32>
    %201 = arith.addf %197, %200 : vector<32x1xf32>
    %202 = math.rsqrt %201 : vector<32x1xf32>
    %203 = vector.broadcast %202 : vector<32x1xf32> to vector<32x128xf32>
    %204 = arith.mulf %199, %203 : vector<32x128xf32>
    %c0_63 = arith.constant 0 : index
    %c0_64 = arith.constant 0 : index
    %c0_65 = arith.constant 0 : index
    %205 = vector.load %arg11[%c0_63, %c0_64, %c0_65] : memref<1x1x128xf32, #tpu.memory_space<vmem>>, vector<1x1x128xf32>
    %206 = vector.shape_cast %205 : vector<1x1x128xf32> to vector<1x128xf32>
    %207 = vector.broadcast %206 : vector<1x128xf32> to vector<32x128xf32>
    %208 = arith.mulf %204, %207 : vector<32x128xf32>
    %c0_66 = arith.constant 0 : index
    %c0_67 = arith.constant 0 : index
    %c0_68 = arith.constant 0 : index
    %209 = vector.load %arg12[%c0_66, %c0_67, %c0_68] : memref<1x1x128xf32, #tpu.memory_space<vmem>>, vector<1x1x128xf32>
    %210 = vector.shape_cast %209 : vector<1x1x128xf32> to vector<1x128xf32>
    %211 = vector.broadcast %210 : vector<1x128xf32> to vector<32x128xf32>
    %212 = arith.addf %208, %211 : vector<32x128xf32>
    %213 = arith.truncf %212 : vector<32x128xf32> to vector<32x128xbf16>
    %c0_69 = arith.constant 0 : index
    %c0_70 = arith.constant 0 : index
    %c0_71 = arith.constant 0 : index
    %214 = vector.load %arg13[%c0_69, %c0_70, %c0_71] : memref<1x128x256xbf16, #tpu.memory_space<vmem>>, vector<1x128x256xbf16>
    %215 = vector.shape_cast %214 : vector<1x128x256xbf16> to vector<128x256xbf16>
    %cst_72 = arith.constant dense<0.000000e+00> : vector<32x256xf32>
    %216 = tpu.matmul %213, %215, %cst_72 {dimension_numbers = #tpu.dot_dimension_numbers<[1], [0], [0], [1], [0, 0, 1, 1], [], []>} : vector<32x128xbf16>, vector<128x256xbf16>, vector<32x256xf32> -> vector<32x256xf32>
    %c0_73 = arith.constant 0 : index
    %c0_74 = arith.constant 0 : index
    %c0_75 = arith.constant 0 : index
    %217 = vector.load %arg14[%c0_73, %c0_74, %c0_75] : memref<1x1x256xf32, #tpu.memory_space<vmem>>, vector<1x1x256xf32>
    %218 = vector.shape_cast %217 : vector<1x1x256xf32> to vector<1x256xf32>
    %219 = vector.broadcast %218 : vector<1x256xf32> to vector<32x256xf32>
    %220 = arith.addf %216, %219 : vector<32x256xf32>
    %cst_76 = arith.constant 0.000000e+00 : f32
    %221 = vector.broadcast %cst_76 : f32 to vector<32x256xf32>
    %222 = arith.maximumf %220, %221 : vector<32x256xf32>
    %223 = arith.truncf %222 : vector<32x256xf32> to vector<32x256xbf16>
    %c0_77 = arith.constant 0 : index
    %c0_78 = arith.constant 0 : index
    %c0_79 = arith.constant 0 : index
    %224 = vector.load %arg15[%c0_77, %c0_78, %c0_79] : memref<1x256x128xbf16, #tpu.memory_space<vmem>>, vector<1x256x128xbf16>
    %225 = vector.shape_cast %224 : vector<1x256x128xbf16> to vector<256x128xbf16>
    %cst_80 = arith.constant dense<0.000000e+00> : vector<32x128xf32>
    %226 = tpu.matmul %223, %225, %cst_80 {dimension_numbers = #tpu.dot_dimension_numbers<[1], [0], [0], [1], [0, 0, 1, 1], [], []>} : vector<32x256xbf16>, vector<256x128xbf16>, vector<32x128xf32> -> vector<32x128xf32>
    %227 = arith.addf %184, %226 : vector<32x128xf32>
    %c0_81 = arith.constant 0 : index
    %c0_82 = arith.constant 0 : index
    %c0_83 = arith.constant 0 : index
    %228 = vector.load %arg16[%c0_81, %c0_82, %c0_83] : memref<1x1x128xf32, #tpu.memory_space<vmem>>, vector<1x1x128xf32>
    %229 = vector.shape_cast %228 : vector<1x1x128xf32> to vector<1x128xf32>
    %230 = vector.broadcast %229 : vector<1x128xf32> to vector<32x128xf32>
    %231 = arith.addf %227, %230 : vector<32x128xf32>
    %232 = vector.shape_cast %231 : vector<32x128xf32> to vector<2x16x128xf32>
    %c0_84 = arith.constant 0 : index
    %c0_85 = arith.constant 0 : index
    %c0_86 = arith.constant 0 : index
    %233 = vector.load %arg18[%c0_84, %c0_85, %c0_86] : memref<2x16x128xf32, #tpu.memory_space<vmem>>, vector<2x16x128xf32>
    tpu.vector_store %arg18[%c0_84, %c0_85, %c0_86], %232 {strides = array<i32>} : memref<2x16x128xf32, #tpu.memory_space<vmem>>, vector<2x16x128xf32>,
    %c1_i32 = arith.constant 1 : i32
    %234 = arith.cmpi eq, %arg1, %c1_i32 : i32
    %235 = arith.extui %234 : i1 to i32
    %c0_i32_87 = arith.constant 0 : i32
    %236 = arith.cmpi ne, %235, %c0_i32_87 : i32
    scf.if %236 {
      %237 = vector.extract_strided_slice %232 {offsets = [0, 8, 0], sizes = [2, 8, 128], strides = [1, 1, 1]} : vector<2x16x128xf32> to vector<2x8x128xf32>
      %c0_88 = arith.constant 0 : index
      %c0_89 = arith.constant 0 : index
      %c0_90 = arith.constant 0 : index
      %238 = vector.load %arg17[%c0_88, %c0_89, %c0_90] : memref<2x8x128xf32, #tpu.memory_space<vmem>>, vector<2x8x128xf32>
      tpu.vector_store %arg17[%c0_88, %c0_89, %c0_90], %237 {strides = array<i32>} : memref<2x8x128xf32, #tpu.memory_space<vmem>>, vector<2x8x128xf32>,
    } else {
    }
    return
  }
  func.func @transform_0(%arg0: i32, %arg1: i32) -> (i32, i32, i32) {
    %c0_i32 = arith.constant 0 : i32
    %c0_i32_0 = arith.constant 0 : i32
    %c0_i32_1 = arith.constant 0 : i32
    return %arg0, %c0_i32, %c0_i32_0 : i32, i32, i32
  }
  func.func @transform_1(%arg0: i32, %arg1: i32) -> (i32, i32) {
    %c0_i32 = arith.constant 0 : i32
    %c0_i32_0 = arith.constant 0 : i32
    %c0_i32_1 = arith.constant 0 : i32
    return %c0_i32, %c0_i32_0 : i32, i32
  }
  func.func @transform_2(%arg0: i32, %arg1: i32) -> (i32, i32) {
    %c0_i32 = arith.constant 0 : i32
    %c0_i32_0 = arith.constant 0 : i32
    %c0_i32_1 = arith.constant 0 : i32
    return %c0_i32, %c0_i32_0 : i32, i32
  }
  func.func @transform_3(%arg0: i32, %arg1: i32) -> (i32, i32) {
    %c0_i32 = arith.constant 0 : i32
    %c0_i32_0 = arith.constant 0 : i32
    %c0_i32_1 = arith.constant 0 : i32
    return %c0_i32, %c0_i32_0 : i32, i32
  }
  func.func @transform_4(%arg0: i32, %arg1: i32) -> (i32, i32, i32) {
    %c0_i32 = arith.constant 0 : i32
    %c0_i32_0 = arith.constant 0 : i32
    %c0_i32_1 = arith.constant 0 : i32
    return %arg1, %c0_i32, %c0_i32_0 : i32, i32, i32
  }
  func.func @transform_5(%arg0: i32, %arg1: i32) -> (i32, i32, i32) {
    %c0_i32 = arith.constant 0 : i32
    %c0_i32_0 = arith.constant 0 : i32
    %c0_i32_1 = arith.constant 0 : i32
    return %arg1, %c0_i32, %c0_i32_0 : i32, i32, i32
  }
  func.func @transform_6(%arg0: i32, %arg1: i32) -> (i32, i32, i32) {
    %c0_i32 = arith.constant 0 : i32
    %c0_i32_0 = arith.constant 0 : i32
    %c0_i32_1 = arith.constant 0 : i32
    return %arg1, %c0_i32, %c0_i32_0 : i32, i32, i32
  }
  func.func @transform_7(%arg0: i32, %arg1: i32) -> (i32, i32, i32) {
    %c0_i32 = arith.constant 0 : i32
    %c0_i32_0 = arith.constant 0 : i32
    %c0_i32_1 = arith.constant 0 : i32
    return %arg1, %c0_i32, %c0_i32_0 : i32, i32, i32
  }
  func.func @transform_8(%arg0: i32, %arg1: i32) -> (i32, i32, i32) {
    %c0_i32 = arith.constant 0 : i32
    %c0_i32_0 = arith.constant 0 : i32
    %c0_i32_1 = arith.constant 0 : i32
    return %arg1, %c0_i32, %c0_i32_0 : i32, i32, i32
  }
  func.func @transform_9(%arg0: i32, %arg1: i32) -> (i32, i32, i32) {
    %c0_i32 = arith.constant 0 : i32
    %c0_i32_0 = arith.constant 0 : i32
    %c0_i32_1 = arith.constant 0 : i32
    return %arg1, %c0_i32, %c0_i32_0 : i32, i32, i32
  }
  func.func @transform_10(%arg0: i32, %arg1: i32) -> (i32, i32, i32) {
    %c0_i32 = arith.constant 0 : i32
    %c0_i32_0 = arith.constant 0 : i32
    %c0_i32_1 = arith.constant 0 : i32
    return %arg1, %c0_i32, %c0_i32_0 : i32, i32, i32
  }
  func.func @transform_11(%arg0: i32, %arg1: i32) -> (i32, i32, i32) {
    %c0_i32 = arith.constant 0 : i32
    %c0_i32_0 = arith.constant 0 : i32
    %c0_i32_1 = arith.constant 0 : i32
    return %arg1, %c0_i32, %c0_i32_0 : i32, i32, i32
  }
  func.func @transform_12(%arg0: i32, %arg1: i32) -> (i32, i32, i32) {
    %c0_i32 = arith.constant 0 : i32
    %c0_i32_0 = arith.constant 0 : i32
    %c0_i32_1 = arith.constant 0 : i32
    return %arg1, %c0_i32, %c0_i32_0 : i32, i32, i32
  }
  func.func @transform_13(%arg0: i32, %arg1: i32) -> (i32, i32, i32) {
    %c0_i32 = arith.constant 0 : i32
    %c0_i32_0 = arith.constant 0 : i32
    %c0_i32_1 = arith.constant 0 : i32
    return %arg1, %c0_i32, %c0_i32_0 : i32, i32, i32
  }
  func.func @transform_14(%arg0: i32, %arg1: i32) -> (i32, i32, i32) {
    %c0_i32 = arith.constant 0 : i32
    %c0_i32_0 = arith.constant 0 : i32
    %c0_i32_1 = arith.constant 0 : i32
    return %arg1, %c0_i32, %c0_i32_0 : i32, i32, i32
  }
  func.func @transform_15(%arg0: i32, %arg1: i32) -> (i32, i32, i32) {
    %c0_i32 = arith.constant 0 : i32
    %c0_i32_0 = arith.constant 0 : i32
    %c0_i32_1 = arith.constant 0 : i32
    return %arg0, %c0_i32, %c0_i32_0 : i32, i32, i32
  }
}

</mosaic_0001>

<llo_original>
// kernel: transformer_mapper.1
$region0: #{transformer_mapper.1}
  #allocation0 [shape = 'u32[]', space=smem, size = 0x4, offset = 0x4, fixed_abs, tag = 'smem constant byte address 0x4 - core index']
  #allocation1 [shape = 'u32[144,128]{1,0:T(1,128)}', space=vmem, size = 0x12000, scoped, tag = 'internal scratch']
  #allocation2 [shape = 'f32[2,16,128]{2,1,0:T(8,128)}', space=vmem, size = 0x4000, scoped, tag = 'scratch operand']
  %s0 = inlined_call_operand.vmem [shape: f32[2,1,64], index: 0, kind: input, shape index: {}]
  %s1 = inlined_call_operand.hbm [shape: bf16[64,1024], index: 1, kind: input, shape index: {}]
  %s2 = inlined_call_operand.vmem [shape: f32[1,1024], index: 2, kind: input, shape index: {}]
  %s3 = inlined_call_operand.vmem [shape: f32[8,128], index: 3, kind: input, shape index: {}]
  %s4 = inlined_call_operand.vmem [shape: f32[2,1,128], index: 4, kind: input, shape index: {}]
  %s5 = inlined_call_operand.vmem [shape: f32[2,1,128], index: 5, kind: input, shape index: {}]
  %s6 = inlined_call_operand.hbm [shape: bf16[2,128,384], index: 6, kind: input, shape index: {}]
  %s7 = inlined_call_operand.hbm [shape: bf16[2,128,128], index: 7, kind: input, shape index: {}]
  %s8 = inlined_call_operand.hbm [shape: f32[2,1,128], index: 8, kind: input, shape index: {}]
  %s9 = inlined_call_operand.vmem [shape: f32[2,1,128], index: 9, kind: input, shape index: {}]
  %s10 = inlined_call_operand.vmem [shape: f32[2,1,128], index: 10, kind: input, shape index: {}]
  %s11 = inlined_call_operand.hbm [shape: bf16[2,128,256], index: 11, kind: input, shape index: {}]
  %s12 = inlined_call_operand.hbm [shape: f32[2,1,256], index: 12, kind: input, shape index: {}]
  %s13 = inlined_call_operand.hbm [shape: bf16[2,256,128], index: 13, kind: input, shape index: {}]
  %s14 = inlined_call_operand.hbm [shape: f32[2,1,128], index: 14, kind: input, shape index: {}]
  %s15 = inlined_call_operand.hbm [shape: f32[2,8,128], index: 15, kind: output, shape index: {}]
  %s16 = sld [smem:[#allocation0]]
  $region133: #{transformer_mapper.1} parent=0
    _
  %s18 = ssub.s32 1, %s16
  %s19 = scalar_select 0, %s18, %s16
  $region1: #{transformer_mapper.1} parent=0
    #allocation3 [shape = 'u8[131072]{0}', space=vmem, size = 0x20000, scoped, tag = 'input window, operand 1, single buffered']
    #allocation4 [shape = 's32[2]{0}', space=sflag, size = 0x8, scoped, tag = 'scoped memory for transformer_mapper.1']
    #allocation5 [shape = 's32[2]{0}', space=sflag, size = 0x8, scoped, tag = 'scoped memory for transformer_mapper.1']
    #allocation6 [shape = 'u8[196608]{0}', space=vmem, size = 0x30000, scoped, tag = 'input window, operand 6']
    #allocation7 [shape = 's32[2]{0}', space=sflag, size = 0x8, scoped, tag = 'scoped memory for transformer_mapper.1']
    #allocation8 [shape = 'u8[65536]{0}', space=vmem, size = 0x10000, scoped, tag = 'input window, operand 7']
    #allocation9 [shape = 'u8[1024]{0}', space=vmem, size = 0x400, scoped, tag = 'input window, operand 8']
    #allocation10 [shape = 's32[2]{0}', space=sflag, size = 0x8, scoped, tag = 'scoped memory for transformer_mapper.1']
    #allocation11 [shape = 'u8[131072]{0}', space=vmem, size = 0x20000, scoped, tag = 'input window, operand 11']
    #allocation12 [shape = 'u8[2048]{0}', space=vmem, size = 0x800, scoped, tag = 'input window, operand 12']
    #allocation13 [shape = 's32[2]{0}', space=sflag, size = 0x8, scoped, tag = 'scoped memory for transformer_mapper.1']
    #allocation14 [shape = 'u8[131072]{0}', space=vmem, size = 0x20000, scoped, tag = 'input window, operand 13']
    #allocation15 [shape = 'u8[1024]{0}', space=vmem, size = 0x400, scoped, tag = 'input window, operand 14']
    #allocation16 [shape = 's32[2]{0}', space=sflag, size = 0x8, scoped, tag = 'scoped memory for transformer_mapper.1']
    #allocation17 [shape = 'u8[8192]{0}', space=vmem, size = 0x2000, scoped, tag = 'output window, operand 0, single buffered']
    %20 = vsyncpa [#allocation4], 0
    %21 = vsyncpa [#allocation7], 0
    %s22 = scalar_lea.sflag [#allocation7], 1
    %23 = vsyncpa %s22, 0
    %24 = vsyncpa [#allocation10], 0
    %s25 = scalar_lea.sflag [#allocation10], 1
    %26 = vsyncpa %s25, 0
    %27 = vsyncpa [#allocation13], 0
    %s28 = scalar_lea.sflag [#allocation13], 1
    %29 = vsyncpa %s28, 0
    %30 = vsyncpa [#allocation16], 0
    %s31 = scalar_lea.sflag [#allocation16], 1
    %32 = vsyncpa %s31, 0
    %33 = vsyncpa [#allocation5], 0
    loop: start=0, step=1, limit=4
    $region2: #{transformer_mapper.1} parent=1 // loop_pre_header
      _
    $region3: #{transformer_mapper.1} parent=1 // loop_header
      %s35 = sphi 0, %s39
      %p36 = scmp.ge.s32.totalorder %s35, 4
      %s42 = sphi 0, %s54
      %s43 = sphi 0, %s50
      %s44 = sphi 0, %s42
      %s45 = sphi 0, %s43
      %s46 = sphi 0, %s44
      %s47 = sphi 0, %s45
      %s57 = sphi 0, %s59
      %s60 = sphi 0, %s57
      %s61 = sphi 0, %s60
      %s77 = sphi 0, %s61
      %s81 = sphi 0, %s81
      %s83 = sphi 0, %s81
      %s84 = sphi 0, %s83
      %s98 = sphi 0, %s84
      %s102 = sphi 0, %s102
      %s104 = sphi 0, %s102
      %s105 = sphi 0, %s104
      %s119 = sphi 0, %s105
      %s123 = sphi 0, %s123
      %s125 = sphi 0, %s123
      %s126 = sphi 0, %s125
      %s140 = sphi 0, %s126
      %s146 = sphi 0, %s148
      %s149 = sphi 0, %s146
      %s150 = sphi 0, %s149
      %s166 = sphi 0, %s150
      %s172 = sphi 0, %s174
      %s175 = sphi 0, %s172
      %s176 = sphi 0, %s175
      %s192 = sphi 0, %s176
      %s198 = sphi 0, %s200
      %s201 = sphi 0, %s198
      %s202 = sphi 0, %s201
      %s218 = sphi 0, %s202
      %s224 = sphi 0, %s226
      %s227 = sphi 0, %s224
      %s228 = sphi 0, %s227
      %s244 = sphi 0, %s228
      %s250 = sphi 0, %s252
      %s253 = sphi 0, %s250
      %s254 = sphi 0, %s253
      %s270 = sphi 0, %s254
      %s276 = sphi 0, %s278
      %s279 = sphi 0, %s276
      %s280 = sphi 0, %s279
      %s296 = sphi 0, %s280
      %s302 = sphi 0, %s304
      %s305 = sphi 0, %s302
      %s306 = sphi 0, %s305
      %s322 = sphi 0, %s306
      %s328 = sphi 0, %s330
      %s331 = sphi 0, %s328
      %s332 = sphi 0, %s331
      %s348 = sphi 0, %s332
      %s354 = sphi 0, %s356
      %s357 = sphi 0, %s354
      %s358 = sphi 0, %s357
      %s374 = sphi 0, %s358
      %s380 = sphi 0, %s382
      %s383 = sphi 0, %s380
      %s384 = sphi 0, %s383
      %s400 = sphi 0, %s384
      %s406 = sphi 0, %s408
      %s409 = sphi 0, %s406
      %s410 = sphi 0, %s409
      %s426 = sphi 0, %s410
      %s432 = sphi 0, %s434
      %s435 = sphi 0, %s432
      %s436 = sphi 0, %s435
      %s452 = sphi 0, %s436
    $region4: #{transformer_mapper.1} parent=1 // loop_header_branch
      %38 = sbr.rel (%p36) target = $region8
    $region5: #{transformer_mapper.1} parent=1 // loop_body
      %s40 = ssub.s32 %s35, 1
      %s41 = ssub.s32 %s35, 2
      %s48 = sadd.s32 1, %s43
      %p49 = scmp.ge.s32.totalorder %s48, 2
      %s50 = scalar_select %p49, 0, %s48
      %s51 = sadd.s32 1, %s42
      %s52 = scalar_select %p49, %s51, %s42
      %p53 = scmp.ge.s32.totalorder %s52, 1
      %s54 = scalar_select %p53, 0, %s52
      %s55 = ssub.s32 %s42, %s54
      %p56 = scmp.eq.s32.totalorder %s55, 0
      %s58 = sadd.s32 %s57, 1
      %s59 = scalar_select %p56, %s57, %s58
      %p62 = pneg %p56
      %p63 = scmp.eq.s32.totalorder %s35, 1
      %p64 = por %p62, %p63
      %p65 = scmp.ne.s32.totalorder %s57, %s60
      %p66 = scmp.eq.s32.totalorder %s35, 0
      %p67 = por %p65, %p66
      %p68 = scmp.ne.s32.totalorder %s57, %s60
      %p69 = scmp.eq.s32.totalorder %s40, 1
      %p70 = por %p68, %p69
      %p71 = scmp.ne.s32.totalorder %s60, %s61
      %p72 = scmp.eq.s32.totalorder %s40, 0
      %p73 = por %p71, %p72
      %p74 = scmp.ne.s32.totalorder %s60, %s61
      %p75 = scmp.eq.s32.totalorder %s41, 1
      %p76 = por %p74, %p75
      %p78 = scmp.ne.s32.totalorder %s61, %s77
      %p79 = scmp.eq.s32.totalorder %s41, 0
      %p80 = por %p78, %p79
      %s82 = sadd.s32 %s81, 1
      %p85 = scmp.eq.s32.totalorder %s35, 1
      %p86 = scmp.ne.s32.totalorder %s81, %s83
      %p87 = scmp.eq.s32.totalorder %s35, 0
      %p88 = por %p86, %p87
      %p89 = scmp.ne.s32.totalorder %s81, %s83
      %p90 = scmp.eq.s32.totalorder %s40, 1
      %p91 = por %p89, %p90
      %p92 = scmp.ne.s32.totalorder %s83, %s84
      %p93 = scmp.eq.s32.totalorder %s40, 0
      %p94 = por %p92, %p93
      %p95 = scmp.ne.s32.totalorder %s83, %s84
      %p96 = scmp.eq.s32.totalorder %s41, 1
      %p97 = por %p95, %p96
      %p99 = scmp.ne.s32.totalorder %s84, %s98
      %p100 = scmp.eq.s32.totalorder %s41, 0
      %p101 = por %p99, %p100
      %s103 = sadd.s32 %s102, 1
      %p106 = scmp.eq.s32.totalorder %s35, 1
      %p107 = scmp.ne.s32.totalorder %s102, %s104
      %p108 = scmp.eq.s32.totalorder %s35, 0
      %p109 = por %p107, %p108
      %p110 = scmp.ne.s32.totalorder %s102, %s104
      %p111 = scmp.eq.s32.totalorder %s40, 1
      %p112 = por %p110, %p111
      %p113 = scmp.ne.s32.totalorder %s104, %s105
      %p114 = scmp.eq.s32.totalorder %s40, 0
      %p115 = por %p113, %p114
      %p116 = scmp.ne.s32.totalorder %s104, %s105
      %p117 = scmp.eq.s32.totalorder %s41, 1
      %p118 = por %p116, %p117
      %p120 = scmp.ne.s32.totalorder %s105, %s119
      %p121 = scmp.eq.s32.totalorder %s41, 0
      %p122 = por %p120, %p121
      %s124 = sadd.s32 %s123, 1
      %p127 = scmp.eq.s32.totalorder %s35, 1
      %p128 = scmp.ne.s32.totalorder %s123, %s125
      %p129 = scmp.eq.s32.totalorder %s35, 0
      %p130 = por %p128, %p129
      %p131 = scmp.ne.s32.totalorder %s123, %s125
      %p132 = scmp.eq.s32.totalorder %s40, 1
      %p133 = por %p131, %p132
      %p134 = scmp.ne.s32.totalorder %s125, %s126
      %p135 = scmp.eq.s32.totalorder %s40, 0
      %p136 = por %p134, %p135
      %p137 = scmp.ne.s32.totalorder %s125, %s126
      %p138 = scmp.eq.s32.totalorder %s41, 1
      %p139 = por %p137, %p138
      %p141 = scmp.ne.s32.totalorder %s126, %s140
      %p142 = scmp.eq.s32.totalorder %s41, 0
      %p143 = por %p141, %p142
      %s144 = ssub.s32 %s43, %s50
      %p145 = scmp.eq.s32.totalorder %s144, 0
      %s147 = sadd.s32 %s146, 1
      %s148 = scalar_select %p145, %s146, %s147
      %p151 = pneg %p145
      %p152 = scmp.eq.s32.totalorder %s35, 1
      %p153 = por %p151, %p152
      %p154 = scmp.ne.s32.totalorder %s146, %s149
      %p155 = scmp.eq.s32.totalorder %s35, 0
      %p156 = por %p154, %p155
      %p157 = scmp.ne.s32.totalorder %s146, %s149
      %p158 = scmp.eq.s32.totalorder %s40, 1
      %p159 = por %p157, %p158
      %p160 = scmp.ne.s32.totalorder %s149, %s150
      %p161 = scmp.eq.s32.totalorder %s40, 0
      %p162 = por %p160, %p161
      %p163 = scmp.ne.s32.totalorder %s149, %s150
      %p164 = scmp.eq.s32.totalorder %s41, 1
      %p165 = por %p163, %p164
      %p167 = scmp.ne.s32.totalorder %s150, %s166
      %p168 = scmp.eq.s32.totalorder %s41, 0
      %p169 = por %p167, %p168
      %s170 = ssub.s32 %s43, %s50
      %p171 = scmp.eq.s32.totalorder %s170, 0
      %s173 = sadd.s32 %s172, 1
      %s174 = scalar_select %p171, %s172, %s173
      %p177 = pneg %p171
      %p178 = scmp.eq.s32.totalorder %s35, 1
      %p179 = por %p177, %p178
      %p180 = scmp.ne.s32.totalorder %s172, %s175
      %p181 = scmp.eq.s32.totalorder %s35, 0
      %p182 = por %p180, %p181
      %p183 = scmp.ne.s32.totalorder %s172, %s175
      %p184 = scmp.eq.s32.totalorder %s40, 1
      %p185 = por %p183, %p184
      %p186 = scmp.ne.s32.totalorder %s175, %s176
      %p187 = scmp.eq.s32.totalorder %s40, 0
      %p188 = por %p186, %p187
      %p189 = scmp.ne.s32.totalorder %s175, %s176
      %p190 = scmp.eq.s32.totalorder %s41, 1
      %p191 = por %p189, %p190
      %p193 = scmp.ne.s32.totalorder %s176, %s192
      %p194 = scmp.eq.s32.totalorder %s41, 0
      %p195 = por %p193, %p194
      %s196 = ssub.s32 %s43, %s50
      %p197 = scmp.eq.s32.totalorder %s196, 0
      %s199 = sadd.s32 %s198, 1
      %s200 = scalar_select %p197, %s198, %s199
      %p203 = pneg %p197
      %p204 = scmp.eq.s32.totalorder %s35, 1
      %p205 = por %p203, %p204
      %p206 = scmp.ne.s32.totalorder %s198, %s201
      %p207 = scmp.eq.s32.totalorder %s35, 0
      %p208 = por %p206, %p207
      %p209 = scmp.ne.s32.totalorder %s198, %s201
      %p210 = scmp.eq.s32.totalorder %s40, 1
      %p211 = por %p209, %p210
      %p212 = scmp.ne.s32.totalorder %s201, %s202
      %p213 = scmp.eq.s32.totalorder %s40, 0
      %p214 = por %p212, %p213
      %p215 = scmp.ne.s32.totalorder %s201, %s202
      %p216 = scmp.eq.s32.totalorder %s41, 1
      %p217 = por %p215, %p216
      %p219 = scmp.ne.s32.totalorder %s202, %s218
      %p220 = scmp.eq.s32.totalorder %s41, 0
      %p221 = por %p219, %p220
      %s222 = ssub.s32 %s43, %s50
      %p223 = scmp.eq.s32.totalorder %s222, 0
      %s225 = sadd.s32 %s224, 1
      %s226 = scalar_select %p223, %s224, %s225
      %p229 = pneg %p223
      %p230 = scmp.eq.s32.totalorder %s35, 1
      %p231 = por %p229, %p230
      %p232 = scmp.ne.s32.totalorder %s224, %s227
      %p233 = scmp.eq.s32.totalorder %s35, 0
      %p234 = por %p232, %p233
      %p235 = scmp.ne.s32.totalorder %s224, %s227
      %p236 = scmp.eq.s32.totalorder %s40, 1
      %p237 = por %p235, %p236
      %p238 = scmp.ne.s32.totalorder %s227, %s228
      %p239 = scmp.eq.s32.totalorder %s40, 0
      %p240 = por %p238, %p239
      %p241 = scmp.ne.s32.totalorder %s227, %s228
      %p242 = scmp.eq.s32.totalorder %s41, 1
      %p243 = por %p241, %p242
      %p245 = scmp.ne.s32.totalorder %s228, %s244
      %p246 = scmp.eq.s32.totalorder %s41, 0
      %p247 = por %p245, %p246
      %s248 = ssub.s32 %s43, %s50
      %p249 = scmp.eq.s32.totalorder %s248, 0
      %s251 = sadd.s32 %s250, 1
      %s252 = scalar_select %p249, %s250, %s251
      %p255 = pneg %p249
      %p256 = scmp.eq.s32.totalorder %s35, 1
      %p257 = por %p255, %p256
      %p258 = scmp.ne.s32.totalorder %s250, %s253
      %p259 = scmp.eq.s32.totalorder %s35, 0
      %p260 = por %p258, %p259
      %p261 = scmp.ne.s32.totalorder %s250, %s253
      %p262 = scmp.eq.s32.totalorder %s40, 1
      %p263 = por %p261, %p262
      %p264 = scmp.ne.s32.totalorder %s253, %s254
      %p265 = scmp.eq.s32.totalorder %s40, 0
      %p266 = por %p264, %p265
      %p267 = scmp.ne.s32.totalorder %s253, %s254
      %p268 = scmp.eq.s32.totalorder %s41, 1
      %p269 = por %p267, %p268
      %p271 = scmp.ne.s32.totalorder %s254, %s270
      %p272 = scmp.eq.s32.totalorder %s41, 0
      %p273 = por %p271, %p272
      %s274 = ssub.s32 %s43, %s50
      %p275 = scmp.eq.s32.totalorder %s274, 0
      %s277 = sadd.s32 %s276, 1
      %s278 = scalar_select %p275, %s276, %s277
      %p281 = pneg %p275
      %p282 = scmp.eq.s32.totalorder %s35, 1
      %p283 = por %p281, %p282
      %p284 = scmp.ne.s32.totalorder %s276, %s279
      %p285 = scmp.eq.s32.totalorder %s35, 0
      %p286 = por %p284, %p285
      %p287 = scmp.ne.s32.totalorder %s276, %s279
      %p288 = scmp.eq.s32.totalorder %s40, 1
      %p289 = por %p287, %p288
      %p290 = scmp.ne.s32.totalorder %s279, %s280
      %p291 = scmp.eq.s32.totalorder %s40, 0
      %p292 = por %p290, %p291
      %p293 = scmp.ne.s32.totalorder %s279, %s280
      %p294 = scmp.eq.s32.totalorder %s41, 1
      %p295 = por %p293, %p294
      %p297 = scmp.ne.s32.totalorder %s280, %s296
      %p298 = scmp.eq.s32.totalorder %s41, 0
      %p299 = por %p297, %p298
      %s300 = ssub.s32 %s43, %s50
      %p301 = scmp.eq.s32.totalorder %s300, 0
      %s303 = sadd.s32 %s302, 1
      %s304 = scalar_select %p301, %s302, %s303
      %p307 = pneg %p301
      %p308 = scmp.eq.s32.totalorder %s35, 1
      %p309 = por %p307, %p308
      %p310 = scmp.ne.s32.totalorder %s302, %s305
      %p311 = scmp.eq.s32.totalorder %s35, 0
      %p312 = por %p310, %p311
      %p313 = scmp.ne.s32.totalorder %s302, %s305
      %p314 = scmp.eq.s32.totalorder %s40, 1
      %p315 = por %p313, %p314
      %p316 = scmp.ne.s32.totalorder %s305, %s306
      %p317 = scmp.eq.s32.totalorder %s40, 0
      %p318 = por %p316, %p317
      %p319 = scmp.ne.s32.totalorder %s305, %s306
      %p320 = scmp.eq.s32.totalorder %s41, 1
      %p321 = por %p319, %p320
      %p323 = scmp.ne.s32.totalorder %s306, %s322
      %p324 = scmp.eq.s32.totalorder %s41, 0
      %p325 = por %p323, %p324
      %s326 = ssub.s32 %s43, %s50
      %p327 = scmp.eq.s32.totalorder %s326, 0
      %s329 = sadd.s32 %s328, 1
      %s330 = scalar_select %p327, %s328, %s329
      %p333 = pneg %p327
      %p334 = scmp.eq.s32.totalorder %s35, 1
      %p335 = por %p333, %p334
      %p336 = scmp.ne.s32.totalorder %s328, %s331
      %p337 = scmp.eq.s32.totalorder %s35, 0
      %p338 = por %p336, %p337
      %p339 = scmp.ne.s32.totalorder %s328, %s331
      %p340 = scmp.eq.s32.totalorder %s40, 1
      %p341 = por %p339, %p340
      %p342 = scmp.ne.s32.totalorder %s331, %s332
      %p343 = scmp.eq.s32.totalorder %s40, 0
      %p344 = por %p342, %p343
      %p345 = scmp.ne.s32.totalorder %s331, %s332
      %p346 = scmp.eq.s32.totalorder %s41, 1
      %p347 = por %p345, %p346
      %p349 = scmp.ne.s32.totalorder %s332, %s348
      %p350 = scmp.eq.s32.totalorder %s41, 0
      %p351 = por %p349, %p350
      %s352 = ssub.s32 %s43, %s50
      %p353 = scmp.eq.s32.totalorder %s352, 0
      %s355 = sadd.s32 %s354, 1
      %s356 = scalar_select %p353, %s354, %s355
      %p359 = pneg %p353
      %p360 = scmp.eq.s32.totalorder %s35, 1
      %p361 = por %p359, %p360
      %p362 = scmp.ne.s32.totalorder %s354, %s357
      %p363 = scmp.eq.s32.totalorder %s35, 0
      %p364 = por %p362, %p363
      %p365 = scmp.ne.s32.totalorder %s354, %s357
      %p366 = scmp.eq.s32.totalorder %s40, 1
      %p367 = por %p365, %p366
      %p368 = scmp.ne.s32.totalorder %s357, %s358
      %p369 = scmp.eq.s32.totalorder %s40, 0
      %p370 = por %p368, %p369
      %p371 = scmp.ne.s32.totalorder %s357, %s358
      %p372 = scmp.eq.s32.totalorder %s41, 1
      %p373 = por %p371, %p372
      %p375 = scmp.ne.s32.totalorder %s358, %s374
      %p376 = scmp.eq.s32.totalorder %s41, 0
      %p377 = por %p375, %p376
      %s378 = ssub.s32 %s43, %s50
      %p379 = scmp.eq.s32.totalorder %s378, 0
      %s381 = sadd.s32 %s380, 1
      %s382 = scalar_select %p379, %s380, %s381
      %p385 = pneg %p379
      %p386 = scmp.eq.s32.totalorder %s35, 1
      %p387 = por %p385, %p386
      %p388 = scmp.ne.s32.totalorder %s380, %s383
      %p389 = scmp.eq.s32.totalorder %s35, 0
      %p390 = por %p388, %p389
      %p391 = scmp.ne.s32.totalorder %s380, %s383
      %p392 = scmp.eq.s32.totalorder %s40, 1
      %p393 = por %p391, %p392
      %p394 = scmp.ne.s32.totalorder %s383, %s384
      %p395 = scmp.eq.s32.totalorder %s40, 0
      %p396 = por %p394, %p395
      %p397 = scmp.ne.s32.totalorder %s383, %s384
      %p398 = scmp.eq.s32.totalorder %s41, 1
      %p399 = por %p397, %p398
      %p401 = scmp.ne.s32.totalorder %s384, %s400
      %p402 = scmp.eq.s32.totalorder %s41, 0
      %p403 = por %p401, %p402
      %s404 = ssub.s32 %s43, %s50
      %p405 = scmp.eq.s32.totalorder %s404, 0
      %s407 = sadd.s32 %s406, 1
      %s408 = scalar_select %p405, %s406, %s407
      %p411 = pneg %p405
      %p412 = scmp.eq.s32.totalorder %s35, 1
      %p413 = por %p411, %p412
      %p414 = scmp.ne.s32.totalorder %s406, %s409
      %p415 = scmp.eq.s32.totalorder %s35, 0
      %p416 = por %p414, %p415
      %p417 = scmp.ne.s32.totalorder %s406, %s409
      %p418 = scmp.eq.s32.totalorder %s40, 1
      %p419 = por %p417, %p418
      %p420 = scmp.ne.s32.totalorder %s409, %s410
      %p421 = scmp.eq.s32.totalorder %s40, 0
      %p422 = por %p420, %p421
      %p423 = scmp.ne.s32.totalorder %s409, %s410
      %p424 = scmp.eq.s32.totalorder %s41, 1
      %p425 = por %p423, %p424
      %p427 = scmp.ne.s32.totalorder %s410, %s426
      %p428 = scmp.eq.s32.totalorder %s41, 0
      %p429 = por %p427, %p428
      %s430 = ssub.s32 %s42, %s54
      %p431 = scmp.eq.s32.totalorder %s430, 0
      %s433 = sadd.s32 %s432, 1
      %s434 = scalar_select %p431, %s432, %s433
      %p437 = pneg %p431
      %p438 = scmp.eq.s32.totalorder %s35, 1
      %p439 = por %p437, %p438
      %p440 = scmp.ne.s32.totalorder %s432, %s435
      %p441 = scmp.eq.s32.totalorder %s35, 0
      %p442 = por %p440, %p441
      %p443 = scmp.ne.s32.totalorder %s432, %s435
      %p444 = scmp.eq.s32.totalorder %s40, 1
      %p445 = por %p443, %p444
      %p446 = scmp.ne.s32.totalorder %s435, %s436
      %p447 = scmp.eq.s32.totalorder %s40, 0
      %p448 = por %p446, %p447
      %p449 = scmp.ne.s32.totalorder %s435, %s436
      %p450 = scmp.eq.s32.totalorder %s41, 1
      %p451 = por %p449, %p450
      %p453 = scmp.ne.s32.totalorder %s436, %s452
      %p454 = scmp.eq.s32.totalorder %s41, 0
      %p455 = por %p453, %p454
      %p456 = scmp.le.s32.totalorder 1, %s35
      %p457 = scmp.lt.s32.totalorder %s35, 3
      %p458 = pnand %p456, %p457
      %p459 = pneg %p458
      // Predicated region
      $region9: #{transformer_mapper.1} parent=5 // pred_check
        _
      $region10: #{transformer_mapper.1} parent=5 // pred_check_branch
        %461 = sbr.rel (%p458) target = $region12
      $region11: #{transformer_mapper.1} parent=5 // pred_region
        %s462 = ssub.s32 %s35, 1
        // Predicated region
        $region13: #{transformer_mapper.1} parent=11 // pred_check
          %p463 = pneg %p73
        $region14: #{transformer_mapper.1} parent=11 // pred_check_branch
          %465 = sbr.rel (%p463) target = $region16
        $region15: #{transformer_mapper.1} parent=11 // pred_region
          %s466 = smul.u32 2, %s44
          %p467 = scmp.lt.s32.totalorder %s466, 1
          %s468 = scalar_select %p467, %s466, 1
          %s469 = scalar_lea.vmem %s0, %s468
          %s470 = smul.u32 2, %s44
        $region16: #{transformer_mapper.1} parent=11 // pred_fallthru
          _
        // Predicated region
        $region17: #{transformer_mapper.1} parent=11 // pred_check
          %p471 = pneg %p94
        $region18: #{transformer_mapper.1} parent=11 // pred_check_branch
          %473 = sbr.rel (%p471) target = $region20
        $region19: #{transformer_mapper.1} parent=11 // pred_region
          %s475 = ssub.s32 4096, 4096
          %476 = vsyncadd [#allocation4], %s475
          %s477 = sshll.u32 [#allocation3], 4
          %s478 = int_to_ptr.vmem [resolvable:$true] %s477
          %483 = dma.hbm_to_vmem [thread:$0]  %s1, 4096, %s478, [#allocation4], 512, 512, 32
        $region20: #{transformer_mapper.1} parent=11 // pred_fallthru
          _
        // Predicated region
        $region21: #{transformer_mapper.1} parent=11 // pred_check
          %p484 = pneg %p115
        $region22: #{transformer_mapper.1} parent=11 // pred_check_branch
          %486 = sbr.rel (%p484) target = $region24
        $region23: #{transformer_mapper.1} parent=11 // pred_region
          _
        $region24: #{transformer_mapper.1} parent=11 // pred_fallthru
          _
        // Predicated region
        $region25: #{transformer_mapper.1} parent=11 // pred_check
          %p487 = pneg %p136
        $region26: #{transformer_mapper.1} parent=11 // pred_check_branch
          %489 = sbr.rel (%p487) target = $region28
        $region27: #{transformer_mapper.1} parent=11 // pred_region
          _
        $region28: #{transformer_mapper.1} parent=11 // pred_fallthru
          _
      $region12: #{transformer_mapper.1} parent=5 // pred_fallthru
        _
      %p490 = scmp.lt.s32.totalorder %s35, 2
      // Predicated region
      $region29: #{transformer_mapper.1} parent=5 // pred_check
        %p491 = pneg %p490
      $region30: #{transformer_mapper.1} parent=5 // pred_check_branch
        %493 = sbr.rel (%p491) target = $region32
      $region31: #{transformer_mapper.1} parent=5 // pred_region
        // Predicated region
        $region33: #{transformer_mapper.1} parent=31 // pred_check
          %p494 = pneg %p156
        $region34: #{transformer_mapper.1} parent=31 // pred_check_branch
          %496 = sbr.rel (%p494) target = $region36
        $region35: #{transformer_mapper.1} parent=31 // pred_region
          %p497 = scmp.lt.s32.totalorder %s43, 1
          %s498 = scalar_select %p497, %s43, 1
          %s499 = scalar_lea.vmem %s4, %s498
        $region36: #{transformer_mapper.1} parent=31 // pred_fallthru
          _
        // Predicated region
        $region37: #{transformer_mapper.1} parent=31 // pred_check
          %p500 = pneg %p182
        $region38: #{transformer_mapper.1} parent=31 // pred_check_branch
          %502 = sbr.rel (%p500) target = $region40
        $region39: #{transformer_mapper.1} parent=31 // pred_region
          %p503 = scmp.lt.s32.totalorder %s43, 1
          %s504 = scalar_select %p503, %s43, 1
          %s505 = scalar_lea.vmem %s5, %s504
        $region40: #{transformer_mapper.1} parent=31 // pred_fallthru
          _
        // Predicated region
        $region41: #{transformer_mapper.1} parent=31 // pred_check
          %p506 = pneg %p208
        $region42: #{transformer_mapper.1} parent=31 // pred_check_branch
          %508 = sbr.rel (%p506) target = $region44
        $region43: #{transformer_mapper.1} parent=31 // pred_region
          %s509 = sand.u32 %s35, 1
          %s510 = scalar_lea.sflag [#allocation7], %s509
          %s511 = sand.u32 %s198, 1
          %s512 = smul.addr %s511, 192
          %s513 = scalar_lea.vmem [#allocation6], %s512
          %s515 = ssub.s32 3072, 3072
          %516 = vsyncadd %s510, %s515
          %s517 = smul.addr %s43, 48
          %s518 = smul.addr %s517, 64
          %s519 = scalar_lea.hbm %s6, %s518
          %s520 = sshll.u32 %s513, 4
          %s521 = int_to_ptr.vmem [resolvable:$true] %s520
          %526 = dma.hbm_to_vmem [thread:$0]  %s519, 3072, %s521, %s510, 192, 192, 12
        $region44: #{transformer_mapper.1} parent=31 // pred_fallthru
          _
        // Predicated region
        $region45: #{transformer_mapper.1} parent=31 // pred_check
          %p527 = pneg %p234
        $region46: #{transformer_mapper.1} parent=31 // pred_check_branch
          %529 = sbr.rel (%p527) target = $region48
        $region47: #{transformer_mapper.1} parent=31 // pred_region
          %s530 = sand.u32 %s35, 1
          %s531 = scalar_lea.sflag [#allocation7], %s530
          %s532 = sand.u32 %s224, 1
          %s533 = smul.addr %s532, 64
          %s534 = scalar_lea.vmem [#allocation8], %s533
          %s536 = ssub.s32 1024, 1024
          %537 = vsyncadd %s531, %s536
          %s538 = smul.addr %s43, 16
          %s539 = smul.addr %s538, 64
          %s540 = scalar_lea.hbm %s7, %s539
          %s541 = sshll.u32 %s534, 4
          %s542 = int_to_ptr.vmem [resolvable:$true] %s541
          %547 = dma.hbm_to_vmem [thread:$0]  %s540, 1024, %s542, %s531, 64, 64, 4
        $region48: #{transformer_mapper.1} parent=31 // pred_fallthru
          _
        // Predicated region
        $region49: #{transformer_mapper.1} parent=31 // pred_check
          %p548 = pneg %p260
        $region50: #{transformer_mapper.1} parent=31 // pred_check_branch
          %550 = sbr.rel (%p548) target = $region52
        $region51: #{transformer_mapper.1} parent=31 // pred_region
          %s551 = sand.u32 %s35, 1
          %s552 = scalar_lea.sflag [#allocation10], %s551
          %s553 = sand.u32 %s250, 1
          %s554 = scalar_lea.vmem [#allocation9], %s553
          %s556 = ssub.s32 16, 16
          %557 = vsyncadd %s552, %s556
          %s558 = smul.addr %s43, 16
          %s559 = scalar_lea.hbm %s8, %s558
          %s561 = sshll.u32 %s554, 4
          %s562 = int_to_ptr.vmem [resolvable:$true] %s561
          %564 = dma.hbm_to_vmem [thread:$0]  %s559, 16, %s562, %s552
        $region52: #{transformer_mapper.1} parent=31 // pred_fallthru
          _
        // Predicated region
        $region53: #{transformer_mapper.1} parent=31 // pred_check
          %p565 = pneg %p286
        $region54: #{transformer_mapper.1} parent=31 // pred_check_branch
          %567 = sbr.rel (%p565) target = $region56
        $region55: #{transformer_mapper.1} parent=31 // pred_region
          %p568 = scmp.lt.s32.totalorder %s43, 1
          %s569 = scalar_select %p568, %s43, 1
          %s570 = scalar_lea.vmem %s9, %s569
        $region56: #{transformer_mapper.1} parent=31 // pred_fallthru
          _
        // Predicated region
        $region57: #{transformer_mapper.1} parent=31 // pred_check
          %p571 = pneg %p312
        $region58: #{transformer_mapper.1} parent=31 // pred_check_branch
          %573 = sbr.rel (%p571) target = $region60
        $region59: #{transformer_mapper.1} parent=31 // pred_region
          %p574 = scmp.lt.s32.totalorder %s43, 1
          %s575 = scalar_select %p574, %s43, 1
          %s576 = scalar_lea.vmem %s10, %s575
        $region60: #{transformer_mapper.1} parent=31 // pred_fallthru
          _
        // Predicated region
        $region61: #{transformer_mapper.1} parent=31 // pred_check
          %p577 = pneg %p338
        $region62: #{transformer_mapper.1} parent=31 // pred_check_branch
          %579 = sbr.rel (%p577) target = $region64
        $region63: #{transformer_mapper.1} parent=31 // pred_region
          %s580 = sand.u32 %s35, 1
          %s581 = scalar_lea.sflag [#allocation10], %s580
          %s582 = sand.u32 %s328, 1
          %s583 = smul.addr %s582, 128
          %s584 = scalar_lea.vmem [#allocation11], %s583
          %s586 = ssub.s32 2048, 2048
          %587 = vsyncadd %s581, %s586
          %s588 = smul.addr %s43, 32
          %s589 = smul.addr %s588, 64
          %s590 = scalar_lea.hbm %s11, %s589
          %s591 = sshll.u32 %s584, 4
          %s592 = int_to_ptr.vmem [resolvable:$true] %s591
          %597 = dma.hbm_to_vmem [thread:$0]  %s590, 2048, %s592, %s581, 128, 128, 8
        $region64: #{transformer_mapper.1} parent=31 // pred_fallthru
          _
        // Predicated region
        $region65: #{transformer_mapper.1} parent=31 // pred_check
          %p598 = pneg %p364
        $region66: #{transformer_mapper.1} parent=31 // pred_check_branch
          %600 = sbr.rel (%p598) target = $region68
        $region67: #{transformer_mapper.1} parent=31 // pred_region
          %s601 = sand.u32 %s35, 1
          %s602 = scalar_lea.sflag [#allocation13], %s601
          %s603 = sand.u32 %s354, 1
          %s604 = smul.addr %s603, 2
          %s605 = scalar_lea.vmem [#allocation12], %s604
          %s607 = ssub.s32 32, 32
          %608 = vsyncadd %s602, %s607
          %s609 = smul.addr %s43, 2
          %s610 = smul.addr %s609, 16
          %s611 = scalar_lea.hbm %s12, %s610
          %s613 = sshll.u32 %s605, 4
          %s614 = int_to_ptr.vmem [resolvable:$true] %s613
          %616 = dma.hbm_to_vmem [thread:$0]  %s611, 32, %s614, %s602
        $region68: #{transformer_mapper.1} parent=31 // pred_fallthru
          _
        // Predicated region
        $region69: #{transformer_mapper.1} parent=31 // pred_check
          %p617 = pneg %p390
        $region70: #{transformer_mapper.1} parent=31 // pred_check_branch
          %619 = sbr.rel (%p617) target = $region72
        $region71: #{transformer_mapper.1} parent=31 // pred_region
          %s620 = sand.u32 %s35, 1
          %s621 = scalar_lea.sflag [#allocation13], %s620
          %s622 = sand.u32 %s380, 1
          %s623 = smul.addr %s622, 128
          %s624 = scalar_lea.vmem [#allocation14], %s623
          %s626 = ssub.s32 2048, 2048
          %627 = vsyncadd %s621, %s626
          %s628 = smul.addr %s43, 32
          %s629 = smul.addr %s628, 64
          %s630 = scalar_lea.hbm %s13, %s629
          %s631 = sshll.u32 %s624, 4
          %s632 = int_to_ptr.vmem [resolvable:$true] %s631
          %637 = dma.hbm_to_vmem [thread:$0]  %s630, 2048, %s632, %s621, 64, 64, 4
        $region72: #{transformer_mapper.1} parent=31 // pred_fallthru
          _
        // Predicated region
        $region73: #{transformer_mapper.1} parent=31 // pred_check
          %p638 = pneg %p416
        $region74: #{transformer_mapper.1} parent=31 // pred_check_branch
          %640 = sbr.rel (%p638) target = $region76
        $region75: #{transformer_mapper.1} parent=31 // pred_region
          %s641 = sand.u32 %s406, 1
          %s642 = scalar_lea.sflag [#allocation16], %s641
          %s643 = sand.u32 %s406, 1
          %s644 = scalar_lea.vmem [#allocation15], %s643
          %s646 = ssub.s32 16, 16
          %647 = vsyncadd %s642, %s646
          %s648 = smul.addr %s43, 16
          %s649 = scalar_lea.hbm %s14, %s648
          %s651 = sshll.u32 %s644, 4
          %s652 = int_to_ptr.vmem [resolvable:$true] %s651
          %654 = dma.hbm_to_vmem [thread:$0]  %s649, 16, %s652, %s642
        $region76: #{transformer_mapper.1} parent=31 // pred_fallthru
          _
      $region32: #{transformer_mapper.1} parent=5 // pred_fallthru
        _
      %p655 = scmp.le.s32.totalorder 1, %s35
      %p656 = scmp.lt.s32.totalorder %s35, 3
      %p657 = pnand %p655, %p656
      %p658 = pneg %p657
      // Predicated region
      $region77: #{transformer_mapper.1} parent=5 // pred_check
        _
      $region78: #{transformer_mapper.1} parent=5 // pred_check_branch
        %660 = sbr.rel (%p657) target = $region80
      $region79: #{transformer_mapper.1} parent=5 // pred_region
        %s661 = ssub.s32 %s35, 1
        // Predicated region
        $region81: #{transformer_mapper.1} parent=79 // pred_check
          %p662 = pneg %p94
        $region82: #{transformer_mapper.1} parent=79 // pred_check_branch
          %664 = sbr.rel (%p662) target = $region84
        $region83: #{transformer_mapper.1} parent=79 // pred_region
          %665 = dma.done [#allocation4], 4096
        $region84: #{transformer_mapper.1} parent=79 // pred_fallthru
          _
        %s666 = sand.u32 %s40, 1
        %s667 = scalar_lea.sflag [#allocation7], %s666
        %s668 = sand.u32 %s201, 1
        %s669 = smul.addr %s668, 192
        %s670 = scalar_lea.vmem [#allocation6], %s669
        // Predicated region
        $region85: #{transformer_mapper.1} parent=79 // pred_check
          %p671 = pneg %p214
        $region86: #{transformer_mapper.1} parent=79 // pred_check_branch
          %673 = sbr.rel (%p671) target = $region88
        $region87: #{transformer_mapper.1} parent=79 // pred_region
          %674 = dma.done %s667, 3072
        $region88: #{transformer_mapper.1} parent=79 // pred_fallthru
          _
        %s675 = sand.u32 %s40, 1
        %s676 = scalar_lea.sflag [#allocation7], %s675
        %s677 = sand.u32 %s227, 1
        %s678 = smul.addr %s677, 64
        %s679 = scalar_lea.vmem [#allocation8], %s678
        // Predicated region
        $region89: #{transformer_mapper.1} parent=79 // pred_check
          %p680 = pneg %p240
        $region90: #{transformer_mapper.1} parent=79 // pred_check_branch
          %682 = sbr.rel (%p680) target = $region92
        $region91: #{transformer_mapper.1} parent=79 // pred_region
          %683 = dma.done %s676, 1024
        $region92: #{transformer_mapper.1} parent=79 // pred_fallthru
          _
        %s684 = sand.u32 %s40, 1
        %s685 = scalar_lea.sflag [#allocation10], %s684
        %s686 = sand.u32 %s253, 1
        %s687 = scalar_lea.vmem [#allocation9], %s686
        // Predicated region
        $region93: #{transformer_mapper.1} parent=79 // pred_check
          %p688 = pneg %p266
        $region94: #{transformer_mapper.1} parent=79 // pred_check_branch
          %690 = sbr.rel (%p688) target = $region96
        $region95: #{transformer_mapper.1} parent=79 // pred_region
          %691 = dma.done %s685, 16
        $region96: #{transformer_mapper.1} parent=79 // pred_fallthru
          _
        %s692 = sand.u32 %s40, 1
        %s693 = scalar_lea.sflag [#allocation10], %s692
        %s694 = sand.u32 %s331, 1
        %s695 = smul.addr %s694, 128
        %s696 = scalar_lea.vmem [#allocation11], %s695
        // Predicated region
        $region97: #{transformer_mapper.1} parent=79 // pred_check
          %p697 = pneg %p344
        $region98: #{transformer_mapper.1} parent=79 // pred_check_branch
          %699 = sbr.rel (%p697) target = $region100
        $region99: #{transformer_mapper.1} parent=79 // pred_region
          %700 = dma.done %s693, 2048
        $region100: #{transformer_mapper.1} parent=79 // pred_fallthru
          _
        %s701 = sand.u32 %s40, 1
        %s702 = scalar_lea.sflag [#allocation13], %s701
        %s703 = sand.u32 %s357, 1
        %s704 = smul.addr %s703, 2
        %s705 = scalar_lea.vmem [#allocation12], %s704
        // Predicated region
        $region101: #{transformer_mapper.1} parent=79 // pred_check
          %p706 = pneg %p370
        $region102: #{transformer_mapper.1} parent=79 // pred_check_branch
          %708 = sbr.rel (%p706) target = $region104
        $region103: #{transformer_mapper.1} parent=79 // pred_region
          %709 = dma.done %s702, 32
        $region104: #{transformer_mapper.1} parent=79 // pred_fallthru
          _
        %s710 = sand.u32 %s40, 1
        %s711 = scalar_lea.sflag [#allocation13], %s710
        %s712 = sand.u32 %s383, 1
        %s713 = smul.addr %s712, 128
        %s714 = scalar_lea.vmem [#allocation14], %s713
        // Predicated region
        $region105: #{transformer_mapper.1} parent=79 // pred_check
          %p715 = pneg %p396
        $region106: #{transformer_mapper.1} parent=79 // pred_check_branch
          %717 = sbr.rel (%p715) target = $region108
        $region107: #{transformer_mapper.1} parent=79 // pred_region
          %718 = dma.done %s711, 2048
        $region108: #{transformer_mapper.1} parent=79 // pred_fallthru
          _
        %s719 = sand.u32 %s409, 1
        %s720 = scalar_lea.sflag [#allocation16], %s719
        %s721 = sand.u32 %s409, 1
        %s722 = scalar_lea.vmem [#allocation15], %s721
        // Predicated region
        $region109: #{transformer_mapper.1} parent=79 // pred_check
          %p723 = pneg %p422
        $region110: #{transformer_mapper.1} parent=79 // pred_check_branch
          %725 = sbr.rel (%p723) target = $region112
        $region111: #{transformer_mapper.1} parent=79 // pred_region
          %726 = dma.done %s720, 16
        $region112: #{transformer_mapper.1} parent=79 // pred_fallthru
          _
        %s727 = smul.u32 2, %s44
        %p728 = scmp.lt.s32.totalorder %s727, 1
        %s729 = scalar_select %p728, %s727, 1
        %s730 = scalar_lea.vmem %s0, %s729
        %p731 = pneg %p73
        %p732 = pneg %p70
        %p733 = pneg %p94
        %p734 = pneg %p91
        %p735 = pneg %p115
        %p736 = pneg %p112
        %p737 = pneg %p136
        %p738 = pneg %p133
        %p739 = scmp.lt.s32.totalorder %s45, 1
        %s740 = scalar_select %p739, %s45, 1
        %s741 = scalar_lea.vmem %s4, %s740
        %p742 = pneg %p162
        %p743 = pneg %p159
        %p744 = scmp.lt.s32.totalorder %s45, 1
        %s745 = scalar_select %p744, %s45, 1
        %s746 = scalar_lea.vmem %s5, %s745
        %p747 = pneg %p188
        %p748 = pneg %p185
        %s749 = sand.u32 %s40, 1
        %s750 = scalar_lea.sflag [#allocation7], %s749
        %s751 = sand.u32 %s201, 1
        %s752 = smul.addr %s751, 192
        %s753 = scalar_lea.vmem [#allocation6], %s752
        %p754 = pneg %p214
        %p755 = pneg %p211
        %s756 = sand.u32 %s40, 1
        %s757 = scalar_lea.sflag [#allocation7], %s756
        %s758 = sand.u32 %s227, 1
        %s759 = smul.addr %s758, 64
        %s760 = scalar_lea.vmem [#allocation8], %s759
        %p761 = pneg %p240
        %p762 = pneg %p237
        %s763 = sand.u32 %s40, 1
        %s764 = scalar_lea.sflag [#allocation10], %s763
        %s765 = sand.u32 %s253, 1
        %s766 = scalar_lea.vmem [#allocation9], %s765
        %p767 = pneg %p266
        %p768 = pneg %p263
        %p769 = scmp.lt.s32.totalorder %s45, 1
        %s770 = scalar_select %p769, %s45, 1
        %s771 = scalar_lea.vmem %s9, %s770
        %p772 = pneg %p292
        %p773 = pneg %p289
        %p774 = scmp.lt.s32.totalorder %s45, 1
        %s775 = scalar_select %p774, %s45, 1
        %s776 = scalar_lea.vmem %s10, %s775
        %p777 = pneg %p318
        %p778 = pneg %p315
        %s779 = sand.u32 %s40, 1
        %s780 = scalar_lea.sflag [#allocation10], %s779
        %s781 = sand.u32 %s331, 1
        %s782 = smul.addr %s781, 128
        %s783 = scalar_lea.vmem [#allocation11], %s782
        %p784 = pneg %p344
        %p785 = pneg %p341
        %s786 = sand.u32 %s40, 1
        %s787 = scalar_lea.sflag [#allocation13], %s786
        %s788 = sand.u32 %s357, 1
        %s789 = smul.addr %s788, 2
        %s790 = scalar_lea.vmem [#allocation12], %s789
        %p791 = pneg %p370
        %p792 = pneg %p367
        %s793 = sand.u32 %s40, 1
        %s794 = scalar_lea.sflag [#allocation13], %s793
        %s795 = sand.u32 %s383, 1
        %s796 = smul.addr %s795, 128
        %s797 = scalar_lea.vmem [#allocation14], %s796
        %p798 = pneg %p396
        %p799 = pneg %p393
        %s800 = sand.u32 %s409, 1
        %s801 = scalar_lea.sflag [#allocation16], %s800
        %s802 = sand.u32 %s409, 1
        %s803 = scalar_lea.vmem [#allocation15], %s802
        %p804 = pneg %p422
        %p805 = pneg %p419
        %p806 = pneg %p448
        %p807 = pneg %p445
        %s808 = smul.u32 2, %s44
        %p809 = scmp.lt.s32.totalorder %s808, 1
        %s810 = scalar_select %p809, %s808, 1
        %s811 = scalar_lea.vmem %s0, %s810
        %s812 = smul.u32 2, %s44
        %p813 = scmp.lt.s32.totalorder %s45, 1
        %s814 = scalar_select %p813, %s45, 1
        %s815 = scalar_lea.vmem %s4, %s814
        %p816 = scmp.lt.s32.totalorder %s45, 1
        %s817 = scalar_select %p816, %s45, 1
        %s818 = scalar_lea.vmem %s5, %s817
        %p819 = scmp.lt.s32.totalorder %s45, 1
        %s820 = scalar_select %p819, %s45, 1
        %s821 = scalar_lea.vmem %s9, %s820
        %p822 = scmp.lt.s32.totalorder %s45, 1
        %s823 = scalar_select %p822, %s45, 1
        %s824 = scalar_lea.vmem %s10, %s823
        %s825 = smul.u32 2, %s44
        %p827 = scmp.eq.s32.totalorder %s45, 0
        // Predicated region
        $region113: #{transformer_mapper.1} parent=79 // pred_check
          %p828 = pneg %p827
        $region114: #{transformer_mapper.1} parent=79 // pred_check_branch
          %830 = sbr.rel (%p828) target = $region116
        $region115: #{transformer_mapper.1} parent=79 // pred_region
          %v831 = vld [vmem:[%s811] sm:$0x1]
          %v832 = vld [vmem:[%s811 + $0x1] sm:$0x1]
          %v833 = vpack.c.bf16 %v831, %v831
          %v834 = vpack.c.bf16 %v832, %v832
          %v835 = vld [vmem:[#allocation3] sm:$0xff]
          %v836 = vld [vmem:[#allocation3 + $0x8] sm:$0xff]
          %v837 = vld [vmem:[#allocation3 + $0x10] sm:$0xff]
          %v838 = vld [vmem:[#allocation3 + $0x18] sm:$0xff]
          %v839 = vld [vmem:[#allocation3 + $0x20] sm:$0xff]
          %v840 = vld [vmem:[#allocation3 + $0x28] sm:$0xff]
          %v841 = vld [vmem:[#allocation3 + $0x30] sm:$0xff]
          %v842 = vld [vmem:[#allocation3 + $0x38] sm:$0xff]
          %v843 = vld [vmem:[#allocation3 + $0x40] sm:$0xff]
          %v844 = vld [vmem:[#allocation3 + $0x48] sm:$0xff]
          %v845 = vld [vmem:[#allocation3 + $0x50] sm:$0xff]
          %v846 = vld [vmem:[#allocation3 + $0x58] sm:$0xff]
          %v847 = vld [vmem:[#allocation3 + $0x60] sm:$0xff]
          %v848 = vld [vmem:[#allocation3 + $0x68] sm:$0xff]
          %v849 = vld [vmem:[#allocation3 + $0x70] sm:$0xff]
          %v850 = vld [vmem:[#allocation3 + $0x78] sm:$0xff]
          %v851 = vld [vmem:[#allocation3 + $0x80] sm:$0xff]
          %v852 = vld [vmem:[#allocation3 + $0x88] sm:$0xff]
          %v853 = vld [vmem:[#allocation3 + $0x90] sm:$0xff]
          %v854 = vld [vmem:[#allocation3 + $0x98] sm:$0xff]
          %v855 = vld [vmem:[#allocation3 + $0xa0] sm:$0xff]
          %v856 = vld [vmem:[#allocation3 + $0xa8] sm:$0xff]
          %v857 = vld [vmem:[#allocation3 + $0xb0] sm:$0xff]
          %v858 = vld [vmem:[#allocation3 + $0xb8] sm:$0xff]
          %v859 = vld [vmem:[#allocation3 + $0xc0] sm:$0xff]
          %v860 = vld [vmem:[#allocation3 + $0xc8] sm:$0xff]
          %v861 = vld [vmem:[#allocation3 + $0xd0] sm:$0xff]
          %v862 = vld [vmem:[#allocation3 + $0xd8] sm:$0xff]
          %v863 = vld [vmem:[#allocation3 + $0xe0] sm:$0xff]
          %v864 = vld [vmem:[#allocation3 + $0xe8] sm:$0xff]
          %v865 = vld [vmem:[#allocation3 + $0xf0] sm:$0xff]
          %v866 = vld [vmem:[#allocation3 + $0xf8] sm:$0xff]
          %v867 = vld [vmem:[%s2] sm:$0xff]
          %v869 = vlaneseq
          %v870 = vshrl.u32 %v869, 7
          %v871 = vsub.s32 0, %v870
          %v872 = vrot.slane %v867, %v871
          %v873 = vlaneseq
          %v874 = vshrl.u32 %v873, 7
          %v875 = vsub.s32 1, %v874
          %v876 = vrot.slane %v867, %v875
          %v877 = vlaneseq
          %v878 = vshrl.u32 %v877, 7
          %v879 = vsub.s32 2, %v878
          %v880 = vrot.slane %v867, %v879
          %v881 = vlaneseq
          %v882 = vshrl.u32 %v881, 7
          %v883 = vsub.s32 3, %v882
          %v884 = vrot.slane %v867, %v883
          %v885 = vlaneseq
          %v886 = vshrl.u32 %v885, 7
          %v887 = vsub.s32 4, %v886
          %v888 = vrot.slane %v867, %v887
          %v889 = vlaneseq
          %v890 = vshrl.u32 %v889, 7
          %v891 = vsub.s32 5, %v890
          %v892 = vrot.slane %v867, %v891
          %v893 = vlaneseq
          %v894 = vshrl.u32 %v893, 7
          %v895 = vsub.s32 6, %v894
          %v896 = vrot.slane %v867, %v895
          %v897 = vlaneseq
          %v898 = vshrl.u32 %v897, 7
          %v899 = vsub.s32 7, %v898
          %v900 = vrot.slane %v867, %v899
          %v911 = vunpack.c.l.b16 %v833
          %v912 = vunpack.c.l.b16 %v834
          %v913 = vrot.slane %v912, 7
          %vm914 = vcmask 1041409
          %v915 = vsel %vm914, %v913, %v911
          %v916 = vpack.c.b16 %v915, %v915
          %v949 = vunpack.c.l.b16 %v835
          %v950 = vunpack.c.h.b16 %v835
          %v951 = vunpack.c.l.b16 %v836
          %v952 = vunpack.c.h.b16 %v836
          %v953 = vunpack.c.l.b16 %v837
          %v954 = vunpack.c.h.b16 %v837
          %v955 = vunpack.c.l.b16 %v838
          %v956 = vunpack.c.h.b16 %v838
          %v957 = vunpack.c.l.b16 %v839
          %v958 = vunpack.c.h.b16 %v839
          %v959 = vunpack.c.l.b16 %v840
          %v960 = vunpack.c.h.b16 %v840
          %v961 = vunpack.c.l.b16 %v841
          %v962 = vunpack.c.h.b16 %v841
          %v963 = vunpack.c.l.b16 %v842
          %v964 = vunpack.c.h.b16 %v842
          %v965 = vunpack.c.l.b16 %v843
          %v966 = vunpack.c.h.b16 %v843
          %v967 = vunpack.c.l.b16 %v844
          %v968 = vunpack.c.h.b16 %v844
          %v969 = vunpack.c.l.b16 %v845
          %v970 = vunpack.c.h.b16 %v845
          %v971 = vunpack.c.l.b16 %v846
          %v972 = vunpack.c.h.b16 %v846
          %v973 = vunpack.c.l.b16 %v847
          %v974 = vunpack.c.h.b16 %v847
          %v975 = vunpack.c.l.b16 %v848
          %v976 = vunpack.c.h.b16 %v848
          %v977 = vunpack.c.l.b16 %v849
          %v978 = vunpack.c.h.b16 %v849
          %v979 = vunpack.c.l.b16 %v850
          %v980 = vunpack.c.h.b16 %v850
          %v981 = vunpack.c.l.b16 %v851
          %v982 = vunpack.c.h.b16 %v851
          %v983 = vunpack.c.l.b16 %v852
          %v984 = vunpack.c.h.b16 %v852
          %v985 = vunpack.c.l.b16 %v853
          %v986 = vunpack.c.h.b16 %v853
          %v987 = vunpack.c.l.b16 %v854
          %v988 = vunpack.c.h.b16 %v854
          %v989 = vunpack.c.l.b16 %v855
          %v990 = vunpack.c.h.b16 %v855
          %v991 = vunpack.c.l.b16 %v856
          %v992 = vunpack.c.h.b16 %v856
          %v993 = vunpack.c.l.b16 %v857
          %v994 = vunpack.c.h.b16 %v857
          %v995 = vunpack.c.l.b16 %v858
          %v996 = vunpack.c.h.b16 %v858
          %v997 = vunpack.c.l.b16 %v859
          %v998 = vunpack.c.h.b16 %v859
          %v999 = vunpack.c.l.b16 %v860
          %v1000 = vunpack.c.h.b16 %v860
          %v1001 = vunpack.c.l.b16 %v861
          %v1002 = vunpack.c.h.b16 %v861
          %v1003 = vunpack.c.l.b16 %v862
          %v1004 = vunpack.c.h.b16 %v862
          %v1005 = vunpack.c.l.b16 %v863
          %v1006 = vunpack.c.h.b16 %v863
          %v1007 = vunpack.c.l.b16 %v864
          %v1008 = vunpack.c.h.b16 %v864
          %v1009 = vunpack.c.l.b16 %v865
          %v1010 = vunpack.c.h.b16 %v865
          %v1011 = vunpack.c.l.b16 %v866
          %v1012 = vunpack.c.h.b16 %v866
          %v1013 = vpack.c.b16 %v957, %v949
          %v1014 = vpack.c.b16 %v958, %v950
          %v1015 = vpack.c.b16 %v959, %v951
          %v1016 = vpack.c.b16 %v960, %v952
          %v1017 = vpack.c.b16 %v961, %v953
          %v1018 = vpack.c.b16 %v962, %v954
          %v1019 = vpack.c.b16 %v963, %v955
          %v1020 = vpack.c.b16 %v964, %v956
          %v1021 = vpack.c.b16 %v973, %v965
          %v1022 = vpack.c.b16 %v974, %v966
          %v1023 = vpack.c.b16 %v975, %v967
          %v1024 = vpack.c.b16 %v976, %v968
          %v1025 = vpack.c.b16 %v977, %v969
          %v1026 = vpack.c.b16 %v978, %v970
          %v1027 = vpack.c.b16 %v979, %v971
          %v1028 = vpack.c.b16 %v980, %v972
          %v1029 = vpack.c.b16 %v989, %v981
          %v1030 = vpack.c.b16 %v990, %v982
          %v1031 = vpack.c.b16 %v991, %v983
          %v1032 = vpack.c.b16 %v992, %v984
          %v1033 = vpack.c.b16 %v993, %v985
          %v1034 = vpack.c.b16 %v994, %v986
          %v1035 = vpack.c.b16 %v995, %v987
          %v1036 = vpack.c.b16 %v996, %v988
          %v1037 = vpack.c.b16 %v1005, %v997
          %v1038 = vpack.c.b16 %v1006, %v998
          %v1039 = vpack.c.b16 %v1007, %v999
          %v1040 = vpack.c.b16 %v1008, %v1000
          %v1041 = vpack.c.b16 %v1009, %v1001
          %v1042 = vpack.c.b16 %v1010, %v1002
          %v1043 = vpack.c.b16 %v1011, %v1003
          %v1044 = vpack.c.b16 %v1012, %v1004
          %vm1077 = vcmask 523264
          %v1079 = vsel %vm1077, %v916, 0
          %1081 = vmatprep.subr.bf16.mxu0 %v1014
          %1082 = vmatpush1.bf16.msra.mxu0 %v1013
          %1083 = vmatprep.subr.bf16.mxu0 %v1022
          %1084 = vmatpush1.bf16.msra.mxu0 %v1021
          %1085 = vmatprep.subr.bf16.mxu0 %v1030
          %1086 = vmatpush1.bf16.msra.mxu0 %v1029
          %1087 = vmatprep.subr.bf16.mxu0 %v1038
          %1088 = vmatpush1.bf16.msra.mxu0 %v1037
          %1089 = vmatprep.subr.bf16.mxu0 0
          %1090 = vmatpush1.bf16.msra.mxu0 0
          %1091 = vmatprep.subr.bf16.mxu0 0
          %1092 = vmatpush1.bf16.msra.mxu0 0
          %1093 = vmatprep.subr.bf16.mxu0 0
          %1094 = vmatpush1.bf16.msra.mxu0 0
          %1095 = vmatprep.subr.bf16.mxu0 0
          %1096 = vmatpush1.bf16.msra.mxu0 0
          %1097 = vmatprep.subr.bf16.mxu0 0
          %1098 = vmatpush1.bf16.msra.mxu0 0
          %1099 = vmatprep.subr.bf16.mxu0 0
          %1100 = vmatpush1.bf16.msra.mxu0 0
          %1101 = vmatprep.subr.bf16.mxu0 0
          %1102 = vmatpush1.bf16.msra.mxu0 0
          %1103 = vmatprep.subr.bf16.mxu0 0
          %1104 = vmatpush1.bf16.msra.mxu0 0
          %1105 = vmatprep.subr.bf16.mxu0 0
          %1106 = vmatpush1.bf16.msra.mxu0 0
          %1107 = vmatprep.subr.bf16.mxu0 0
          %1108 = vmatpush1.bf16.msra.mxu0 0
          %1109 = vmatprep.subr.bf16.mxu0 0
          %1110 = vmatpush1.bf16.msra.mxu0 0
          %1111 = vmatprep.subr.bf16.mxu0 0
          %1112 = vmatpush1.bf16.msra.mxu0 0
          %1113 = vmatprep.mubr.bf16.mxu0 0
          %1114 = vmatmul.mubr.bf16.gmra.mrb[0].mxu0 %v1079
          %v1115 = vpop.f32.mrb[0].mxu0
          %v1116 = vadd.f32 %v872, %v1115
          %v1117 = vpop.f32.mrb[0].mxu0
          %v1118 = vadd.f32 %v876, %v1117
          %v1119 = vpop.f32.mrb[0].mxu0
          %v1120 = vpop.f32.mrb[0].mxu0
          %1121 = vdwg.mxu0
          %1122 = vmatprep.subr.bf16.mxu0 %v1016
          %1123 = vmatpush1.bf16.msra.mxu0 %v1015
          %1124 = vmatprep.subr.bf16.mxu0 %v1024
          %1125 = vmatpush1.bf16.msra.mxu0 %v1023
          %1126 = vmatprep.subr.bf16.mxu0 %v1032
          %1127 = vmatpush1.bf16.msra.mxu0 %v1031
          %1128 = vmatprep.subr.bf16.mxu0 %v1040
          %1129 = vmatpush1.bf16.msra.mxu0 %v1039
          %1130 = vmatprep.subr.bf16.mxu0 0
          %1131 = vmatpush1.bf16.msra.mxu0 0
          %1132 = vmatprep.subr.bf16.mxu0 0
          %1133 = vmatpush1.bf16.msra.mxu0 0
          %1134 = vmatprep.subr.bf16.mxu0 0
          %1135 = vmatpush1.bf16.msra.mxu0 0
          %1136 = vmatprep.subr.bf16.mxu0 0
          %1137 = vmatpush1.bf16.msra.mxu0 0
          %1138 = vmatprep.subr.bf16.mxu0 0
          %1139 = vmatpush1.bf16.msra.mxu0 0
          %1140 = vmatprep.subr.bf16.mxu0 0
          %1141 = vmatpush1.bf16.msra.mxu0 0
          %1142 = vmatprep.subr.bf16.mxu0 0
          %1143 = vmatpush1.bf16.msra.mxu0 0
          %1144 = vmatprep.subr.bf16.mxu0 0
          %1145 = vmatpush1.bf16.msra.mxu0 0
          %1146 = vmatprep.subr.bf16.mxu0 0
          %1147 = vmatpush1.bf16.msra.mxu0 0
          %1148 = vmatprep.subr.bf16.mxu0 0
          %1149 = vmatpush1.bf16.msra.mxu0 0
          %1150 = vmatprep.subr.bf16.mxu0 0
          %1151 = vmatpush1.bf16.msra.mxu0 0
          %1152 = vmatprep.subr.bf16.mxu0 0
          %1153 = vmatpush1.bf16.msra.mxu0 0
          %1154 = vmatprep.mubr.bf16.mxu0 0
          %1155 = vmatmul.mubr.bf16.gmra.mrb[0].mxu0 %v1079
          %v1156 = vpop.f32.mrb[0].mxu0
          %v1157 = vadd.f32 %v880, %v1156
          %v1158 = vpop.f32.mrb[0].mxu0
          %v1159 = vadd.f32 %v884, %v1158
          %v1160 = vpop.f32.mrb[0].mxu0
          %v1161 = vpop.f32.mrb[0].mxu0
          %1162 = vdwg.mxu0
          %1163 = vmatprep.subr.bf16.mxu0 %v1018
          %1164 = vmatpush1.bf16.msra.mxu0 %v1017
          %1165 = vmatprep.subr.bf16.mxu0 %v1026
          %1166 = vmatpush1.bf16.msra.mxu0 %v1025
          %1167 = vmatprep.subr.bf16.mxu0 %v1034
          %1168 = vmatpush1.bf16.msra.mxu0 %v1033
          %1169 = vmatprep.subr.bf16.mxu0 %v1042
          %1170 = vmatpush1.bf16.msra.mxu0 %v1041
          %1171 = vmatprep.subr.bf16.mxu0 0
          %1172 = vmatpush1.bf16.msra.mxu0 0
          %1173 = vmatprep.subr.bf16.mxu0 0
          %1174 = vmatpush1.bf16.msra.mxu0 0
          %1175 = vmatprep.subr.bf16.mxu0 0
          %1176 = vmatpush1.bf16.msra.mxu0 0
          %1177 = vmatprep.subr.bf16.mxu0 0
          %1178 = vmatpush1.bf16.msra.mxu0 0
          %1179 = vmatprep.subr.bf16.mxu0 0
          %1180 = vmatpush1.bf16.msra.mxu0 0
          %1181 = vmatprep.subr.bf16.mxu0 0
          %1182 = vmatpush1.bf16.msra.mxu0 0
          %1183 = vmatprep.subr.bf16.mxu0 0
          %1184 = vmatpush1.bf16.msra.mxu0 0
          %1185 = vmatprep.subr.bf16.mxu0 0
          %1186 = vmatpush1.bf16.msra.mxu0 0
          %1187 = vmatprep.subr.bf16.mxu0 0
          %1188 = vmatpush1.bf16.msra.mxu0 0
          %1189 = vmatprep.subr.bf16.mxu0 0
          %1190 = vmatpush1.bf16.msra.mxu0 0
          %1191 = vmatprep.subr.bf16.mxu0 0
          %1192 = vmatpush1.bf16.msra.mxu0 0
          %1193 = vmatprep.subr.bf16.mxu0 0
          %1194 = vmatpush1.bf16.msra.mxu0 0
          %1195 = vmatprep.mubr.bf16.mxu0 0
          %1196 = vmatmul.mubr.bf16.gmra.mrb[0].mxu0 %v1079
          %v1197 = vpop.f32.mrb[0].mxu0
          %v1198 = vadd.f32 %v888, %v1197
          %v1199 = vpop.f32.mrb[0].mxu0
          %v1200 = vadd.f32 %v892, %v1199
          %v1201 = vpop.f32.mrb[0].mxu0
          %v1202 = vpop.f32.mrb[0].mxu0
          %1203 = vdwg.mxu0
          %1204 = vmatprep.subr.bf16.mxu0 %v1020
          %1205 = vmatpush1.bf16.msra.mxu0 %v1019
          %1206 = vmatprep.subr.bf16.mxu0 %v1028
          %1207 = vmatpush1.bf16.msra.mxu0 %v1027
          %1208 = vmatprep.subr.bf16.mxu0 %v1036
          %1209 = vmatpush1.bf16.msra.mxu0 %v1035
          %1210 = vmatprep.subr.bf16.mxu0 %v1044
          %1211 = vmatpush1.bf16.msra.mxu0 %v1043
          %1212 = vmatprep.subr.bf16.mxu0 0
          %1213 = vmatpush1.bf16.msra.mxu0 0
          %1214 = vmatprep.subr.bf16.mxu0 0
          %1215 = vmatpush1.bf16.msra.mxu0 0
          %1216 = vmatprep.subr.bf16.mxu0 0
          %1217 = vmatpush1.bf16.msra.mxu0 0
          %1218 = vmatprep.subr.bf16.mxu0 0
          %1219 = vmatpush1.bf16.msra.mxu0 0
          %1220 = vmatprep.subr.bf16.mxu0 0
          %1221 = vmatpush1.bf16.msra.mxu0 0
          %1222 = vmatprep.subr.bf16.mxu0 0
          %1223 = vmatpush1.bf16.msra.mxu0 0
          %1224 = vmatprep.subr.bf16.mxu0 0
          %1225 = vmatpush1.bf16.msra.mxu0 0
          %1226 = vmatprep.subr.bf16.mxu0 0
          %1227 = vmatpush1.bf16.msra.mxu0 0
          %1228 = vmatprep.subr.bf16.mxu0 0
          %1229 = vmatpush1.bf16.msra.mxu0 0
          %1230 = vmatprep.subr.bf16.mxu0 0
          %1231 = vmatpush1.bf16.msra.mxu0 0
          %1232 = vmatprep.subr.bf16.mxu0 0
          %1233 = vmatpush1.bf16.msra.mxu0 0
          %1234 = vmatprep.subr.bf16.mxu0 0
          %1235 = vmatpush1.bf16.msra.mxu0 0
          %1236 = vmatprep.mubr.bf16.mxu0 0
          %1237 = vmatmul.mubr.bf16.gmra.mrb[0].mxu0 %v1079
          %v1238 = vpop.f32.mrb[0].mxu0
          %v1239 = vadd.f32 %v896, %v1238
          %v1240 = vpop.f32.mrb[0].mxu0
          %v1241 = vadd.f32 %v900, %v1240
          %v1242 = vpop.f32.mrb[0].mxu0
          %v1243 = vpop.f32.mrb[0].mxu0
          %1244 = vdwg.mxu0
          %v1245 = vcombine.low %v1116, %v1157
          %v1247 = vunpack.c.l.s4 1983009808
          %v1248 = vunpack.c.0.s8 %v1247
          %v1249 = vlaneseq
          %v1250 = vshrl.u32 %v1249, 7
          %v1251 = vsub.s32 %v1248, %v1250
          %v1252 = vrot.slane %v1245, %v1251
          %v1253 = vcombine.low %v1118, %v1159
          %v1255 = vunpack.c.l.s4 1983009808
          %v1256 = vunpack.c.0.s8 %v1255
          %v1257 = vlaneseq
          %v1258 = vshrl.u32 %v1257, 7
          %v1259 = vsub.s32 %v1256, %v1258
          %v1260 = vrot.slane %v1253, %v1259
          %v1261 = vcombine.low %v1198, %v1239
          %v1263 = vunpack.c.l.s4 1983009808
          %v1264 = vunpack.c.0.s8 %v1263
          %v1265 = vlaneseq
          %v1266 = vshrl.u32 %v1265, 7
          %v1267 = vsub.s32 %v1264, %v1266
          %v1268 = vrot.slane %v1261, %v1267
          %v1269 = vcombine.low %v1200, %v1241
          %v1271 = vunpack.c.l.s4 1983009808
          %v1272 = vunpack.c.0.s8 %v1271
          %v1273 = vlaneseq
          %v1274 = vshrl.u32 %v1273, 7
          %v1275 = vsub.s32 %v1272, %v1274
          %v1276 = vrot.slane %v1269, %v1275
          %v1277 = vcombine.low %v1252, %v1260
          %v1279 = vunpack.c.l.s4 1934713408
          %v1280 = vunpack.c.0.s8 %v1279
          %v1281 = vlaneseq
          %v1282 = vshrl.u32 %v1281, 7
          %v1283 = vsub.s32 %v1280, %v1282
          %v1284 = vrot.slane %v1277, %v1283
          %v1285 = vcombine.low %v1268, %v1276
          %v1287 = vunpack.c.l.s4 1934713408
          %v1288 = vunpack.c.0.s8 %v1287
          %v1289 = vlaneseq
          %v1290 = vshrl.u32 %v1289, 7
          %v1291 = vsub.s32 %v1288, %v1290
          %v1292 = vrot.slane %v1285, %v1291
          %v1293 = vcombine.low %v1284, %v1292
          %v1294 = vcombine.high %v1284, %v1292
          %1295 = vst [vmem:[#allocation2] sm:$0xff] %v1293
          %1296 = vst [vmem:[#allocation2 + $0x10] sm:$0xff] %v1294
          %v1297 = vld [vmem:[%s3] sm:$0xff]
          %1298 = vst [vmem:[#allocation2 + $0x8] sm:$0xff] %v1297
          %1299 = vst [vmem:[#allocation2 + $0x18] sm:$0xff] %v1297
        $region116: #{transformer_mapper.1} parent=79 // pred_fallthru
          _
        %v1300 = vld [vmem:[#allocation2] sm:$0xff]
        %v1301 = vld [vmem:[#allocation2 + $0x8] sm:$0xff]
        %v1302 = vld [vmem:[#allocation2 + $0x10] sm:$0xff]
        %v1303 = vld [vmem:[#allocation2 + $0x18] sm:$0xff]
        %1304 = vadd.xlane.f32.xlu0 %v1300
        %v1305 = vpop.xlane.xlu0 %1304
        %1306 = vadd.xlane.f32.xlu0 %v1301
        %v1307 = vpop.xlane.xlu0 %1306
        %1308 = vadd.xlane.f32.xlu0 %v1302
        %v1309 = vpop.xlane.xlu0 %1308
        %1310 = vadd.xlane.f32.xlu0 %v1303
        %v1311 = vpop.xlane.xlu0 %1310
        %v1312 = vrcp.pop 128.0
        %v1313 = vmul.f32 %v1305, %v1312
        %v1314 = vmul.f32 %v1307, %v1312
        %v1315 = vmul.f32 %v1309, %v1312
        %v1316 = vmul.f32 %v1311, %v1312
        %v1317 = vmul.f32 %v1300, %v1300
        %v1318 = vmul.f32 %v1301, %v1301
        %v1319 = vmul.f32 %v1302, %v1302
        %v1320 = vmul.f32 %v1303, %v1303
        %1321 = vadd.xlane.f32.xlu0 %v1317
        %v1322 = vpop.xlane.xlu0 %1321
        %1323 = vadd.xlane.f32.xlu0 %v1318
        %v1324 = vpop.xlane.xlu0 %1323
        %1325 = vadd.xlane.f32.xlu0 %v1319
        %v1326 = vpop.xlane.xlu0 %1325
        %1327 = vadd.xlane.f32.xlu0 %v1320
        %v1328 = vpop.xlane.xlu0 %1327
        %v1329 = vmul.f32 %v1322, %v1312
        %v1330 = vmul.f32 %v1324, %v1312
        %v1331 = vmul.f32 %v1326, %v1312
        %v1332 = vmul.f32 %v1328, %v1312
        %v1333 = vmul.f32 %v1313, %v1313
        %v1334 = vmul.f32 %v1314, %v1314
        %v1335 = vmul.f32 %v1315, %v1315
        %v1336 = vmul.f32 %v1316, %v1316
        %v1337 = vsub.f32 %v1329, %v1333
        %v1338 = vsub.f32 %v1330, %v1334
        %v1339 = vsub.f32 %v1331, %v1335
        %v1340 = vsub.f32 %v1332, %v1336
        %v1341 = vmax.f32 %v1337, 0.0
        %v1342 = vmax.f32 %v1338, 0.0
        %v1343 = vmax.f32 %v1339, 0.0
        %v1344 = vmax.f32 %v1340, 0.0
        %v1345 = vsub.f32 %v1300, %v1313
        %v1346 = vsub.f32 %v1301, %v1314
        %v1347 = vsub.f32 %v1302, %v1315
        %v1348 = vsub.f32 %v1303, %v1316
        %v1349 = vadd.f32 %v1341, 1e-05
        %v1350 = vadd.f32 %v1342, 1e-05
        %v1351 = vadd.f32 %v1343, 1e-05
        %v1352 = vadd.f32 %v1344, 1e-05
        %v1353 = vrsqrt.pop %v1349
        %v1354 = vrsqrt.pop %v1350
        %v1355 = vrsqrt.pop %v1351
        %v1356 = vrsqrt.pop %v1352
        %v1357 = vmul.f32 %v1345, %v1353
        %v1358 = vmul.f32 %v1346, %v1354
        %v1359 = vmul.f32 %v1347, %v1355
        %v1360 = vmul.f32 %v1348, %v1356
        %v1361 = vld [vmem:[%s815] sm:$0x1]
        %v1363 = vlaneseq
        %v1364 = vshrl.u32 %v1363, 7
        %v1365 = vsub.s32 0, %v1364
        %v1366 = vrot.slane %v1361, %v1365
        %v1368 = vmul.f32 %v1357, %v1366
        %v1369 = vmul.f32 %v1358, %v1366
        %v1370 = vmul.f32 %v1359, %v1366
        %v1371 = vmul.f32 %v1360, %v1366
        %v1372 = vld [vmem:[%s818] sm:$0x1]
        %v1374 = vlaneseq
        %v1375 = vshrl.u32 %v1374, 7
        %v1376 = vsub.s32 0, %v1375
        %v1377 = vrot.slane %v1372, %v1376
        %v1379 = vadd.f32 %v1368, %v1377
        %v1380 = vadd.f32 %v1369, %v1377
        %v1381 = vadd.f32 %v1370, %v1377
        %v1382 = vadd.f32 %v1371, %v1377
        %v1383 = vpack.c.bf16 %v1380, %v1379
        %v1384 = vpack.c.bf16 %v1382, %v1381
        %v1385 = vld [vmem:[%s670] sm:$0xff]
        %v1386 = vld [vmem:[%s670 + $0x8] sm:$0xf]
        %v1387 = vld [vmem:[%s670 + $0xc] sm:$0xff]
        %v1388 = vld [vmem:[%s670 + $0x14] sm:$0xf]
        %v1389 = vld [vmem:[%s670 + $0x18] sm:$0xff]
        %v1390 = vld [vmem:[%s670 + $0x20] sm:$0xf]
        %v1391 = vld [vmem:[%s670 + $0x24] sm:$0xff]
        %v1392 = vld [vmem:[%s670 + $0x2c] sm:$0xf]
        %v1393 = vld [vmem:[%s670 + $0x30] sm:$0xff]
        %v1394 = vld [vmem:[%s670 + $0x38] sm:$0xf]
        %v1395 = vld [vmem:[%s670 + $0x3c] sm:$0xff]
        %v1396 = vld [vmem:[%s670 + $0x44] sm:$0xf]
        %v1397 = vld [vmem:[%s670 + $0x48] sm:$0xff]
        %v1398 = vld [vmem:[%s670 + $0x50] sm:$0xf]
        %v1399 = vld [vmem:[%s670 + $0x54] sm:$0xff]
        %v1400 = vld [vmem:[%s670 + $0x5c] sm:$0xf]
        %v1401 = vld [vmem:[%s670 + $0x60] sm:$0xff]
        %v1402 = vld [vmem:[%s670 + $0x68] sm:$0xf]
        %v1403 = vld [vmem:[%s670 + $0x6c] sm:$0xff]
        %v1404 = vld [vmem:[%s670 + $0x74] sm:$0xf]
        %v1405 = vld [vmem:[%s670 + $0x78] sm:$0xff]
        %v1406 = vld [vmem:[%s670 + $0x80] sm:$0xf]
        %v1407 = vld [vmem:[%s670 + $0x84] sm:$0xff]
        %v1408 = vld [vmem:[%s670 + $0x8c] sm:$0xf]
        %v1409 = vld [vmem:[%s670 + $0x90] sm:$0xff]
        %v1410 = vld [vmem:[%s670 + $0x98] sm:$0xf]
        %v1411 = vld [vmem:[%s670 + $0x9c] sm:$0xff]
        %v1412 = vld [vmem:[%s670 + $0xa4] sm:$0xf]
        %v1413 = vld [vmem:[%s670 + $0xa8] sm:$0xff]
        %v1414 = vld [vmem:[%s670 + $0xb0] sm:$0xf]
        %v1415 = vld [vmem:[%s670 + $0xb4] sm:$0xff]
        %v1416 = vld [vmem:[%s670 + $0xbc] sm:$0xf]
        %v1449 = vunpack.c.l.b16 %v1385
        %v1450 = vunpack.c.h.b16 %v1385
        %v1451 = vunpack.c.l.b16 %v1386
        %v1452 = vunpack.c.l.b16 %v1387
        %v1453 = vunpack.c.h.b16 %v1387
        %v1454 = vunpack.c.l.b16 %v1388
        %v1455 = vunpack.c.l.b16 %v1389
        %v1456 = vunpack.c.h.b16 %v1389
        %v1457 = vunpack.c.l.b16 %v1390
        %v1458 = vunpack.c.l.b16 %v1391
        %v1459 = vunpack.c.h.b16 %v1391
        %v1460 = vunpack.c.l.b16 %v1392
        %v1461 = vunpack.c.l.b16 %v1393
        %v1462 = vunpack.c.h.b16 %v1393
        %v1463 = vunpack.c.l.b16 %v1394
        %v1464 = vunpack.c.l.b16 %v1395
        %v1465 = vunpack.c.h.b16 %v1395
        %v1466 = vunpack.c.l.b16 %v1396
        %v1467 = vunpack.c.l.b16 %v1397
        %v1468 = vunpack.c.h.b16 %v1397
        %v1469 = vunpack.c.l.b16 %v1398
        %v1470 = vunpack.c.l.b16 %v1399
        %v1471 = vunpack.c.h.b16 %v1399
        %v1472 = vunpack.c.l.b16 %v1400
        %v1473 = vunpack.c.l.b16 %v1401
        %v1474 = vunpack.c.h.b16 %v1401
        %v1475 = vunpack.c.l.b16 %v1402
        %v1476 = vunpack.c.l.b16 %v1403
        %v1477 = vunpack.c.h.b16 %v1403
        %v1478 = vunpack.c.l.b16 %v1404
        %v1479 = vunpack.c.l.b16 %v1405
        %v1480 = vunpack.c.h.b16 %v1405
        %v1481 = vunpack.c.l.b16 %v1406
        %v1482 = vunpack.c.l.b16 %v1407
        %v1483 = vunpack.c.h.b16 %v1407
        %v1484 = vunpack.c.l.b16 %v1408
        %v1485 = vunpack.c.l.b16 %v1409
        %v1486 = vunpack.c.h.b16 %v1409
        %v1487 = vunpack.c.l.b16 %v1410
        %v1488 = vunpack.c.l.b16 %v1411
        %v1489 = vunpack.c.h.b16 %v1411
        %v1490 = vunpack.c.l.b16 %v1412
        %v1491 = vunpack.c.l.b16 %v1413
        %v1492 = vunpack.c.h.b16 %v1413
        %v1493 = vunpack.c.l.b16 %v1414
        %v1494 = vunpack.c.l.b16 %v1415
        %v1495 = vunpack.c.h.b16 %v1415
        %v1496 = vunpack.c.l.b16 %v1416
        %v1497 = vpack.c.b16 %v1452, %v1449
        %v1498 = vpack.c.b16 %v1453, %v1450
        %v1499 = vpack.c.b16 %v1454, %v1451
        %v1500 = vpack.c.b16 %v1458, %v1455
        %v1501 = vpack.c.b16 %v1459, %v1456
        %v1502 = vpack.c.b16 %v1460, %v1457
        %v1503 = vpack.c.b16 %v1464, %v1461
        %v1504 = vpack.c.b16 %v1465, %v1462
        %v1505 = vpack.c.b16 %v1466, %v1463
        %v1506 = vpack.c.b16 %v1470, %v1467
        %v1507 = vpack.c.b16 %v1471, %v1468
        %v1508 = vpack.c.b16 %v1472, %v1469
        %v1509 = vpack.c.b16 %v1476, %v1473
        %v1510 = vpack.c.b16 %v1477, %v1474
        %v1511 = vpack.c.b16 %v1478, %v1475
        %v1512 = vpack.c.b16 %v1482, %v1479
        %v1513 = vpack.c.b16 %v1483, %v1480
        %v1514 = vpack.c.b16 %v1484, %v1481
        %v1515 = vpack.c.b16 %v1488, %v1485
        %v1516 = vpack.c.b16 %v1489, %v1486
        %v1517 = vpack.c.b16 %v1490, %v1487
        %v1518 = vpack.c.b16 %v1494, %v1491
        %v1519 = vpack.c.b16 %v1495, %v1492
        %v1520 = vpack.c.b16 %v1496, %v1493
        %1545 = vmatprep.subr.bf16.mxu0 %v1498
        %1546 = vmatpush1.bf16.msra.mxu0 %v1497
        %1547 = vmatprep.subr.bf16.mxu0 %v1501
        %1548 = vmatpush1.bf16.msra.mxu0 %v1500
        %1549 = vmatprep.subr.bf16.mxu0 %v1504
        %1550 = vmatpush1.bf16.msra.mxu0 %v1503
        %1551 = vmatprep.subr.bf16.mxu0 %v1507
        %1552 = vmatpush1.bf16.msra.mxu0 %v1506
        %1553 = vmatprep.subr.bf16.mxu0 %v1510
        %1554 = vmatpush1.bf16.msra.mxu0 %v1509
        %1555 = vmatprep.subr.bf16.mxu0 %v1513
        %1556 = vmatpush1.bf16.msra.mxu0 %v1512
        %1557 = vmatprep.subr.bf16.mxu0 %v1516
        %1558 = vmatpush1.bf16.msra.mxu0 %v1515
        %1559 = vmatprep.subr.bf16.mxu0 %v1519
        %1560 = vmatpush1.bf16.msra.mxu0 %v1518
        %1561 = vmatprep.subr.bf16.mxu0 0
        %1562 = vmatpush1.bf16.msra.mxu0 0
        %1563 = vmatprep.subr.bf16.mxu0 0
        %1564 = vmatpush1.bf16.msra.mxu0 0
        %1565 = vmatprep.subr.bf16.mxu0 0
        %1566 = vmatpush1.bf16.msra.mxu0 0
        %1567 = vmatprep.subr.bf16.mxu0 0
        %1568 = vmatpush1.bf16.msra.mxu0 0
        %1569 = vmatprep.subr.bf16.mxu0 0
        %1570 = vmatpush1.bf16.msra.mxu0 0
        %1571 = vmatprep.subr.bf16.mxu0 0
        %1572 = vmatpush1.bf16.msra.mxu0 0
        %1573 = vmatprep.subr.bf16.mxu0 0
        %1574 = vmatpush1.bf16.msra.mxu0 0
        %1575 = vmatprep.subr.bf16.mxu0 0
        %1576 = vmatpush1.bf16.msra.mxu0 0
        %1577 = vmatprep.mubr.bf16.mxu0 0
        %1578 = vmatmul.mubr.bf16.gmra.mrb[0].mxu0 %v1383
        %v1579 = vpop.f32.mrb[0].mxu0
        %v1580 = vadd.f32 0.0, %v1579
        %v1581 = vpop.f32.mrb[0].mxu0
        %v1582 = vadd.f32 0.0, %v1581
        %v1583 = vpop.f32.mrb[0].mxu0
        %v1584 = vadd.f32 0.0, %v1583
        %v1585 = vpop.f32.mrb[0].mxu0
        %v1586 = vadd.f32 0.0, %v1585
        %1587 = vmatprep.mubr.bf16.mxu0 0
        %1588 = vmatmul.mubr.bf16.gmra.mrb[0].mxu0 %v1384
        %v1589 = vpop.f32.mrb[0].mxu0
        %v1590 = vadd.f32 0.0, %v1589
        %v1591 = vpop.f32.mrb[0].mxu0
        %v1592 = vadd.f32 0.0, %v1591
        %v1593 = vpop.f32.mrb[0].mxu0
        %v1594 = vadd.f32 0.0, %v1593
        %v1595 = vpop.f32.mrb[0].mxu0
        %v1596 = vadd.f32 0.0, %v1595
        %1597 = vdwg.mxu0
        %1598 = vmatprep.subr.bf16.mxu0 0
        %1599 = vmatpush1.bf16.msra.mxu0 %v1499
        %1600 = vmatprep.subr.bf16.mxu0 0
        %1601 = vmatpush1.bf16.msra.mxu0 %v1502
        %1602 = vmatprep.subr.bf16.mxu0 0
        %1603 = vmatpush1.bf16.msra.mxu0 %v1505
        %1604 = vmatprep.subr.bf16.mxu0 0
        %1605 = vmatpush1.bf16.msra.mxu0 %v1508
        %1606 = vmatprep.subr.bf16.mxu0 0
        %1607 = vmatpush1.bf16.msra.mxu0 %v1511
        %1608 = vmatprep.subr.bf16.mxu0 0
        %1609 = vmatpush1.bf16.msra.mxu0 %v1514
        %1610 = vmatprep.subr.bf16.mxu0 0
        %1611 = vmatpush1.bf16.msra.mxu0 %v1517
        %1612 = vmatprep.subr.bf16.mxu0 0
        %1613 = vmatpush1.bf16.msra.mxu0 %v1520
        %1614 = vmatprep.subr.bf16.mxu0 0
        %1615 = vmatpush1.bf16.msra.mxu0 0
        %1616 = vmatprep.subr.bf16.mxu0 0
        %1617 = vmatpush1.bf16.msra.mxu0 0
        %1618 = vmatprep.subr.bf16.mxu0 0
        %1619 = vmatpush1.bf16.msra.mxu0 0
        %1620 = vmatprep.subr.bf16.mxu0 0
        %1621 = vmatpush1.bf16.msra.mxu0 0
        %1622 = vmatprep.subr.bf16.mxu0 0
        %1623 = vmatpush1.bf16.msra.mxu0 0
        %1624 = vmatprep.subr.bf16.mxu0 0
        %1625 = vmatpush1.bf16.msra.mxu0 0
        %1626 = vmatprep.subr.bf16.mxu0 0
        %1627 = vmatpush1.bf16.msra.mxu0 0
        %1628 = vmatprep.subr.bf16.mxu0 0
        %1629 = vmatpush1.bf16.msra.mxu0 0
        %1630 = vmatprep.mubr.bf16.mxu0 0
        %1631 = vmatmul.mubr.bf16.gmra.mrb[0].mxu0 %v1383
        %v1632 = vpop.f32.mrb[0].mxu0
        %v1633 = vadd.f32 0.0, %v1632
        %v1634 = vpop.f32.mrb[0].mxu0
        %v1635 = vpop.f32.mrb[0].mxu0
        %v1636 = vadd.f32 0.0, %v1635
        %v1637 = vpop.f32.mrb[0].mxu0
        %1638 = vmatprep.mubr.bf16.mxu0 0
        %1639 = vmatmul.mubr.bf16.gmra.mrb[0].mxu0 %v1384
        %v1640 = vpop.f32.mrb[0].mxu0
        %v1641 = vadd.f32 0.0, %v1640
        %v1642 = vpop.f32.mrb[0].mxu0
        %v1643 = vpop.f32.mrb[0].mxu0
        %v1644 = vadd.f32 0.0, %v1643
        %v1645 = vpop.f32.mrb[0].mxu0
        %1646 = vdwg.mxu0
        %v1647 = vpack.c.bf16 %v1584, %v1580
        %v1648 = vpack.c.bf16 %v1594, %v1590
        %v1649 = vpack.c.bf16 %v1586, %v1582
        %v1650 = vpack.c.bf16 %v1596, %v1592
        %v1651 = vpack.c.bf16 %v1636, %v1633
        %v1652 = vpack.c.bf16 %v1644, %v1641
        %vm1653 = vcmask 130048
        %v1655 = vsel %vm1653, %v1647, 0
        %v1658 = vsel %vm1653, %v1649, 0
        %1660 = vmatprep.subr.bf16.mxu0 0
        %1661 = vmatpush1.bf16.xpose.msra.mxu0 %v1658
        %1662 = vmatprep.subr.bf16.mxu0 0
        %1663 = vmatpush1.bf16.xpose.msra.mxu0 0
        %1664 = vmatprep.subr.bf16.mxu0 0
        %1665 = vmatpush1.bf16.xpose.msra.mxu0 0
        %1666 = vmatprep.subr.bf16.mxu0 0
        %1667 = vmatpush1.bf16.xpose.msra.mxu0 0
        %1668 = vmatprep.subr.bf16.mxu0 0
        %1669 = vmatpush1.bf16.xpose.msra.mxu0 0
        %1670 = vmatprep.subr.bf16.mxu0 0
        %1671 = vmatpush1.bf16.xpose.msra.mxu0 0
        %1672 = vmatprep.subr.bf16.mxu0 0
        %1673 = vmatpush1.bf16.xpose.msra.mxu0 0
        %1674 = vmatprep.subr.bf16.mxu0 0
        %1675 = vmatpush1.bf16.xpose.msra.mxu0 0
        %1676 = vmatprep.subr.bf16.mxu0 0
        %1677 = vmatpush1.bf16.xpose.msra.mxu0 0
        %1678 = vmatprep.subr.bf16.mxu0 0
        %1679 = vmatpush1.bf16.xpose.msra.mxu0 0
        %1680 = vmatprep.subr.bf16.mxu0 0
        %1681 = vmatpush1.bf16.xpose.msra.mxu0 0
        %1682 = vmatprep.subr.bf16.mxu0 0
        %1683 = vmatpush1.bf16.xpose.msra.mxu0 0
        %1684 = vmatprep.subr.bf16.mxu0 0
        %1685 = vmatpush1.bf16.xpose.msra.mxu0 0
        %1686 = vmatprep.subr.bf16.mxu0 0
        %1687 = vmatpush1.bf16.xpose.msra.mxu0 0
        %1688 = vmatprep.subr.bf16.mxu0 0
        %1689 = vmatpush1.bf16.xpose.msra.mxu0 0
        %1690 = vmatprep.subr.bf16.mxu0 0
        %1691 = vmatpush1.bf16.xpose.msra.mxu0 0
        %1692 = vmatprep.mubr.bf16.mxu0 0
        %1693 = vmatmul.mubr.bf16.gmra.mrb[0].mxu0 %v1655
        %v1694 = vpop.f32.mrb[0].mxu0
        %v1695 = vadd.f32 0.0, %v1694
        %v1696 = vpop.f32.mrb[0].mxu0
        %v1697 = vpop.f32.mrb[0].mxu0
        %v1698 = vadd.f32 0.0, %v1697
        %v1699 = vpop.f32.mrb[0].mxu0
        %1700 = vdwg.mxu0
        %v1702 = vsel %vm1653, %v1648, 0
        %v1705 = vsel %vm1653, %v1650, 0
        %1707 = vmatprep.subr.bf16.mxu0 0
        %1708 = vmatpush1.bf16.xpose.msra.mxu0 %v1705
        %1709 = vmatprep.subr.bf16.mxu0 0
        %1710 = vmatpush1.bf16.xpose.msra.mxu0 0
        %1711 = vmatprep.subr.bf16.mxu0 0
        %1712 = vmatpush1.bf16.xpose.msra.mxu0 0
        %1713 = vmatprep.subr.bf16.mxu0 0
        %1714 = vmatpush1.bf16.xpose.msra.mxu0 0
        %1715 = vmatprep.subr.bf16.mxu0 0
        %1716 = vmatpush1.bf16.xpose.msra.mxu0 0
        %1717 = vmatprep.subr.bf16.mxu0 0
        %1718 = vmatpush1.bf16.xpose.msra.mxu0 0
        %1719 = vmatprep.subr.bf16.mxu0 0
        %1720 = vmatpush1.bf16.xpose.msra.mxu0 0
        %1721 = vmatprep.subr.bf16.mxu0 0
        %1722 = vmatpush1.bf16.xpose.msra.mxu0 0
        %1723 = vmatprep.subr.bf16.mxu0 0
        %1724 = vmatpush1.bf16.xpose.msra.mxu0 0
        %1725 = vmatprep.subr.bf16.mxu0 0
        %1726 = vmatpush1.bf16.xpose.msra.mxu0 0
        %1727 = vmatprep.subr.bf16.mxu0 0
        %1728 = vmatpush1.bf16.xpose.msra.mxu0 0
        %1729 = vmatprep.subr.bf16.mxu0 0
        %1730 = vmatpush1.bf16.xpose.msra.mxu0 0
        %1731 = vmatprep.subr.bf16.mxu0 0
        %1732 = vmatpush1.bf16.xpose.msra.mxu0 0
        %1733 = vmatprep.subr.bf16.mxu0 0
        %1734 = vmatpush1.bf16.xpose.msra.mxu0 0
        %1735 = vmatprep.subr.bf16.mxu0 0
        %1736 = vmatpush1.bf16.xpose.msra.mxu0 0
        %1737 = vmatprep.subr.bf16.mxu0 0
        %1738 = vmatpush1.bf16.xpose.msra.mxu0 0
        %1739 = vmatprep.mubr.bf16.mxu0 0
        %1740 = vmatmul.mubr.bf16.gmra.mrb[0].mxu0 %v1702
        %v1741 = vpop.f32.mrb[0].mxu0
        %v1742 = vadd.f32 0.0, %v1741
        %v1743 = vpop.f32.mrb[0].mxu0
        %v1744 = vpop.f32.mrb[0].mxu0
        %v1745 = vadd.f32 0.0, %v1744
        %v1746 = vpop.f32.mrb[0].mxu0
        %1747 = vdwg.mxu0
        %v1748 = vsel %vm1653, %v1695, -inf
        %1749 = vmax.xlane.f32.xlu0 %v1748
        %v1750 = vpop.xlane.xlu0 %1749
        %v1751 = vsel %vm1653, %v1698, -inf
        %1752 = vmax.xlane.f32.xlu0 %v1751
        %v1753 = vpop.xlane.xlu0 %1752
        %v1754 = vsel %vm1653, %v1742, -inf
        %1755 = vmax.xlane.f32.xlu0 %v1754
        %v1756 = vpop.xlane.xlu0 %1755
        %v1757 = vsel %vm1653, %v1745, -inf
        %1758 = vmax.xlane.f32.xlu0 %v1757
        %v1759 = vpop.xlane.xlu0 %1758
        %v1760 = vsub.f32 %v1695, %v1750
        %v1761 = vsub.f32 %v1698, %v1753
        %v1762 = vsub.f32 %v1742, %v1756
        %v1763 = vsub.f32 %v1745, %v1759
        %v1764 = vmul.f32 %v1760, 1.442695
        %v1765 = vpow.pop %v1764
        %v1766 = vmul.f32 %v1761, 1.442695
        %v1767 = vpow.pop %v1766
        %v1768 = vmul.f32 %v1762, 1.442695
        %v1769 = vpow.pop %v1768
        %v1770 = vmul.f32 %v1763, 1.442695
        %v1771 = vpow.pop %v1770
        %v1772 = vsel %vm1653, %v1765, 0.0
        %1773 = vadd.xlane.f32.xlu0 %v1772
        %v1774 = vpop.xlane.xlu0 %1773
        %v1775 = vsel %vm1653, %v1767, 0.0
        %1776 = vadd.xlane.f32.xlu0 %v1775
        %v1777 = vpop.xlane.xlu0 %1776
        %v1778 = vsel %vm1653, %v1769, 0.0
        %1779 = vadd.xlane.f32.xlu0 %v1778
        %v1780 = vpop.xlane.xlu0 %1779
        %v1781 = vsel %vm1653, %v1771, 0.0
        %1782 = vadd.xlane.f32.xlu0 %v1781
        %v1783 = vpop.xlane.xlu0 %1782
        %v1784 = vrcp.pop %v1774
        %v1785 = vrcp.pop %v1777
        %v1786 = vrcp.pop %v1780
        %v1787 = vrcp.pop %v1783
        %v1788 = vmul.f32 %v1765, %v1784
        %v1789 = vmul.f32 %v1767, %v1785
        %v1790 = vmul.f32 %v1769, %v1786
        %v1791 = vmul.f32 %v1771, %v1787
        %v1792 = vpack.c.bf16 %v1789, %v1788
        %v1793 = vpack.c.bf16 %v1791, %v1790
        %v1795 = vsel %vm1653, %v1792, 0
        %1797 = vmatprep.subr.bf16.mxu0 0
        %1798 = vmatpush1.bf16.msra.mxu0 %v1651
        %1799 = vmatprep.subr.bf16.mxu0 0
        %1800 = vmatpush1.bf16.msra.mxu0 0
        %1801 = vmatprep.subr.bf16.mxu0 0
        %1802 = vmatpush1.bf16.msra.mxu0 0
        %1803 = vmatprep.subr.bf16.mxu0 0
        %1804 = vmatpush1.bf16.msra.mxu0 0
        %1805 = vmatprep.subr.bf16.mxu0 0
        %1806 = vmatpush1.bf16.msra.mxu0 0
        %1807 = vmatprep.subr.bf16.mxu0 0
        %1808 = vmatpush1.bf16.msra.mxu0 0
        %1809 = vmatprep.subr.bf16.mxu0 0
        %1810 = vmatpush1.bf16.msra.mxu0 0
        %1811 = vmatprep.subr.bf16.mxu0 0
        %1812 = vmatpush1.bf16.msra.mxu0 0
        %1813 = vmatprep.subr.bf16.mxu0 0
        %1814 = vmatpush1.bf16.msra.mxu0 0
        %1815 = vmatprep.subr.bf16.mxu0 0
        %1816 = vmatpush1.bf16.msra.mxu0 0
        %1817 = vmatprep.subr.bf16.mxu0 0
        %1818 = vmatpush1.bf16.msra.mxu0 0
        %1819 = vmatprep.subr.bf16.mxu0 0
        %1820 = vmatpush1.bf16.msra.mxu0 0
        %1821 = vmatprep.subr.bf16.mxu0 0
        %1822 = vmatpush1.bf16.msra.mxu0 0
        %1823 = vmatprep.subr.bf16.mxu0 0
        %1824 = vmatpush1.bf16.msra.mxu0 0
        %1825 = vmatprep.subr.bf16.mxu0 0
        %1826 = vmatpush1.bf16.msra.mxu0 0
        %1827 = vmatprep.subr.bf16.mxu0 0
        %1828 = vmatpush1.bf16.msra.mxu0 0
        %1829 = vmatprep.mubr.bf16.mxu0 0
        %1830 = vmatmul.mubr.bf16.gmra.mrb[0].mxu0 %v1795
        %v1831 = vpop.f32.mrb[0].mxu0
        %v1832 = vadd.f32 0.0, %v1831
        %v1833 = vpop.f32.mrb[0].mxu0
        %v1834 = vpop.f32.mrb[0].mxu0
        %v1835 = vadd.f32 0.0, %v1834
        %v1836 = vpop.f32.mrb[0].mxu0
        %1837 = vdwg.mxu0
        %v1839 = vsel %vm1653, %v1793, 0
        %1841 = vmatprep.subr.bf16.mxu0 0
        %1842 = vmatpush1.bf16.msra.mxu0 %v1652
        %1843 = vmatprep.subr.bf16.mxu0 0
        %1844 = vmatpush1.bf16.msra.mxu0 0
        %1845 = vmatprep.subr.bf16.mxu0 0
        %1846 = vmatpush1.bf16.msra.mxu0 0
        %1847 = vmatprep.subr.bf16.mxu0 0
        %1848 = vmatpush1.bf16.msra.mxu0 0
        %1849 = vmatprep.subr.bf16.mxu0 0
        %1850 = vmatpush1.bf16.msra.mxu0 0
        %1851 = vmatprep.subr.bf16.mxu0 0
        %1852 = vmatpush1.bf16.msra.mxu0 0
        %1853 = vmatprep.subr.bf16.mxu0 0
        %1854 = vmatpush1.bf16.msra.mxu0 0
        %1855 = vmatprep.subr.bf16.mxu0 0
        %1856 = vmatpush1.bf16.msra.mxu0 0
        %1857 = vmatprep.subr.bf16.mxu0 0
        %1858 = vmatpush1.bf16.msra.mxu0 0
        %1859 = vmatprep.subr.bf16.mxu0 0
        %1860 = vmatpush1.bf16.msra.mxu0 0
        %1861 = vmatprep.subr.bf16.mxu0 0
        %1862 = vmatpush1.bf16.msra.mxu0 0
        %1863 = vmatprep.subr.bf16.mxu0 0
        %1864 = vmatpush1.bf16.msra.mxu0 0
        %1865 = vmatprep.subr.bf16.mxu0 0
        %1866 = vmatpush1.bf16.msra.mxu0 0
        %1867 = vmatprep.subr.bf16.mxu0 0
        %1868 = vmatpush1.bf16.msra.mxu0 0
        %1869 = vmatprep.subr.bf16.mxu0 0
        %1870 = vmatpush1.bf16.msra.mxu0 0
        %1871 = vmatprep.subr.bf16.mxu0 0
        %1872 = vmatpush1.bf16.msra.mxu0 0
        %1873 = vmatprep.mubr.bf16.mxu0 0
        %1874 = vmatmul.mubr.bf16.gmra.mrb[0].mxu0 %v1839
        %v1875 = vpop.f32.mrb[0].mxu0
        %v1876 = vadd.f32 0.0, %v1875
        %v1877 = vpop.f32.mrb[0].mxu0
        %v1878 = vpop.f32.mrb[0].mxu0
        %v1879 = vadd.f32 0.0, %v1878
        %v1880 = vpop.f32.mrb[0].mxu0
        %1881 = vdwg.mxu0
        %1883 = vrot.lane.b32.xlu0 %v1647, 112
        %v1884 = vpop.permute.xlu0 %1883
        %1886 = vrot.lane.b32.xlu0 %v1649, 112
        %v1887 = vpop.permute.xlu0 %1886
        %v1889 = vsel %vm1653, %v1884, 0
        %v1892 = vsel %vm1653, %v1887, 0
        %1894 = vmatprep.subr.bf16.mxu0 0
        %1895 = vmatpush1.bf16.xpose.msra.mxu0 %v1892
        %1896 = vmatprep.subr.bf16.mxu0 0
        %1897 = vmatpush1.bf16.xpose.msra.mxu0 0
        %1898 = vmatprep.subr.bf16.mxu0 0
        %1899 = vmatpush1.bf16.xpose.msra.mxu0 0
        %1900 = vmatprep.subr.bf16.mxu0 0
        %1901 = vmatpush1.bf16.xpose.msra.mxu0 0
        %1902 = vmatprep.subr.bf16.mxu0 0
        %1903 = vmatpush1.bf16.xpose.msra.mxu0 0
        %1904 = vmatprep.subr.bf16.mxu0 0
        %1905 = vmatpush1.bf16.xpose.msra.mxu0 0
        %1906 = vmatprep.subr.bf16.mxu0 0
        %1907 = vmatpush1.bf16.xpose.msra.mxu0 0
        %1908 = vmatprep.subr.bf16.mxu0 0
        %1909 = vmatpush1.bf16.xpose.msra.mxu0 0
        %1910 = vmatprep.subr.bf16.mxu0 0
        %1911 = vmatpush1.bf16.xpose.msra.mxu0 0
        %1912 = vmatprep.subr.bf16.mxu0 0
        %1913 = vmatpush1.bf16.xpose.msra.mxu0 0
        %1914 = vmatprep.subr.bf16.mxu0 0
        %1915 = vmatpush1.bf16.xpose.msra.mxu0 0
        %1916 = vmatprep.subr.bf16.mxu0 0
        %1917 = vmatpush1.bf16.xpose.msra.mxu0 0
        %1918 = vmatprep.subr.bf16.mxu0 0
        %1919 = vmatpush1.bf16.xpose.msra.mxu0 0
        %1920 = vmatprep.subr.bf16.mxu0 0
        %1921 = vmatpush1.bf16.xpose.msra.mxu0 0
        %1922 = vmatprep.subr.bf16.mxu0 0
        %1923 = vmatpush1.bf16.xpose.msra.mxu0 0
        %1924 = vmatprep.subr.bf16.mxu0 0
        %1925 = vmatpush1.bf16.xpose.msra.mxu0 0
        %1926 = vmatprep.mubr.bf16.mxu0 0
        %1927 = vmatmul.mubr.bf16.gmra.mrb[0].mxu0 %v1889
        %v1928 = vpop.f32.mrb[0].mxu0
        %v1929 = vadd.f32 0.0, %v1928
        %v1930 = vpop.f32.mrb[0].mxu0
        %v1931 = vpop.f32.mrb[0].mxu0
        %v1932 = vadd.f32 0.0, %v1931
        %v1933 = vpop.f32.mrb[0].mxu0
        %1934 = vdwg.mxu0
        %1936 = vrot.lane.b32.xlu0 %v1648, 112
        %v1937 = vpop.permute.xlu0 %1936
        %1939 = vrot.lane.b32.xlu0 %v1650, 112
        %v1940 = vpop.permute.xlu0 %1939
        %v1942 = vsel %vm1653, %v1937, 0
        %v1945 = vsel %vm1653, %v1940, 0
        %1947 = vmatprep.subr.bf16.mxu0 0
        %1948 = vmatpush1.bf16.xpose.msra.mxu0 %v1945
        %1949 = vmatprep.subr.bf16.mxu0 0
        %1950 = vmatpush1.bf16.xpose.msra.mxu0 0
        %1951 = vmatprep.subr.bf16.mxu0 0
        %1952 = vmatpush1.bf16.xpose.msra.mxu0 0
        %1953 = vmatprep.subr.bf16.mxu0 0
        %1954 = vmatpush1.bf16.xpose.msra.mxu0 0
        %1955 = vmatprep.subr.bf16.mxu0 0
        %1956 = vmatpush1.bf16.xpose.msra.mxu0 0
        %1957 = vmatprep.subr.bf16.mxu0 0
        %1958 = vmatpush1.bf16.xpose.msra.mxu0 0
        %1959 = vmatprep.subr.bf16.mxu0 0
        %1960 = vmatpush1.bf16.xpose.msra.mxu0 0
        %1961 = vmatprep.subr.bf16.mxu0 0
        %1962 = vmatpush1.bf16.xpose.msra.mxu0 0
        %1963 = vmatprep.subr.bf16.mxu0 0
        %1964 = vmatpush1.bf16.xpose.msra.mxu0 0
        %1965 = vmatprep.subr.bf16.mxu0 0
        %1966 = vmatpush1.bf16.xpose.msra.mxu0 0
        %1967 = vmatprep.subr.bf16.mxu0 0
        %1968 = vmatpush1.bf16.xpose.msra.mxu0 0
        %1969 = vmatprep.subr.bf16.mxu0 0
        %1970 = vmatpush1.bf16.xpose.msra.mxu0 0
        %1971 = vmatprep.subr.bf16.mxu0 0
        %1972 = vmatpush1.bf16.xpose.msra.mxu0 0
        %1973 = vmatprep.subr.bf16.mxu0 0
        %1974 = vmatpush1.bf16.xpose.msra.mxu0 0
        %1975 = vmatprep.subr.bf16.mxu0 0
        %1976 = vmatpush1.bf16.xpose.msra.mxu0 0
        %1977 = vmatprep.subr.bf16.mxu0 0
        %1978 = vmatpush1.bf16.xpose.msra.mxu0 0
        %1979 = vmatprep.mubr.bf16.mxu0 0
        %1980 = vmatmul.mubr.bf16.gmra.mrb[0].mxu0 %v1942
        %v1981 = vpop.f32.mrb[0].mxu0
        %v1982 = vadd.f32 0.0, %v1981
        %v1983 = vpop.f32.mrb[0].mxu0
        %v1984 = vpop.f32.mrb[0].mxu0
        %v1985 = vadd.f32 0.0, %v1984
        %v1986 = vpop.f32.mrb[0].mxu0
        %1987 = vdwg.mxu0
        %v1988 = vsel %vm1653, %v1929, -inf
        %1989 = vmax.xlane.f32.xlu0 %v1988
        %v1990 = vpop.xlane.xlu0 %1989
        %v1991 = vsel %vm1653, %v1932, -inf
        %1992 = vmax.xlane.f32.xlu0 %v1991
        %v1993 = vpop.xlane.xlu0 %1992
        %v1994 = vsel %vm1653, %v1982, -inf
        %1995 = vmax.xlane.f32.xlu0 %v1994
        %v1996 = vpop.xlane.xlu0 %1995
        %v1997 = vsel %vm1653, %v1985, -inf
        %1998 = vmax.xlane.f32.xlu0 %v1997
        %v1999 = vpop.xlane.xlu0 %1998
        %v2000 = vsub.f32 %v1929, %v1990
        %v2001 = vsub.f32 %v1932, %v1993
        %v2002 = vsub.f32 %v1982, %v1996
        %v2003 = vsub.f32 %v1985, %v1999
        %v2004 = vmul.f32 %v2000, 1.442695
        %v2005 = vpow.pop %v2004
        %v2006 = vmul.f32 %v2001, 1.442695
        %v2007 = vpow.pop %v2006
        %v2008 = vmul.f32 %v2002, 1.442695
        %v2009 = vpow.pop %v2008
        %v2010 = vmul.f32 %v2003, 1.442695
        %v2011 = vpow.pop %v2010
        %v2012 = vsel %vm1653, %v2005, 0.0
        %2013 = vadd.xlane.f32.xlu0 %v2012
        %v2014 = vpop.xlane.xlu0 %2013
        %v2015 = vsel %vm1653, %v2007, 0.0
        %2016 = vadd.xlane.f32.xlu0 %v2015
        %v2017 = vpop.xlane.xlu0 %2016
        %v2018 = vsel %vm1653, %v2009, 0.0
        %2019 = vadd.xlane.f32.xlu0 %v2018
        %v2020 = vpop.xlane.xlu0 %2019
        %v2021 = vsel %vm1653, %v2011, 0.0
        %2022 = vadd.xlane.f32.xlu0 %v2021
        %v2023 = vpop.xlane.xlu0 %2022
        %v2024 = vrcp.pop %v2014
        %v2025 = vrcp.pop %v2017
        %v2026 = vrcp.pop %v2020
        %v2027 = vrcp.pop %v2023
        %v2028 = vmul.f32 %v2005, %v2024
        %v2029 = vmul.f32 %v2007, %v2025
        %v2030 = vmul.f32 %v2009, %v2026
        %v2031 = vmul.f32 %v2011, %v2027
        %v2032 = vpack.c.bf16 %v2029, %v2028
        %v2033 = vpack.c.bf16 %v2031, %v2030
        %2035 = vrot.lane.b32.xlu0 %v1651, 112
        %v2036 = vpop.permute.xlu0 %2035
        %v2039 = vsel %vm1653, %v2032, 0
        %2041 = vmatprep.subr.bf16.mxu0 0
        %2042 = vmatpush1.bf16.msra.mxu0 %v2036
        %2043 = vmatprep.subr.bf16.mxu0 0
        %2044 = vmatpush1.bf16.msra.mxu0 0
        %2045 = vmatprep.subr.bf16.mxu0 0
        %2046 = vmatpush1.bf16.msra.mxu0 0
        %2047 = vmatprep.subr.bf16.mxu0 0
        %2048 = vmatpush1.bf16.msra.mxu0 0
        %2049 = vmatprep.subr.bf16.mxu0 0
        %2050 = vmatpush1.bf16.msra.mxu0 0
        %2051 = vmatprep.subr.bf16.mxu0 0
        %2052 = vmatpush1.bf16.msra.mxu0 0
        %2053 = vmatprep.subr.bf16.mxu0 0
        %2054 = vmatpush1.bf16.msra.mxu0 0
        %2055 = vmatprep.subr.bf16.mxu0 0
        %2056 = vmatpush1.bf16.msra.mxu0 0
        %2057 = vmatprep.subr.bf16.mxu0 0
        %2058 = vmatpush1.bf16.msra.mxu0 0
        %2059 = vmatprep.subr.bf16.mxu0 0
        %2060 = vmatpush1.bf16.msra.mxu0 0
        %2061 = vmatprep.subr.bf16.mxu0 0
        %2062 = vmatpush1.bf16.msra.mxu0 0
        %2063 = vmatprep.subr.bf16.mxu0 0
        %2064 = vmatpush1.bf16.msra.mxu0 0
        %2065 = vmatprep.subr.bf16.mxu0 0
        %2066 = vmatpush1.bf16.msra.mxu0 0
        %2067 = vmatprep.subr.bf16.mxu0 0
        %2068 = vmatpush1.bf16.msra.mxu0 0
        %2069 = vmatprep.subr.bf16.mxu0 0
        %2070 = vmatpush1.bf16.msra.mxu0 0
        %2071 = vmatprep.subr.bf16.mxu0 0
        %2072 = vmatpush1.bf16.msra.mxu0 0
        %2073 = vmatprep.mubr.bf16.mxu0 0
        %2074 = vmatmul.mubr.bf16.gmra.mrb[0].mxu0 %v2039
        %v2075 = vpop.f32.mrb[0].mxu0
        %v2076 = vadd.f32 0.0, %v2075
        %v2077 = vpop.f32.mrb[0].mxu0
        %v2078 = vpop.f32.mrb[0].mxu0
        %v2079 = vadd.f32 0.0, %v2078
        %v2080 = vpop.f32.mrb[0].mxu0
        %2081 = vdwg.mxu0
        %2083 = vrot.lane.b32.xlu0 %v1652, 112
        %v2084 = vpop.permute.xlu0 %2083
        %v2087 = vsel %vm1653, %v2033, 0
        %2089 = vmatprep.subr.bf16.mxu0 0
        %2090 = vmatpush1.bf16.msra.mxu0 %v2084
        %2091 = vmatprep.subr.bf16.mxu0 0
        %2092 = vmatpush1.bf16.msra.mxu0 0
        %2093 = vmatprep.subr.bf16.mxu0 0
        %2094 = vmatpush1.bf16.msra.mxu0 0
        %2095 = vmatprep.subr.bf16.mxu0 0
        %2096 = vmatpush1.bf16.msra.mxu0 0
        %2097 = vmatprep.subr.bf16.mxu0 0
        %2098 = vmatpush1.bf16.msra.mxu0 0
        %2099 = vmatprep.subr.bf16.mxu0 0
        %2100 = vmatpush1.bf16.msra.mxu0 0
        %2101 = vmatprep.subr.bf16.mxu0 0
        %2102 = vmatpush1.bf16.msra.mxu0 0
        %2103 = vmatprep.subr.bf16.mxu0 0
        %2104 = vmatpush1.bf16.msra.mxu0 0
        %2105 = vmatprep.subr.bf16.mxu0 0
        %2106 = vmatpush1.bf16.msra.mxu0 0
        %2107 = vmatprep.subr.bf16.mxu0 0
        %2108 = vmatpush1.bf16.msra.mxu0 0
        %2109 = vmatprep.subr.bf16.mxu0 0
        %2110 = vmatpush1.bf16.msra.mxu0 0
        %2111 = vmatprep.subr.bf16.mxu0 0
        %2112 = vmatpush1.bf16.msra.mxu0 0
        %2113 = vmatprep.subr.bf16.mxu0 0
        %2114 = vmatpush1.bf16.msra.mxu0 0
        %2115 = vmatprep.subr.bf16.mxu0 0
        %2116 = vmatpush1.bf16.msra.mxu0 0
        %2117 = vmatprep.subr.bf16.mxu0 0
        %2118 = vmatpush1.bf16.msra.mxu0 0
        %2119 = vmatprep.subr.bf16.mxu0 0
        %2120 = vmatpush1.bf16.msra.mxu0 0
        %2121 = vmatprep.mubr.bf16.mxu0 0
        %2122 = vmatmul.mubr.bf16.gmra.mrb[0].mxu0 %v2087
        %v2123 = vpop.f32.mrb[0].mxu0
        %v2124 = vadd.f32 0.0, %v2123
        %v2125 = vpop.f32.mrb[0].mxu0
        %v2126 = vpop.f32.mrb[0].mxu0
        %v2127 = vadd.f32 0.0, %v2126
        %v2128 = vpop.f32.mrb[0].mxu0
        %2129 = vdwg.mxu0
        %2130 = vrot.lane.b32.xlu0 %v1647, 96
        %v2131 = vpop.permute.xlu0 %2130
        %2132 = vrot.lane.b32.xlu0 %v1649, 96
        %v2133 = vpop.permute.xlu0 %2132
        %v2135 = vsel %vm1653, %v2131, 0
        %v2138 = vsel %vm1653, %v2133, 0
        %2140 = vmatprep.subr.bf16.mxu0 0
        %2141 = vmatpush1.bf16.xpose.msra.mxu0 %v2138
        %2142 = vmatprep.subr.bf16.mxu0 0
        %2143 = vmatpush1.bf16.xpose.msra.mxu0 0
        %2144 = vmatprep.subr.bf16.mxu0 0
        %2145 = vmatpush1.bf16.xpose.msra.mxu0 0
        %2146 = vmatprep.subr.bf16.mxu0 0
        %2147 = vmatpush1.bf16.xpose.msra.mxu0 0
        %2148 = vmatprep.subr.bf16.mxu0 0
        %2149 = vmatpush1.bf16.xpose.msra.mxu0 0
        %2150 = vmatprep.subr.bf16.mxu0 0
        %2151 = vmatpush1.bf16.xpose.msra.mxu0 0
        %2152 = vmatprep.subr.bf16.mxu0 0
        %2153 = vmatpush1.bf16.xpose.msra.mxu0 0
        %2154 = vmatprep.subr.bf16.mxu0 0
        %2155 = vmatpush1.bf16.xpose.msra.mxu0 0
        %2156 = vmatprep.subr.bf16.mxu0 0
        %2157 = vmatpush1.bf16.xpose.msra.mxu0 0
        %2158 = vmatprep.subr.bf16.mxu0 0
        %2159 = vmatpush1.bf16.xpose.msra.mxu0 0
        %2160 = vmatprep.subr.bf16.mxu0 0
        %2161 = vmatpush1.bf16.xpose.msra.mxu0 0
        %2162 = vmatprep.subr.bf16.mxu0 0
        %2163 = vmatpush1.bf16.xpose.msra.mxu0 0
        %2164 = vmatprep.subr.bf16.mxu0 0
        %2165 = vmatpush1.bf16.xpose.msra.mxu0 0
        %2166 = vmatprep.subr.bf16.mxu0 0
        %2167 = vmatpush1.bf16.xpose.msra.mxu0 0
        %2168 = vmatprep.subr.bf16.mxu0 0
        %2169 = vmatpush1.bf16.xpose.msra.mxu0 0
        %2170 = vmatprep.subr.bf16.mxu0 0
        %2171 = vmatpush1.bf16.xpose.msra.mxu0 0
        %2172 = vmatprep.mubr.bf16.mxu0 0
        %2173 = vmatmul.mubr.bf16.gmra.mrb[0].mxu0 %v2135
        %v2174 = vpop.f32.mrb[0].mxu0
        %v2175 = vadd.f32 0.0, %v2174
        %v2176 = vpop.f32.mrb[0].mxu0
        %v2177 = vpop.f32.mrb[0].mxu0
        %v2178 = vadd.f32 0.0, %v2177
        %v2179 = vpop.f32.mrb[0].mxu0
        %2180 = vdwg.mxu0
        %2181 = vrot.lane.b32.xlu0 %v1648, 96
        %v2182 = vpop.permute.xlu0 %2181
        %2183 = vrot.lane.b32.xlu0 %v1650, 96
        %v2184 = vpop.permute.xlu0 %2183
        %v2186 = vsel %vm1653, %v2182, 0
        %v2189 = vsel %vm1653, %v2184, 0
        %2191 = vmatprep.subr.bf16.mxu0 0
        %2192 = vmatpush1.bf16.xpose.msra.mxu0 %v2189
        %2193 = vmatprep.subr.bf16.mxu0 0
        %2194 = vmatpush1.bf16.xpose.msra.mxu0 0
        %2195 = vmatprep.subr.bf16.mxu0 0
        %2196 = vmatpush1.bf16.xpose.msra.mxu0 0
        %2197 = vmatprep.subr.bf16.mxu0 0
        %2198 = vmatpush1.bf16.xpose.msra.mxu0 0
        %2199 = vmatprep.subr.bf16.mxu0 0
        %2200 = vmatpush1.bf16.xpose.msra.mxu0 0
        %2201 = vmatprep.subr.bf16.mxu0 0
        %2202 = vmatpush1.bf16.xpose.msra.mxu0 0
        %2203 = vmatprep.subr.bf16.mxu0 0
        %2204 = vmatpush1.bf16.xpose.msra.mxu0 0
        %2205 = vmatprep.subr.bf16.mxu0 0
        %2206 = vmatpush1.bf16.xpose.msra.mxu0 0
        %2207 = vmatprep.subr.bf16.mxu0 0
        %2208 = vmatpush1.bf16.xpose.msra.mxu0 0
        %2209 = vmatprep.subr.bf16.mxu0 0
        %2210 = vmatpush1.bf16.xpose.msra.mxu0 0
        %2211 = vmatprep.subr.bf16.mxu0 0
        %2212 = vmatpush1.bf16.xpose.msra.mxu0 0
        %2213 = vmatprep.subr.bf16.mxu0 0
        %2214 = vmatpush1.bf16.xpose.msra.mxu0 0
        %2215 = vmatprep.subr.bf16.mxu0 0
        %2216 = vmatpush1.bf16.xpose.msra.mxu0 0
        %2217 = vmatprep.subr.bf16.mxu0 0
        %2218 = vmatpush1.bf16.xpose.msra.mxu0 0
        %2219 = vmatprep.subr.bf16.mxu0 0
        %2220 = vmatpush1.bf16.xpose.msra.mxu0 0
        %2221 = vmatprep.subr.bf16.mxu0 0
        %2222 = vmatpush1.bf16.xpose.msra.mxu0 0
        %2223 = vmatprep.mubr.bf16.mxu0 0
        %2224 = vmatmul.mubr.bf16.gmra.mrb[0].mxu0 %v2186
        %v2225 = vpop.f32.mrb[0].mxu0
        %v2226 = vadd.f32 0.0, %v2225
        %v2227 = vpop.f32.mrb[0].mxu0
        %v2228 = vpop.f32.mrb[0].mxu0
        %v2229 = vadd.f32 0.0, %v2228
        %v2230 = vpop.f32.mrb[0].mxu0
        %2231 = vdwg.mxu0
        %v2232 = vsel %vm1653, %v2175, -inf
        %2233 = vmax.xlane.f32.xlu0 %v2232
        %v2234 = vpop.xlane.xlu0 %2233
        %v2235 = vsel %vm1653, %v2178, -inf
        %2236 = vmax.xlane.f32.xlu0 %v2235
        %v2237 = vpop.xlane.xlu0 %2236
        %v2238 = vsel %vm1653, %v2226, -inf
        %2239 = vmax.xlane.f32.xlu0 %v2238
        %v2240 = vpop.xlane.xlu0 %2239
        %v2241 = vsel %vm1653, %v2229, -inf
        %2242 = vmax.xlane.f32.xlu0 %v2241
        %v2243 = vpop.xlane.xlu0 %2242
        %v2244 = vsub.f32 %v2175, %v2234
        %v2245 = vsub.f32 %v2178, %v2237
        %v2246 = vsub.f32 %v2226, %v2240
        %v2247 = vsub.f32 %v2229, %v2243
        %v2248 = vmul.f32 %v2244, 1.442695
        %v2249 = vpow.pop %v2248
        %v2250 = vmul.f32 %v2245, 1.442695
        %v2251 = vpow.pop %v2250
        %v2252 = vmul.f32 %v2246, 1.442695
        %v2253 = vpow.pop %v2252
        %v2254 = vmul.f32 %v2247, 1.442695
        %v2255 = vpow.pop %v2254
        %v2256 = vsel %vm1653, %v2249, 0.0
        %2257 = vadd.xlane.f32.xlu0 %v2256
        %v2258 = vpop.xlane.xlu0 %2257
        %v2259 = vsel %vm1653, %v2251, 0.0
        %2260 = vadd.xlane.f32.xlu0 %v2259
        %v2261 = vpop.xlane.xlu0 %2260
        %v2262 = vsel %vm1653, %v2253, 0.0
        %2263 = vadd.xlane.f32.xlu0 %v2262
        %v2264 = vpop.xlane.xlu0 %2263
        %v2265 = vsel %vm1653, %v2255, 0.0
        %2266 = vadd.xlane.f32.xlu0 %v2265
        %v2267 = vpop.xlane.xlu0 %2266
        %v2268 = vrcp.pop %v2258
        %v2269 = vrcp.pop %v2261
        %v2270 = vrcp.pop %v2264
        %v2271 = vrcp.pop %v2267
        %v2272 = vmul.f32 %v2249, %v2268
        %v2273 = vmul.f32 %v2251, %v2269
        %v2274 = vmul.f32 %v2253, %v2270
        %v2275 = vmul.f32 %v2255, %v2271
        %v2276 = vpack.c.bf16 %v2273, %v2272
        %v2277 = vpack.c.bf16 %v2275, %v2274
        %2278 = vrot.lane.b32.xlu0 %v1651, 96
        %v2279 = vpop.permute.xlu0 %2278
        %v2282 = vsel %vm1653, %v2276, 0
        %2284 = vmatprep.subr.bf16.mxu0 0
        %2285 = vmatpush1.bf16.msra.mxu0 %v2279
        %2286 = vmatprep.subr.bf16.mxu0 0
        %2287 = vmatpush1.bf16.msra.mxu0 0
        %2288 = vmatprep.subr.bf16.mxu0 0
        %2289 = vmatpush1.bf16.msra.mxu0 0
        %2290 = vmatprep.subr.bf16.mxu0 0
        %2291 = vmatpush1.bf16.msra.mxu0 0
        %2292 = vmatprep.subr.bf16.mxu0 0
        %2293 = vmatpush1.bf16.msra.mxu0 0
        %2294 = vmatprep.subr.bf16.mxu0 0
        %2295 = vmatpush1.bf16.msra.mxu0 0
        %2296 = vmatprep.subr.bf16.mxu0 0
        %2297 = vmatpush1.bf16.msra.mxu0 0
        %2298 = vmatprep.subr.bf16.mxu0 0
        %2299 = vmatpush1.bf16.msra.mxu0 0
        %2300 = vmatprep.subr.bf16.mxu0 0
        %2301 = vmatpush1.bf16.msra.mxu0 0
        %2302 = vmatprep.subr.bf16.mxu0 0
        %2303 = vmatpush1.bf16.msra.mxu0 0
        %2304 = vmatprep.subr.bf16.mxu0 0
        %2305 = vmatpush1.bf16.msra.mxu0 0
        %2306 = vmatprep.subr.bf16.mxu0 0
        %2307 = vmatpush1.bf16.msra.mxu0 0
        %2308 = vmatprep.subr.bf16.mxu0 0
        %2309 = vmatpush1.bf16.msra.mxu0 0
        %2310 = vmatprep.subr.bf16.mxu0 0
        %2311 = vmatpush1.bf16.msra.mxu0 0
        %2312 = vmatprep.subr.bf16.mxu0 0
        %2313 = vmatpush1.bf16.msra.mxu0 0
        %2314 = vmatprep.subr.bf16.mxu0 0
        %2315 = vmatpush1.bf16.msra.mxu0 0
        %2316 = vmatprep.mubr.bf16.mxu0 0
        %2317 = vmatmul.mubr.bf16.gmra.mrb[0].mxu0 %v2282
        %v2318 = vpop.f32.mrb[0].mxu0
        %v2319 = vadd.f32 0.0, %v2318
        %v2320 = vpop.f32.mrb[0].mxu0
        %v2321 = vpop.f32.mrb[0].mxu0
        %v2322 = vadd.f32 0.0, %v2321
        %v2323 = vpop.f32.mrb[0].mxu0
        %2324 = vdwg.mxu0
        %2325 = vrot.lane.b32.xlu0 %v1652, 96
        %v2326 = vpop.permute.xlu0 %2325
        %v2329 = vsel %vm1653, %v2277, 0
        %2331 = vmatprep.subr.bf16.mxu0 0
        %2332 = vmatpush1.bf16.msra.mxu0 %v2326
        %2333 = vmatprep.subr.bf16.mxu0 0
        %2334 = vmatpush1.bf16.msra.mxu0 0
        %2335 = vmatprep.subr.bf16.mxu0 0
        %2336 = vmatpush1.bf16.msra.mxu0 0
        %2337 = vmatprep.subr.bf16.mxu0 0
        %2338 = vmatpush1.bf16.msra.mxu0 0
        %2339 = vmatprep.subr.bf16.mxu0 0
        %2340 = vmatpush1.bf16.msra.mxu0 0
        %2341 = vmatprep.subr.bf16.mxu0 0
        %2342 = vmatpush1.bf16.msra.mxu0 0
        %2343 = vmatprep.subr.bf16.mxu0 0
        %2344 = vmatpush1.bf16.msra.mxu0 0
        %2345 = vmatprep.subr.bf16.mxu0 0
        %2346 = vmatpush1.bf16.msra.mxu0 0
        %2347 = vmatprep.subr.bf16.mxu0 0
        %2348 = vmatpush1.bf16.msra.mxu0 0
        %2349 = vmatprep.subr.bf16.mxu0 0
        %2350 = vmatpush1.bf16.msra.mxu0 0
        %2351 = vmatprep.subr.bf16.mxu0 0
        %2352 = vmatpush1.bf16.msra.mxu0 0
        %2353 = vmatprep.subr.bf16.mxu0 0
        %2354 = vmatpush1.bf16.msra.mxu0 0
        %2355 = vmatprep.subr.bf16.mxu0 0
        %2356 = vmatpush1.bf16.msra.mxu0 0
        %2357 = vmatprep.subr.bf16.mxu0 0
        %2358 = vmatpush1.bf16.msra.mxu0 0
        %2359 = vmatprep.subr.bf16.mxu0 0
        %2360 = vmatpush1.bf16.msra.mxu0 0
        %2361 = vmatprep.subr.bf16.mxu0 0
        %2362 = vmatpush1.bf16.msra.mxu0 0
        %2363 = vmatprep.mubr.bf16.mxu0 0
        %2364 = vmatmul.mubr.bf16.gmra.mrb[0].mxu0 %v2329
        %v2365 = vpop.f32.mrb[0].mxu0
        %v2366 = vadd.f32 0.0, %v2365
        %v2367 = vpop.f32.mrb[0].mxu0
        %v2368 = vpop.f32.mrb[0].mxu0
        %v2369 = vadd.f32 0.0, %v2368
        %v2370 = vpop.f32.mrb[0].mxu0
        %2371 = vdwg.mxu0
        %2372 = vrot.lane.b32.xlu0 %v1647, 80
        %v2373 = vpop.permute.xlu0 %2372
        %2374 = vrot.lane.b32.xlu0 %v1649, 80
        %v2375 = vpop.permute.xlu0 %2374
        %v2377 = vsel %vm1653, %v2373, 0
        %v2380 = vsel %vm1653, %v2375, 0
        %2382 = vmatprep.subr.bf16.mxu0 0
        %2383 = vmatpush1.bf16.xpose.msra.mxu0 %v2380
        %2384 = vmatprep.subr.bf16.mxu0 0
        %2385 = vmatpush1.bf16.xpose.msra.mxu0 0
        %2386 = vmatprep.subr.bf16.mxu0 0
        %2387 = vmatpush1.bf16.xpose.msra.mxu0 0
        %2388 = vmatprep.subr.bf16.mxu0 0
        %2389 = vmatpush1.bf16.xpose.msra.mxu0 0
        %2390 = vmatprep.subr.bf16.mxu0 0
        %2391 = vmatpush1.bf16.xpose.msra.mxu0 0
        %2392 = vmatprep.subr.bf16.mxu0 0
        %2393 = vmatpush1.bf16.xpose.msra.mxu0 0
        %2394 = vmatprep.subr.bf16.mxu0 0
        %2395 = vmatpush1.bf16.xpose.msra.mxu0 0
        %2396 = vmatprep.subr.bf16.mxu0 0
        %2397 = vmatpush1.bf16.xpose.msra.mxu0 0
        %2398 = vmatprep.subr.bf16.mxu0 0
        %2399 = vmatpush1.bf16.xpose.msra.mxu0 0
        %2400 = vmatprep.subr.bf16.mxu0 0
        %2401 = vmatpush1.bf16.xpose.msra.mxu0 0
        %2402 = vmatprep.subr.bf16.mxu0 0
        %2403 = vmatpush1.bf16.xpose.msra.mxu0 0
        %2404 = vmatprep.subr.bf16.mxu0 0
        %2405 = vmatpush1.bf16.xpose.msra.mxu0 0
        %2406 = vmatprep.subr.bf16.mxu0 0
        %2407 = vmatpush1.bf16.xpose.msra.mxu0 0
        %2408 = vmatprep.subr.bf16.mxu0 0
        %2409 = vmatpush1.bf16.xpose.msra.mxu0 0
        %2410 = vmatprep.subr.bf16.mxu0 0
        %2411 = vmatpush1.bf16.xpose.msra.mxu0 0
        %2412 = vmatprep.subr.bf16.mxu0 0
        %2413 = vmatpush1.bf16.xpose.msra.mxu0 0
        %2414 = vmatprep.mubr.bf16.mxu0 0
        %2415 = vmatmul.mubr.bf16.gmra.mrb[0].mxu0 %v2377
        %v2416 = vpop.f32.mrb[0].mxu0
        %v2417 = vadd.f32 0.0, %v2416
        %v2418 = vpop.f32.mrb[0].mxu0
        %v2419 = vpop.f32.mrb[0].mxu0
        %v2420 = vadd.f32 0.0, %v2419
        %v2421 = vpop.f32.mrb[0].mxu0
        %2422 = vdwg.mxu0
        %2423 = vrot.lane.b32.xlu0 %v1648, 80
        %v2424 = vpop.permute.xlu0 %2423
        %2425 = vrot.lane.b32.xlu0 %v1650, 80
        %v2426 = vpop.permute.xlu0 %2425
        %v2428 = vsel %vm1653, %v2424, 0
        %v2431 = vsel %vm1653, %v2426, 0
        %2433 = vmatprep.subr.bf16.mxu0 0
        %2434 = vmatpush1.bf16.xpose.msra.mxu0 %v2431
        %2435 = vmatprep.subr.bf16.mxu0 0
        %2436 = vmatpush1.bf16.xpose.msra.mxu0 0
        %2437 = vmatprep.subr.bf16.mxu0 0
        %2438 = vmatpush1.bf16.xpose.msra.mxu0 0
        %2439 = vmatprep.subr.bf16.mxu0 0
        %2440 = vmatpush1.bf16.xpose.msra.mxu0 0
        %2441 = vmatprep.subr.bf16.mxu0 0
        %2442 = vmatpush1.bf16.xpose.msra.mxu0 0
        %2443 = vmatprep.subr.bf16.mxu0 0
        %2444 = vmatpush1.bf16.xpose.msra.mxu0 0
        %2445 = vmatprep.subr.bf16.mxu0 0
        %2446 = vmatpush1.bf16.xpose.msra.mxu0 0
        %2447 = vmatprep.subr.bf16.mxu0 0
        %2448 = vmatpush1.bf16.xpose.msra.mxu0 0
        %2449 = vmatprep.subr.bf16.mxu0 0
        %2450 = vmatpush1.bf16.xpose.msra.mxu0 0
        %2451 = vmatprep.subr.bf16.mxu0 0
        %2452 = vmatpush1.bf16.xpose.msra.mxu0 0
        %2453 = vmatprep.subr.bf16.mxu0 0
        %2454 = vmatpush1.bf16.xpose.msra.mxu0 0
        %2455 = vmatprep.subr.bf16.mxu0 0
        %2456 = vmatpush1.bf16.xpose.msra.mxu0 0
        %2457 = vmatprep.subr.bf16.mxu0 0
        %2458 = vmatpush1.bf16.xpose.msra.mxu0 0
        %2459 = vmatprep.subr.bf16.mxu0 0
        %2460 = vmatpush1.bf16.xpose.msra.mxu0 0
        %2461 = vmatprep.subr.bf16.mxu0 0
        %2462 = vmatpush1.bf16.xpose.msra.mxu0 0
        %2463 = vmatprep.subr.bf16.mxu0 0
        %2464 = vmatpush1.bf16.xpose.msra.mxu0 0
        %2465 = vmatprep.mubr.bf16.mxu0 0
        %2466 = vmatmul.mubr.bf16.gmra.mrb[0].mxu0 %v2428
        %v2467 = vpop.f32.mrb[0].mxu0
        %v2468 = vadd.f32 0.0, %v2467
        %v2469 = vpop.f32.mrb[0].mxu0
        %v2470 = vpop.f32.mrb[0].mxu0
        %v2471 = vadd.f32 0.0, %v2470
        %v2472 = vpop.f32.mrb[0].mxu0
        %2473 = vdwg.mxu0
        %v2474 = vsel %vm1653, %v2417, -inf
        %2475 = vmax.xlane.f32.xlu0 %v2474
        %v2476 = vpop.xlane.xlu0 %2475
        %v2477 = vsel %vm1653, %v2420, -inf
        %2478 = vmax.xlane.f32.xlu0 %v2477
        %v2479 = vpop.xlane.xlu0 %2478
        %v2480 = vsel %vm1653, %v2468, -inf
        %2481 = vmax.xlane.f32.xlu0 %v2480
        %v2482 = vpop.xlane.xlu0 %2481
        %v2483 = vsel %vm1653, %v2471, -inf
        %2484 = vmax.xlane.f32.xlu0 %v2483
        %v2485 = vpop.xlane.xlu0 %2484
        %v2486 = vsub.f32 %v2417, %v2476
        %v2487 = vsub.f32 %v2420, %v2479
        %v2488 = vsub.f32 %v2468, %v2482
        %v2489 = vsub.f32 %v2471, %v2485
        %v2490 = vmul.f32 %v2486, 1.442695
        %v2491 = vpow.pop %v2490
        %v2492 = vmul.f32 %v2487, 1.442695
        %v2493 = vpow.pop %v2492
        %v2494 = vmul.f32 %v2488, 1.442695
        %v2495 = vpow.pop %v2494
        %v2496 = vmul.f32 %v2489, 1.442695
        %v2497 = vpow.pop %v2496
        %v2498 = vsel %vm1653, %v2491, 0.0
        %2499 = vadd.xlane.f32.xlu0 %v2498
        %v2500 = vpop.xlane.xlu0 %2499
        %v2501 = vsel %vm1653, %v2493, 0.0
        %2502 = vadd.xlane.f32.xlu0 %v2501
        %v2503 = vpop.xlane.xlu0 %2502
        %v2504 = vsel %vm1653, %v2495, 0.0
        %2505 = vadd.xlane.f32.xlu0 %v2504
        %v2506 = vpop.xlane.xlu0 %2505
        %v2507 = vsel %vm1653, %v2497, 0.0
        %2508 = vadd.xlane.f32.xlu0 %v2507
        %v2509 = vpop.xlane.xlu0 %2508
        %v2510 = vrcp.pop %v2500
        %v2511 = vrcp.pop %v2503
        %v2512 = vrcp.pop %v2506
        %v2513 = vrcp.pop %v2509
        %v2514 = vmul.f32 %v2491, %v2510
        %v2515 = vmul.f32 %v2493, %v2511
        %v2516 = vmul.f32 %v2495, %v2512
        %v2517 = vmul.f32 %v2497, %v2513
        %v2518 = vpack.c.bf16 %v2515, %v2514
        %v2519 = vpack.c.bf16 %v2517, %v2516
        %2520 = vrot.lane.b32.xlu0 %v1651, 80
        %v2521 = vpop.permute.xlu0 %2520
        %v2524 = vsel %vm1653, %v2518, 0
        %2526 = vmatprep.subr.bf16.mxu0 0
        %2527 = vmatpush1.bf16.msra.mxu0 %v2521
        %2528 = vmatprep.subr.bf16.mxu0 0
        %2529 = vmatpush1.bf16.msra.mxu0 0
        %2530 = vmatprep.subr.bf16.mxu0 0
        %2531 = vmatpush1.bf16.msra.mxu0 0
        %2532 = vmatprep.subr.bf16.mxu0 0
        %2533 = vmatpush1.bf16.msra.mxu0 0
        %2534 = vmatprep.subr.bf16.mxu0 0
        %2535 = vmatpush1.bf16.msra.mxu0 0
        %2536 = vmatprep.subr.bf16.mxu0 0
        %2537 = vmatpush1.bf16.msra.mxu0 0
        %2538 = vmatprep.subr.bf16.mxu0 0
        %2539 = vmatpush1.bf16.msra.mxu0 0
        %2540 = vmatprep.subr.bf16.mxu0 0
        %2541 = vmatpush1.bf16.msra.mxu0 0
        %2542 = vmatprep.subr.bf16.mxu0 0
        %2543 = vmatpush1.bf16.msra.mxu0 0
        %2544 = vmatprep.subr.bf16.mxu0 0
        %2545 = vmatpush1.bf16.msra.mxu0 0
        %2546 = vmatprep.subr.bf16.mxu0 0
        %2547 = vmatpush1.bf16.msra.mxu0 0
        %2548 = vmatprep.subr.bf16.mxu0 0
        %2549 = vmatpush1.bf16.msra.mxu0 0
        %2550 = vmatprep.subr.bf16.mxu0 0
        %2551 = vmatpush1.bf16.msra.mxu0 0
        %2552 = vmatprep.subr.bf16.mxu0 0
        %2553 = vmatpush1.bf16.msra.mxu0 0
        %2554 = vmatprep.subr.bf16.mxu0 0
        %2555 = vmatpush1.bf16.msra.mxu0 0
        %2556 = vmatprep.subr.bf16.mxu0 0
        %2557 = vmatpush1.bf16.msra.mxu0 0
        %2558 = vmatprep.mubr.bf16.mxu0 0
        %2559 = vmatmul.mubr.bf16.gmra.mrb[0].mxu0 %v2524
        %v2560 = vpop.f32.mrb[0].mxu0
        %v2561 = vadd.f32 0.0, %v2560
        %v2562 = vpop.f32.mrb[0].mxu0
        %v2563 = vpop.f32.mrb[0].mxu0
        %v2564 = vadd.f32 0.0, %v2563
        %v2565 = vpop.f32.mrb[0].mxu0
        %2566 = vdwg.mxu0
        %2567 = vrot.lane.b32.xlu0 %v1652, 80
        %v2568 = vpop.permute.xlu0 %2567
        %v2571 = vsel %vm1653, %v2519, 0
        %2573 = vmatprep.subr.bf16.mxu0 0
        %2574 = vmatpush1.bf16.msra.mxu0 %v2568
        %2575 = vmatprep.subr.bf16.mxu0 0
        %2576 = vmatpush1.bf16.msra.mxu0 0
        %2577 = vmatprep.subr.bf16.mxu0 0
        %2578 = vmatpush1.bf16.msra.mxu0 0
        %2579 = vmatprep.subr.bf16.mxu0 0
        %2580 = vmatpush1.bf16.msra.mxu0 0
        %2581 = vmatprep.subr.bf16.mxu0 0
        %2582 = vmatpush1.bf16.msra.mxu0 0
        %2583 = vmatprep.subr.bf16.mxu0 0
        %2584 = vmatpush1.bf16.msra.mxu0 0
        %2585 = vmatprep.subr.bf16.mxu0 0
        %2586 = vmatpush1.bf16.msra.mxu0 0
        %2587 = vmatprep.subr.bf16.mxu0 0
        %2588 = vmatpush1.bf16.msra.mxu0 0
        %2589 = vmatprep.subr.bf16.mxu0 0
        %2590 = vmatpush1.bf16.msra.mxu0 0
        %2591 = vmatprep.subr.bf16.mxu0 0
        %2592 = vmatpush1.bf16.msra.mxu0 0
        %2593 = vmatprep.subr.bf16.mxu0 0
        %2594 = vmatpush1.bf16.msra.mxu0 0
        %2595 = vmatprep.subr.bf16.mxu0 0
        %2596 = vmatpush1.bf16.msra.mxu0 0
        %2597 = vmatprep.subr.bf16.mxu0 0
        %2598 = vmatpush1.bf16.msra.mxu0 0
        %2599 = vmatprep.subr.bf16.mxu0 0
        %2600 = vmatpush1.bf16.msra.mxu0 0
        %2601 = vmatprep.subr.bf16.mxu0 0
        %2602 = vmatpush1.bf16.msra.mxu0 0
        %2603 = vmatprep.subr.bf16.mxu0 0
        %2604 = vmatpush1.bf16.msra.mxu0 0
        %2605 = vmatprep.mubr.bf16.mxu0 0
        %2606 = vmatmul.mubr.bf16.gmra.mrb[0].mxu0 %v2571
        %v2607 = vpop.f32.mrb[0].mxu0
        %v2608 = vadd.f32 0.0, %v2607
        %v2609 = vpop.f32.mrb[0].mxu0
        %v2610 = vpop.f32.mrb[0].mxu0
        %v2611 = vadd.f32 0.0, %v2610
        %v2612 = vpop.f32.mrb[0].mxu0
        %2613 = vdwg.mxu0
        %2614 = vrot.lane.b32.xlu0 %v1647, 64
        %v2615 = vpop.permute.xlu0 %2614
        %2616 = vrot.lane.b32.xlu0 %v1649, 64
        %v2617 = vpop.permute.xlu0 %2616
        %v2619 = vsel %vm1653, %v2615, 0
        %v2622 = vsel %vm1653, %v2617, 0
        %2624 = vmatprep.subr.bf16.mxu0 0
        %2625 = vmatpush1.bf16.xpose.msra.mxu0 %v2622
        %2626 = vmatprep.subr.bf16.mxu0 0
        %2627 = vmatpush1.bf16.xpose.msra.mxu0 0
        %2628 = vmatprep.subr.bf16.mxu0 0
        %2629 = vmatpush1.bf16.xpose.msra.mxu0 0
        %2630 = vmatprep.subr.bf16.mxu0 0
        %2631 = vmatpush1.bf16.xpose.msra.mxu0 0
        %2632 = vmatprep.subr.bf16.mxu0 0
        %2633 = vmatpush1.bf16.xpose.msra.mxu0 0
        %2634 = vmatprep.subr.bf16.mxu0 0
        %2635 = vmatpush1.bf16.xpose.msra.mxu0 0
        %2636 = vmatprep.subr.bf16.mxu0 0
        %2637 = vmatpush1.bf16.xpose.msra.mxu0 0
        %2638 = vmatprep.subr.bf16.mxu0 0
        %2639 = vmatpush1.bf16.xpose.msra.mxu0 0
        %2640 = vmatprep.subr.bf16.mxu0 0
        %2641 = vmatpush1.bf16.xpose.msra.mxu0 0
        %2642 = vmatprep.subr.bf16.mxu0 0
        %2643 = vmatpush1.bf16.xpose.msra.mxu0 0
        %2644 = vmatprep.subr.bf16.mxu0 0
        %2645 = vmatpush1.bf16.xpose.msra.mxu0 0
        %2646 = vmatprep.subr.bf16.mxu0 0
        %2647 = vmatpush1.bf16.xpose.msra.mxu0 0
        %2648 = vmatprep.subr.bf16.mxu0 0
        %2649 = vmatpush1.bf16.xpose.msra.mxu0 0
        %2650 = vmatprep.subr.bf16.mxu0 0
        %2651 = vmatpush1.bf16.xpose.msra.mxu0 0
        %2652 = vmatprep.subr.bf16.mxu0 0
        %2653 = vmatpush1.bf16.xpose.msra.mxu0 0
        %2654 = vmatprep.subr.bf16.mxu0 0
        %2655 = vmatpush1.bf16.xpose.msra.mxu0 0
        %2656 = vmatprep.mubr.bf16.mxu0 0
        %2657 = vmatmul.mubr.bf16.gmra.mrb[0].mxu0 %v2619
        %v2658 = vpop.f32.mrb[0].mxu0
        %v2659 = vadd.f32 0.0, %v2658
        %v2660 = vpop.f32.mrb[0].mxu0
        %v2661 = vpop.f32.mrb[0].mxu0
        %v2662 = vadd.f32 0.0, %v2661
        %v2663 = vpop.f32.mrb[0].mxu0
        %2664 = vdwg.mxu0
        %2665 = vrot.lane.b32.xlu0 %v1648, 64
        %v2666 = vpop.permute.xlu0 %2665
        %2667 = vrot.lane.b32.xlu0 %v1650, 64
        %v2668 = vpop.permute.xlu0 %2667
        %v2670 = vsel %vm1653, %v2666, 0
        %v2673 = vsel %vm1653, %v2668, 0
        %2675 = vmatprep.subr.bf16.mxu0 0
        %2676 = vmatpush1.bf16.xpose.msra.mxu0 %v2673
        %2677 = vmatprep.subr.bf16.mxu0 0
        %2678 = vmatpush1.bf16.xpose.msra.mxu0 0
        %2679 = vmatprep.subr.bf16.mxu0 0
        %2680 = vmatpush1.bf16.xpose.msra.mxu0 0
        %2681 = vmatprep.subr.bf16.mxu0 0
        %2682 = vmatpush1.bf16.xpose.msra.mxu0 0
        %2683 = vmatprep.subr.bf16.mxu0 0
        %2684 = vmatpush1.bf16.xpose.msra.mxu0 0
        %2685 = vmatprep.subr.bf16.mxu0 0
        %2686 = vmatpush1.bf16.xpose.msra.mxu0 0
        %2687 = vmatprep.subr.bf16.mxu0 0
        %2688 = vmatpush1.bf16.xpose.msra.mxu0 0
        %2689 = vmatprep.subr.bf16.mxu0 0
        %2690 = vmatpush1.bf16.xpose.msra.mxu0 0
        %2691 = vmatprep.subr.bf16.mxu0 0
        %2692 = vmatpush1.bf16.xpose.msra.mxu0 0
        %2693 = vmatprep.subr.bf16.mxu0 0
        %2694 = vmatpush1.bf16.xpose.msra.mxu0 0
        %2695 = vmatprep.subr.bf16.mxu0 0
        %2696 = vmatpush1.bf16.xpose.msra.mxu0 0
        %2697 = vmatprep.subr.bf16.mxu0 0
        %2698 = vmatpush1.bf16.xpose.msra.mxu0 0
        %2699 = vmatprep.subr.bf16.mxu0 0
        %2700 = vmatpush1.bf16.xpose.msra.mxu0 0
        %2701 = vmatprep.subr.bf16.mxu0 0
        %2702 = vmatpush1.bf16.xpose.msra.mxu0 0
        %2703 = vmatprep.subr.bf16.mxu0 0
        %2704 = vmatpush1.bf16.xpose.msra.mxu0 0
        %2705 = vmatprep.subr.bf16.mxu0 0
        %2706 = vmatpush1.bf16.xpose.msra.mxu0 0
        %2707 = vmatprep.mubr.bf16.mxu0 0
        %2708 = vmatmul.mubr.bf16.gmra.mrb[0].mxu0 %v2670
        %v2709 = vpop.f32.mrb[0].mxu0
        %v2710 = vadd.f32 0.0, %v2709
        %v2711 = vpop.f32.mrb[0].mxu0
        %v2712 = vpop.f32.mrb[0].mxu0
        %v2713 = vadd.f32 0.0, %v2712
        %v2714 = vpop.f32.mrb[0].mxu0
        %2715 = vdwg.mxu0
        %v2716 = vsel %vm1653, %v2659, -inf
        %2717 = vmax.xlane.f32.xlu0 %v2716
        %v2718 = vpop.xlane.xlu0 %2717
        %v2719 = vsel %vm1653, %v2662, -inf
        %2720 = vmax.xlane.f32.xlu0 %v2719
        %v2721 = vpop.xlane.xlu0 %2720
        %v2722 = vsel %vm1653, %v2710, -inf
        %2723 = vmax.xlane.f32.xlu0 %v2722
        %v2724 = vpop.xlane.xlu0 %2723
        %v2725 = vsel %vm1653, %v2713, -inf
        %2726 = vmax.xlane.f32.xlu0 %v2725
        %v2727 = vpop.xlane.xlu0 %2726
        %v2728 = vsub.f32 %v2659, %v2718
        %v2729 = vsub.f32 %v2662, %v2721
        %v2730 = vsub.f32 %v2710, %v2724
        %v2731 = vsub.f32 %v2713, %v2727
        %v2732 = vmul.f32 %v2728, 1.442695
        %v2733 = vpow.pop %v2732
        %v2734 = vmul.f32 %v2729, 1.442695
        %v2735 = vpow.pop %v2734
        %v2736 = vmul.f32 %v2730, 1.442695
        %v2737 = vpow.pop %v2736
        %v2738 = vmul.f32 %v2731, 1.442695
        %v2739 = vpow.pop %v2738
        %v2740 = vsel %vm1653, %v2733, 0.0
        %2741 = vadd.xlane.f32.xlu0 %v2740
        %v2742 = vpop.xlane.xlu0 %2741
        %v2743 = vsel %vm1653, %v2735, 0.0
        %2744 = vadd.xlane.f32.xlu0 %v2743
        %v2745 = vpop.xlane.xlu0 %2744
        %v2746 = vsel %vm1653, %v2737, 0.0
        %2747 = vadd.xlane.f32.xlu0 %v2746
        %v2748 = vpop.xlane.xlu0 %2747
        %v2749 = vsel %vm1653, %v2739, 0.0
        %2750 = vadd.xlane.f32.xlu0 %v2749
        %v2751 = vpop.xlane.xlu0 %2750
        %v2752 = vrcp.pop %v2742
        %v2753 = vrcp.pop %v2745
        %v2754 = vrcp.pop %v2748
        %v2755 = vrcp.pop %v2751
        %v2756 = vmul.f32 %v2733, %v2752
        %v2757 = vmul.f32 %v2735, %v2753
        %v2758 = vmul.f32 %v2737, %v2754
        %v2759 = vmul.f32 %v2739, %v2755
        %v2760 = vpack.c.bf16 %v2757, %v2756
        %v2761 = vpack.c.bf16 %v2759, %v2758
        %2762 = vrot.lane.b32.xlu0 %v1651, 64
        %v2763 = vpop.permute.xlu0 %2762
        %v2766 = vsel %vm1653, %v2760, 0
        %2768 = vmatprep.subr.bf16.mxu0 0
        %2769 = vmatpush1.bf16.msra.mxu0 %v2763
        %2770 = vmatprep.subr.bf16.mxu0 0
        %2771 = vmatpush1.bf16.msra.mxu0 0
        %2772 = vmatprep.subr.bf16.mxu0 0
        %2773 = vmatpush1.bf16.msra.mxu0 0
        %2774 = vmatprep.subr.bf16.mxu0 0
        %2775 = vmatpush1.bf16.msra.mxu0 0
        %2776 = vmatprep.subr.bf16.mxu0 0
        %2777 = vmatpush1.bf16.msra.mxu0 0
        %2778 = vmatprep.subr.bf16.mxu0 0
        %2779 = vmatpush1.bf16.msra.mxu0 0
        %2780 = vmatprep.subr.bf16.mxu0 0
        %2781 = vmatpush1.bf16.msra.mxu0 0
        %2782 = vmatprep.subr.bf16.mxu0 0
        %2783 = vmatpush1.bf16.msra.mxu0 0
        %2784 = vmatprep.subr.bf16.mxu0 0
        %2785 = vmatpush1.bf16.msra.mxu0 0
        %2786 = vmatprep.subr.bf16.mxu0 0
        %2787 = vmatpush1.bf16.msra.mxu0 0
        %2788 = vmatprep.subr.bf16.mxu0 0
        %2789 = vmatpush1.bf16.msra.mxu0 0
        %2790 = vmatprep.subr.bf16.mxu0 0
        %2791 = vmatpush1.bf16.msra.mxu0 0
        %2792 = vmatprep.subr.bf16.mxu0 0
        %2793 = vmatpush1.bf16.msra.mxu0 0
        %2794 = vmatprep.subr.bf16.mxu0 0
        %2795 = vmatpush1.bf16.msra.mxu0 0
        %2796 = vmatprep.subr.bf16.mxu0 0
        %2797 = vmatpush1.bf16.msra.mxu0 0
        %2798 = vmatprep.subr.bf16.mxu0 0
        %2799 = vmatpush1.bf16.msra.mxu0 0
        %2800 = vmatprep.mubr.bf16.mxu0 0
        %2801 = vmatmul.mubr.bf16.gmra.mrb[0].mxu0 %v2766
        %v2802 = vpop.f32.mrb[0].mxu0
        %v2803 = vadd.f32 0.0, %v2802
        %v2804 = vpop.f32.mrb[0].mxu0
        %v2805 = vpop.f32.mrb[0].mxu0
        %v2806 = vadd.f32 0.0, %v2805
        %v2807 = vpop.f32.mrb[0].mxu0
        %2808 = vdwg.mxu0
        %2809 = vrot.lane.b32.xlu0 %v1652, 64
        %v2810 = vpop.permute.xlu0 %2809
        %v2813 = vsel %vm1653, %v2761, 0
        %2815 = vmatprep.subr.bf16.mxu0 0
        %2816 = vmatpush1.bf16.msra.mxu0 %v2810
        %2817 = vmatprep.subr.bf16.mxu0 0
        %2818 = vmatpush1.bf16.msra.mxu0 0
        %2819 = vmatprep.subr.bf16.mxu0 0
        %2820 = vmatpush1.bf16.msra.mxu0 0
        %2821 = vmatprep.subr.bf16.mxu0 0
        %2822 = vmatpush1.bf16.msra.mxu0 0
        %2823 = vmatprep.subr.bf16.mxu0 0
        %2824 = vmatpush1.bf16.msra.mxu0 0
        %2825 = vmatprep.subr.bf16.mxu0 0
        %2826 = vmatpush1.bf16.msra.mxu0 0
        %2827 = vmatprep.subr.bf16.mxu0 0
        %2828 = vmatpush1.bf16.msra.mxu0 0
        %2829 = vmatprep.subr.bf16.mxu0 0
        %2830 = vmatpush1.bf16.msra.mxu0 0
        %2831 = vmatprep.subr.bf16.mxu0 0
        %2832 = vmatpush1.bf16.msra.mxu0 0
        %2833 = vmatprep.subr.bf16.mxu0 0
        %2834 = vmatpush1.bf16.msra.mxu0 0
        %2835 = vmatprep.subr.bf16.mxu0 0
        %2836 = vmatpush1.bf16.msra.mxu0 0
        %2837 = vmatprep.subr.bf16.mxu0 0
        %2838 = vmatpush1.bf16.msra.mxu0 0
        %2839 = vmatprep.subr.bf16.mxu0 0
        %2840 = vmatpush1.bf16.msra.mxu0 0
        %2841 = vmatprep.subr.bf16.mxu0 0
        %2842 = vmatpush1.bf16.msra.mxu0 0
        %2843 = vmatprep.subr.bf16.mxu0 0
        %2844 = vmatpush1.bf16.msra.mxu0 0
        %2845 = vmatprep.subr.bf16.mxu0 0
        %2846 = vmatpush1.bf16.msra.mxu0 0
        %2847 = vmatprep.mubr.bf16.mxu0 0
        %2848 = vmatmul.mubr.bf16.gmra.mrb[0].mxu0 %v2813
        %v2849 = vpop.f32.mrb[0].mxu0
        %v2850 = vadd.f32 0.0, %v2849
        %v2851 = vpop.f32.mrb[0].mxu0
        %v2852 = vpop.f32.mrb[0].mxu0
        %v2853 = vadd.f32 0.0, %v2852
        %v2854 = vpop.f32.mrb[0].mxu0
        %2855 = vdwg.mxu0
        %2856 = vrot.lane.b32.xlu0 %v1647, 48
        %v2857 = vpop.permute.xlu0 %2856
        %2858 = vrot.lane.b32.xlu0 %v1649, 48
        %v2859 = vpop.permute.xlu0 %2858
        %v2861 = vsel %vm1653, %v2857, 0
        %v2864 = vsel %vm1653, %v2859, 0
        %2866 = vmatprep.subr.bf16.mxu0 0
        %2867 = vmatpush1.bf16.xpose.msra.mxu0 %v2864
        %2868 = vmatprep.subr.bf16.mxu0 0
        %2869 = vmatpush1.bf16.xpose.msra.mxu0 0
        %2870 = vmatprep.subr.bf16.mxu0 0
        %2871 = vmatpush1.bf16.xpose.msra.mxu0 0
        %2872 = vmatprep.subr.bf16.mxu0 0
        %2873 = vmatpush1.bf16.xpose.msra.mxu0 0
        %2874 = vmatprep.subr.bf16.mxu0 0
        %2875 = vmatpush1.bf16.xpose.msra.mxu0 0
        %2876 = vmatprep.subr.bf16.mxu0 0
        %2877 = vmatpush1.bf16.xpose.msra.mxu0 0
        %2878 = vmatprep.subr.bf16.mxu0 0
        %2879 = vmatpush1.bf16.xpose.msra.mxu0 0
        %2880 = vmatprep.subr.bf16.mxu0 0
        %2881 = vmatpush1.bf16.xpose.msra.mxu0 0
        %2882 = vmatprep.subr.bf16.mxu0 0
        %2883 = vmatpush1.bf16.xpose.msra.mxu0 0
        %2884 = vmatprep.subr.bf16.mxu0 0
        %2885 = vmatpush1.bf16.xpose.msra.mxu0 0
        %2886 = vmatprep.subr.bf16.mxu0 0
        %2887 = vmatpush1.bf16.xpose.msra.mxu0 0
        %2888 = vmatprep.subr.bf16.mxu0 0
        %2889 = vmatpush1.bf16.xpose.msra.mxu0 0
        %2890 = vmatprep.subr.bf16.mxu0 0
        %2891 = vmatpush1.bf16.xpose.msra.mxu0 0
        %2892 = vmatprep.subr.bf16.mxu0 0
        %2893 = vmatpush1.bf16.xpose.msra.mxu0 0
        %2894 = vmatprep.subr.bf16.mxu0 0
        %2895 = vmatpush1.bf16.xpose.msra.mxu0 0
        %2896 = vmatprep.subr.bf16.mxu0 0
        %2897 = vmatpush1.bf16.xpose.msra.mxu0 0
        %2898 = vmatprep.mubr.bf16.mxu0 0
        %2899 = vmatmul.mubr.bf16.gmra.mrb[0].mxu0 %v2861
        %v2900 = vpop.f32.mrb[0].mxu0
        %v2901 = vadd.f32 0.0, %v2900
        %v2902 = vpop.f32.mrb[0].mxu0
        %v2903 = vpop.f32.mrb[0].mxu0
        %v2904 = vadd.f32 0.0, %v2903
        %v2905 = vpop.f32.mrb[0].mxu0
        %2906 = vdwg.mxu0
        %2907 = vrot.lane.b32.xlu0 %v1648, 48
        %v2908 = vpop.permute.xlu0 %2907
        %2909 = vrot.lane.b32.xlu0 %v1650, 48
        %v2910 = vpop.permute.xlu0 %2909
        %v2912 = vsel %vm1653, %v2908, 0
        %v2915 = vsel %vm1653, %v2910, 0
        %2917 = vmatprep.subr.bf16.mxu0 0
        %2918 = vmatpush1.bf16.xpose.msra.mxu0 %v2915
        %2919 = vmatprep.subr.bf16.mxu0 0
        %2920 = vmatpush1.bf16.xpose.msra.mxu0 0
        %2921 = vmatprep.subr.bf16.mxu0 0
        %2922 = vmatpush1.bf16.xpose.msra.mxu0 0
        %2923 = vmatprep.subr.bf16.mxu0 0
        %2924 = vmatpush1.bf16.xpose.msra.mxu0 0
        %2925 = vmatprep.subr.bf16.mxu0 0
        %2926 = vmatpush1.bf16.xpose.msra.mxu0 0
        %2927 = vmatprep.subr.bf16.mxu0 0
        %2928 = vmatpush1.bf16.xpose.msra.mxu0 0
        %2929 = vmatprep.subr.bf16.mxu0 0
        %2930 = vmatpush1.bf16.xpose.msra.mxu0 0
        %2931 = vmatprep.subr.bf16.mxu0 0
        %2932 = vmatpush1.bf16.xpose.msra.mxu0 0
        %2933 = vmatprep.subr.bf16.mxu0 0
        %2934 = vmatpush1.bf16.xpose.msra.mxu0 0
        %2935 = vmatprep.subr.bf16.mxu0 0
        %2936 = vmatpush1.bf16.xpose.msra.mxu0 0
        %2937 = vmatprep.subr.bf16.mxu0 0
        %2938 = vmatpush1.bf16.xpose.msra.mxu0 0
        %2939 = vmatprep.subr.bf16.mxu0 0
        %2940 = vmatpush1.bf16.xpose.msra.mxu0 0
        %2941 = vmatprep.subr.bf16.mxu0 0
        %2942 = vmatpush1.bf16.xpose.msra.mxu0 0
        %2943 = vmatprep.subr.bf16.mxu0 0
        %2944 = vmatpush1.bf16.xpose.msra.mxu0 0
        %2945 = vmatprep.subr.bf16.mxu0 0
        %2946 = vmatpush1.bf16.xpose.msra.mxu0 0
        %2947 = vmatprep.subr.bf16.mxu0 0
        %2948 = vmatpush1.bf16.xpose.msra.mxu0 0
        %2949 = vmatprep.mubr.bf16.mxu0 0
        %2950 = vmatmul.mubr.bf16.gmra.mrb[0].mxu0 %v2912
        %v2951 = vpop.f32.mrb[0].mxu0
        %v2952 = vadd.f32 0.0, %v2951
        %v2953 = vpop.f32.mrb[0].mxu0
        %v2954 = vpop.f32.mrb[0].mxu0
        %v2955 = vadd.f32 0.0, %v2954
        %v2956 = vpop.f32.mrb[0].mxu0
        %2957 = vdwg.mxu0
        %v2958 = vsel %vm1653, %v2901, -inf
        %2959 = vmax.xlane.f32.xlu0 %v2958
        %v2960 = vpop.xlane.xlu0 %2959
        %v2961 = vsel %vm1653, %v2904, -inf
        %2962 = vmax.xlane.f32.xlu0 %v2961
        %v2963 = vpop.xlane.xlu0 %2962
        %v2964 = vsel %vm1653, %v2952, -inf
        %2965 = vmax.xlane.f32.xlu0 %v2964
        %v2966 = vpop.xlane.xlu0 %2965
        %v2967 = vsel %vm1653, %v2955, -inf
        %2968 = vmax.xlane.f32.xlu0 %v2967
        %v2969 = vpop.xlane.xlu0 %2968
        %v2970 = vsub.f32 %v2901, %v2960
        %v2971 = vsub.f32 %v2904, %v2963
        %v2972 = vsub.f32 %v2952, %v2966
        %v2973 = vsub.f32 %v2955, %v2969
        %v2974 = vmul.f32 %v2970, 1.442695
        %v2975 = vpow.pop %v2974
        %v2976 = vmul.f32 %v2971, 1.442695
        %v2977 = vpow.pop %v2976
        %v2978 = vmul.f32 %v2972, 1.442695
        %v2979 = vpow.pop %v2978
        %v2980 = vmul.f32 %v2973, 1.442695
        %v2981 = vpow.pop %v2980
        %v2982 = vsel %vm1653, %v2975, 0.0
        %2983 = vadd.xlane.f32.xlu0 %v2982
        %v2984 = vpop.xlane.xlu0 %2983
        %v2985 = vsel %vm1653, %v2977, 0.0
        %2986 = vadd.xlane.f32.xlu0 %v2985
        %v2987 = vpop.xlane.xlu0 %2986
        %v2988 = vsel %vm1653, %v2979, 0.0
        %2989 = vadd.xlane.f32.xlu0 %v2988
        %v2990 = vpop.xlane.xlu0 %2989
        %v2991 = vsel %vm1653, %v2981, 0.0
        %2992 = vadd.xlane.f32.xlu0 %v2991
        %v2993 = vpop.xlane.xlu0 %2992
        %v2994 = vrcp.pop %v2984
        %v2995 = vrcp.pop %v2987
        %v2996 = vrcp.pop %v2990
        %v2997 = vrcp.pop %v2993
        %v2998 = vmul.f32 %v2975, %v2994
        %v2999 = vmul.f32 %v2977, %v2995
        %v3000 = vmul.f32 %v2979, %v2996
        %v3001 = vmul.f32 %v2981, %v2997
        %v3002 = vpack.c.bf16 %v2999, %v2998
        %v3003 = vpack.c.bf16 %v3001, %v3000
        %3004 = vrot.lane.b32.xlu0 %v1651, 48
        %v3005 = vpop.permute.xlu0 %3004
        %v3008 = vsel %vm1653, %v3002, 0
        %3010 = vmatprep.subr.bf16.mxu0 0
        %3011 = vmatpush1.bf16.msra.mxu0 %v3005
        %3012 = vmatprep.subr.bf16.mxu0 0
        %3013 = vmatpush1.bf16.msra.mxu0 0
        %3014 = vmatprep.subr.bf16.mxu0 0
        %3015 = vmatpush1.bf16.msra.mxu0 0
        %3016 = vmatprep.subr.bf16.mxu0 0
        %3017 = vmatpush1.bf16.msra.mxu0 0
        %3018 = vmatprep.subr.bf16.mxu0 0
        %3019 = vmatpush1.bf16.msra.mxu0 0
        %3020 = vmatprep.subr.bf16.mxu0 0
        %3021 = vmatpush1.bf16.msra.mxu0 0
        %3022 = vmatprep.subr.bf16.mxu0 0
        %3023 = vmatpush1.bf16.msra.mxu0 0
        %3024 = vmatprep.subr.bf16.mxu0 0
        %3025 = vmatpush1.bf16.msra.mxu0 0
        %3026 = vmatprep.subr.bf16.mxu0 0
        %3027 = vmatpush1.bf16.msra.mxu0 0
        %3028 = vmatprep.subr.bf16.mxu0 0
        %3029 = vmatpush1.bf16.msra.mxu0 0
        %3030 = vmatprep.subr.bf16.mxu0 0
        %3031 = vmatpush1.bf16.msra.mxu0 0
        %3032 = vmatprep.subr.bf16.mxu0 0
        %3033 = vmatpush1.bf16.msra.mxu0 0
        %3034 = vmatprep.subr.bf16.mxu0 0
        %3035 = vmatpush1.bf16.msra.mxu0 0
        %3036 = vmatprep.subr.bf16.mxu0 0
        %3037 = vmatpush1.bf16.msra.mxu0 0
        %3038 = vmatprep.subr.bf16.mxu0 0
        %3039 = vmatpush1.bf16.msra.mxu0 0
        %3040 = vmatprep.subr.bf16.mxu0 0
        %3041 = vmatpush1.bf16.msra.mxu0 0
        %3042 = vmatprep.mubr.bf16.mxu0 0
        %3043 = vmatmul.mubr.bf16.gmra.mrb[0].mxu0 %v3008
        %v3044 = vpop.f32.mrb[0].mxu0
        %v3045 = vadd.f32 0.0, %v3044
        %v3046 = vpop.f32.mrb[0].mxu0
        %v3047 = vpop.f32.mrb[0].mxu0
        %v3048 = vadd.f32 0.0, %v3047
        %v3049 = vpop.f32.mrb[0].mxu0
        %3050 = vdwg.mxu0
        %3051 = vrot.lane.b32.xlu0 %v1652, 48
        %v3052 = vpop.permute.xlu0 %3051
        %v3055 = vsel %vm1653, %v3003, 0
        %3057 = vmatprep.subr.bf16.mxu0 0
        %3058 = vmatpush1.bf16.msra.mxu0 %v3052
        %3059 = vmatprep.subr.bf16.mxu0 0
        %3060 = vmatpush1.bf16.msra.mxu0 0
        %3061 = vmatprep.subr.bf16.mxu0 0
        %3062 = vmatpush1.bf16.msra.mxu0 0
        %3063 = vmatprep.subr.bf16.mxu0 0
        %3064 = vmatpush1.bf16.msra.mxu0 0
        %3065 = vmatprep.subr.bf16.mxu0 0
        %3066 = vmatpush1.bf16.msra.mxu0 0
        %3067 = vmatprep.subr.bf16.mxu0 0
        %3068 = vmatpush1.bf16.msra.mxu0 0
        %3069 = vmatprep.subr.bf16.mxu0 0
        %3070 = vmatpush1.bf16.msra.mxu0 0
        %3071 = vmatprep.subr.bf16.mxu0 0
        %3072 = vmatpush1.bf16.msra.mxu0 0
        %3073 = vmatprep.subr.bf16.mxu0 0
        %3074 = vmatpush1.bf16.msra.mxu0 0
        %3075 = vmatprep.subr.bf16.mxu0 0
        %3076 = vmatpush1.bf16.msra.mxu0 0
        %3077 = vmatprep.subr.bf16.mxu0 0
        %3078 = vmatpush1.bf16.msra.mxu0 0
        %3079 = vmatprep.subr.bf16.mxu0 0
        %3080 = vmatpush1.bf16.msra.mxu0 0
        %3081 = vmatprep.subr.bf16.mxu0 0
        %3082 = vmatpush1.bf16.msra.mxu0 0
        %3083 = vmatprep.subr.bf16.mxu0 0
        %3084 = vmatpush1.bf16.msra.mxu0 0
        %3085 = vmatprep.subr.bf16.mxu0 0
        %3086 = vmatpush1.bf16.msra.mxu0 0
        %3087 = vmatprep.subr.bf16.mxu0 0
        %3088 = vmatpush1.bf16.msra.mxu0 0
        %3089 = vmatprep.mubr.bf16.mxu0 0
        %3090 = vmatmul.mubr.bf16.gmra.mrb[0].mxu0 %v3055
        %v3091 = vpop.f32.mrb[0].mxu0
        %v3092 = vadd.f32 0.0, %v3091
        %v3093 = vpop.f32.mrb[0].mxu0
        %v3094 = vpop.f32.mrb[0].mxu0
        %v3095 = vadd.f32 0.0, %v3094
        %v3096 = vpop.f32.mrb[0].mxu0
        %3097 = vdwg.mxu0
        %3098 = vrot.lane.b32.xlu0 %v1647, 32
        %v3099 = vpop.permute.xlu0 %3098
        %3100 = vrot.lane.b32.xlu0 %v1649, 32
        %v3101 = vpop.permute.xlu0 %3100
        %v3103 = vsel %vm1653, %v3099, 0
        %v3106 = vsel %vm1653, %v3101, 0
        %3108 = vmatprep.subr.bf16.mxu0 0
        %3109 = vmatpush1.bf16.xpose.msra.mxu0 %v3106
        %3110 = vmatprep.subr.bf16.mxu0 0
        %3111 = vmatpush1.bf16.xpose.msra.mxu0 0
        %3112 = vmatprep.subr.bf16.mxu0 0
        %3113 = vmatpush1.bf16.xpose.msra.mxu0 0
        %3114 = vmatprep.subr.bf16.mxu0 0
        %3115 = vmatpush1.bf16.xpose.msra.mxu0 0
        %3116 = vmatprep.subr.bf16.mxu0 0
        %3117 = vmatpush1.bf16.xpose.msra.mxu0 0
        %3118 = vmatprep.subr.bf16.mxu0 0
        %3119 = vmatpush1.bf16.xpose.msra.mxu0 0
        %3120 = vmatprep.subr.bf16.mxu0 0
        %3121 = vmatpush1.bf16.xpose.msra.mxu0 0
        %3122 = vmatprep.subr.bf16.mxu0 0
        %3123 = vmatpush1.bf16.xpose.msra.mxu0 0
        %3124 = vmatprep.subr.bf16.mxu0 0
        %3125 = vmatpush1.bf16.xpose.msra.mxu0 0
        %3126 = vmatprep.subr.bf16.mxu0 0
        %3127 = vmatpush1.bf16.xpose.msra.mxu0 0
        %3128 = vmatprep.subr.bf16.mxu0 0
        %3129 = vmatpush1.bf16.xpose.msra.mxu0 0
        %3130 = vmatprep.subr.bf16.mxu0 0
        %3131 = vmatpush1.bf16.xpose.msra.mxu0 0
        %3132 = vmatprep.subr.bf16.mxu0 0
        %3133 = vmatpush1.bf16.xpose.msra.mxu0 0
        %3134 = vmatprep.subr.bf16.mxu0 0
        %3135 = vmatpush1.bf16.xpose.msra.mxu0 0
        %3136 = vmatprep.subr.bf16.mxu0 0
        %3137 = vmatpush1.bf16.xpose.msra.mxu0 0
        %3138 = vmatprep.subr.bf16.mxu0 0
        %3139 = vmatpush1.bf16.xpose.msra.mxu0 0
        %3140 = vmatprep.mubr.bf16.mxu0 0
        %3141 = vmatmul.mubr.bf16.gmra.mrb[0].mxu0 %v3103
        %v3142 = vpop.f32.mrb[0].mxu0
        %v3143 = vadd.f32 0.0, %v3142
        %v3144 = vpop.f32.mrb[0].mxu0
        %v3145 = vpop.f32.mrb[0].mxu0
        %v3146 = vadd.f32 0.0, %v3145
        %v3147 = vpop.f32.mrb[0].mxu0
        %3148 = vdwg.mxu0
        %3149 = vrot.lane.b32.xlu0 %v1648, 32
        %v3150 = vpop.permute.xlu0 %3149
        %3151 = vrot.lane.b32.xlu0 %v1650, 32
        %v3152 = vpop.permute.xlu0 %3151
        %v3154 = vsel %vm1653, %v3150, 0
        %v3157 = vsel %vm1653, %v3152, 0
        %3159 = vmatprep.subr.bf16.mxu0 0
        %3160 = vmatpush1.bf16.xpose.msra.mxu0 %v3157
        %3161 = vmatprep.subr.bf16.mxu0 0
        %3162 = vmatpush1.bf16.xpose.msra.mxu0 0
        %3163 = vmatprep.subr.bf16.mxu0 0
        %3164 = vmatpush1.bf16.xpose.msra.mxu0 0
        %3165 = vmatprep.subr.bf16.mxu0 0
        %3166 = vmatpush1.bf16.xpose.msra.mxu0 0
        %3167 = vmatprep.subr.bf16.mxu0 0
        %3168 = vmatpush1.bf16.xpose.msra.mxu0 0
        %3169 = vmatprep.subr.bf16.mxu0 0
        %3170 = vmatpush1.bf16.xpose.msra.mxu0 0
        %3171 = vmatprep.subr.bf16.mxu0 0
        %3172 = vmatpush1.bf16.xpose.msra.mxu0 0
        %3173 = vmatprep.subr.bf16.mxu0 0
        %3174 = vmatpush1.bf16.xpose.msra.mxu0 0
        %3175 = vmatprep.subr.bf16.mxu0 0
        %3176 = vmatpush1.bf16.xpose.msra.mxu0 0
        %3177 = vmatprep.subr.bf16.mxu0 0
        %3178 = vmatpush1.bf16.xpose.msra.mxu0 0
        %3179 = vmatprep.subr.bf16.mxu0 0
        %3180 = vmatpush1.bf16.xpose.msra.mxu0 0
        %3181 = vmatprep.subr.bf16.mxu0 0
        %3182 = vmatpush1.bf16.xpose.msra.mxu0 0
        %3183 = vmatprep.subr.bf16.mxu0 0
        %3184 = vmatpush1.bf16.xpose.msra.mxu0 0
        %3185 = vmatprep.subr.bf16.mxu0 0
        %3186 = vmatpush1.bf16.xpose.msra.mxu0 0
        %3187 = vmatprep.subr.bf16.mxu0 0
        %3188 = vmatpush1.bf16.xpose.msra.mxu0 0
        %3189 = vmatprep.subr.bf16.mxu0 0
        %3190 = vmatpush1.bf16.xpose.msra.mxu0 0
        %3191 = vmatprep.mubr.bf16.mxu0 0
        %3192 = vmatmul.mubr.bf16.gmra.mrb[0].mxu0 %v3154
        %v3193 = vpop.f32.mrb[0].mxu0
        %v3194 = vadd.f32 0.0, %v3193
        %v3195 = vpop.f32.mrb[0].mxu0
        %v3196 = vpop.f32.mrb[0].mxu0
        %v3197 = vadd.f32 0.0, %v3196
        %v3198 = vpop.f32.mrb[0].mxu0
        %3199 = vdwg.mxu0
        %v3200 = vsel %vm1653, %v3143, -inf
        %3201 = vmax.xlane.f32.xlu0 %v3200
        %v3202 = vpop.xlane.xlu0 %3201
        %v3203 = vsel %vm1653, %v3146, -inf
        %3204 = vmax.xlane.f32.xlu0 %v3203
        %v3205 = vpop.xlane.xlu0 %3204
        %v3206 = vsel %vm1653, %v3194, -inf
        %3207 = vmax.xlane.f32.xlu0 %v3206
        %v3208 = vpop.xlane.xlu0 %3207
        %v3209 = vsel %vm1653, %v3197, -inf
        %3210 = vmax.xlane.f32.xlu0 %v3209
        %v3211 = vpop.xlane.xlu0 %3210
        %v3212 = vsub.f32 %v3143, %v3202
        %v3213 = vsub.f32 %v3146, %v3205
        %v3214 = vsub.f32 %v3194, %v3208
        %v3215 = vsub.f32 %v3197, %v3211
        %v3216 = vmul.f32 %v3212, 1.442695
        %v3217 = vpow.pop %v3216
        %v3218 = vmul.f32 %v3213, 1.442695
        %v3219 = vpow.pop %v3218
        %v3220 = vmul.f32 %v3214, 1.442695
        %v3221 = vpow.pop %v3220
        %v3222 = vmul.f32 %v3215, 1.442695
        %v3223 = vpow.pop %v3222
        %v3224 = vsel %vm1653, %v3217, 0.0
        %3225 = vadd.xlane.f32.xlu0 %v3224
        %v3226 = vpop.xlane.xlu0 %3225
        %v3227 = vsel %vm1653, %v3219, 0.0
        %3228 = vadd.xlane.f32.xlu0 %v3227
        %v3229 = vpop.xlane.xlu0 %3228
        %v3230 = vsel %vm1653, %v3221, 0.0
        %3231 = vadd.xlane.f32.xlu0 %v3230
        %v3232 = vpop.xlane.xlu0 %3231
        %v3233 = vsel %vm1653, %v3223, 0.0
        %3234 = vadd.xlane.f32.xlu0 %v3233
        %v3235 = vpop.xlane.xlu0 %3234
        %v3236 = vrcp.pop %v3226
        %v3237 = vrcp.pop %v3229
        %v3238 = vrcp.pop %v3232
        %v3239 = vrcp.pop %v3235
        %v3240 = vmul.f32 %v3217, %v3236
        %v3241 = vmul.f32 %v3219, %v3237
        %v3242 = vmul.f32 %v3221, %v3238
        %v3243 = vmul.f32 %v3223, %v3239
        %v3244 = vpack.c.bf16 %v3241, %v3240
        %v3245 = vpack.c.bf16 %v3243, %v3242
        %3246 = vrot.lane.b32.xlu0 %v1651, 32
        %v3247 = vpop.permute.xlu0 %3246
        %v3250 = vsel %vm1653, %v3244, 0
        %3252 = vmatprep.subr.bf16.mxu0 0
        %3253 = vmatpush1.bf16.msra.mxu0 %v3247
        %3254 = vmatprep.subr.bf16.mxu0 0
        %3255 = vmatpush1.bf16.msra.mxu0 0
        %3256 = vmatprep.subr.bf16.mxu0 0
        %3257 = vmatpush1.bf16.msra.mxu0 0
        %3258 = vmatprep.subr.bf16.mxu0 0
        %3259 = vmatpush1.bf16.msra.mxu0 0
        %3260 = vmatprep.subr.bf16.mxu0 0
        %3261 = vmatpush1.bf16.msra.mxu0 0
        %3262 = vmatprep.subr.bf16.mxu0 0
        %3263 = vmatpush1.bf16.msra.mxu0 0
        %3264 = vmatprep.subr.bf16.mxu0 0
        %3265 = vmatpush1.bf16.msra.mxu0 0
        %3266 = vmatprep.subr.bf16.mxu0 0
        %3267 = vmatpush1.bf16.msra.mxu0 0
        %3268 = vmatprep.subr.bf16.mxu0 0
        %3269 = vmatpush1.bf16.msra.mxu0 0
        %3270 = vmatprep.subr.bf16.mxu0 0
        %3271 = vmatpush1.bf16.msra.mxu0 0
        %3272 = vmatprep.subr.bf16.mxu0 0
        %3273 = vmatpush1.bf16.msra.mxu0 0
        %3274 = vmatprep.subr.bf16.mxu0 0
        %3275 = vmatpush1.bf16.msra.mxu0 0
        %3276 = vmatprep.subr.bf16.mxu0 0
        %3277 = vmatpush1.bf16.msra.mxu0 0
        %3278 = vmatprep.subr.bf16.mxu0 0
        %3279 = vmatpush1.bf16.msra.mxu0 0
        %3280 = vmatprep.subr.bf16.mxu0 0
        %3281 = vmatpush1.bf16.msra.mxu0 0
        %3282 = vmatprep.subr.bf16.mxu0 0
        %3283 = vmatpush1.bf16.msra.mxu0 0
        %3284 = vmatprep.mubr.bf16.mxu0 0
        %3285 = vmatmul.mubr.bf16.gmra.mrb[0].mxu0 %v3250
        %v3286 = vpop.f32.mrb[0].mxu0
        %v3287 = vadd.f32 0.0, %v3286
        %v3288 = vpop.f32.mrb[0].mxu0
        %v3289 = vpop.f32.mrb[0].mxu0
        %v3290 = vadd.f32 0.0, %v3289
        %v3291 = vpop.f32.mrb[0].mxu0
        %3292 = vdwg.mxu0
        %3293 = vrot.lane.b32.xlu0 %v1652, 32
        %v3294 = vpop.permute.xlu0 %3293
        %v3297 = vsel %vm1653, %v3245, 0
        %3299 = vmatprep.subr.bf16.mxu0 0
        %3300 = vmatpush1.bf16.msra.mxu0 %v3294
        %3301 = vmatprep.subr.bf16.mxu0 0
        %3302 = vmatpush1.bf16.msra.mxu0 0
        %3303 = vmatprep.subr.bf16.mxu0 0
        %3304 = vmatpush1.bf16.msra.mxu0 0
        %3305 = vmatprep.subr.bf16.mxu0 0
        %3306 = vmatpush1.bf16.msra.mxu0 0
        %3307 = vmatprep.subr.bf16.mxu0 0
        %3308 = vmatpush1.bf16.msra.mxu0 0
        %3309 = vmatprep.subr.bf16.mxu0 0
        %3310 = vmatpush1.bf16.msra.mxu0 0
        %3311 = vmatprep.subr.bf16.mxu0 0
        %3312 = vmatpush1.bf16.msra.mxu0 0
        %3313 = vmatprep.subr.bf16.mxu0 0
        %3314 = vmatpush1.bf16.msra.mxu0 0
        %3315 = vmatprep.subr.bf16.mxu0 0
        %3316 = vmatpush1.bf16.msra.mxu0 0
        %3317 = vmatprep.subr.bf16.mxu0 0
        %3318 = vmatpush1.bf16.msra.mxu0 0
        %3319 = vmatprep.subr.bf16.mxu0 0
        %3320 = vmatpush1.bf16.msra.mxu0 0
        %3321 = vmatprep.subr.bf16.mxu0 0
        %3322 = vmatpush1.bf16.msra.mxu0 0
        %3323 = vmatprep.subr.bf16.mxu0 0
        %3324 = vmatpush1.bf16.msra.mxu0 0
        %3325 = vmatprep.subr.bf16.mxu0 0
        %3326 = vmatpush1.bf16.msra.mxu0 0
        %3327 = vmatprep.subr.bf16.mxu0 0
        %3328 = vmatpush1.bf16.msra.mxu0 0
        %3329 = vmatprep.subr.bf16.mxu0 0
        %3330 = vmatpush1.bf16.msra.mxu0 0
        %3331 = vmatprep.mubr.bf16.mxu0 0
        %3332 = vmatmul.mubr.bf16.gmra.mrb[0].mxu0 %v3297
        %v3333 = vpop.f32.mrb[0].mxu0
        %v3334 = vadd.f32 0.0, %v3333
        %v3335 = vpop.f32.mrb[0].mxu0
        %v3336 = vpop.f32.mrb[0].mxu0
        %v3337 = vadd.f32 0.0, %v3336
        %v3338 = vpop.f32.mrb[0].mxu0
        %3339 = vdwg.mxu0
        %3340 = vrot.lane.b32.xlu0 %v1647, 16
        %v3341 = vpop.permute.xlu0 %3340
        %3342 = vrot.lane.b32.xlu0 %v1649, 16
        %v3343 = vpop.permute.xlu0 %3342
        %v3345 = vsel %vm1653, %v3341, 0
        %v3348 = vsel %vm1653, %v3343, 0
        %3350 = vmatprep.subr.bf16.mxu0 0
        %3351 = vmatpush1.bf16.xpose.msra.mxu0 %v3348
        %3352 = vmatprep.subr.bf16.mxu0 0
        %3353 = vmatpush1.bf16.xpose.msra.mxu0 0
        %3354 = vmatprep.subr.bf16.mxu0 0
        %3355 = vmatpush1.bf16.xpose.msra.mxu0 0
        %3356 = vmatprep.subr.bf16.mxu0 0
        %3357 = vmatpush1.bf16.xpose.msra.mxu0 0
        %3358 = vmatprep.subr.bf16.mxu0 0
        %3359 = vmatpush1.bf16.xpose.msra.mxu0 0
        %3360 = vmatprep.subr.bf16.mxu0 0
        %3361 = vmatpush1.bf16.xpose.msra.mxu0 0
        %3362 = vmatprep.subr.bf16.mxu0 0
        %3363 = vmatpush1.bf16.xpose.msra.mxu0 0
        %3364 = vmatprep.subr.bf16.mxu0 0
        %3365 = vmatpush1.bf16.xpose.msra.mxu0 0
        %3366 = vmatprep.subr.bf16.mxu0 0
        %3367 = vmatpush1.bf16.xpose.msra.mxu0 0
        %3368 = vmatprep.subr.bf16.mxu0 0
        %3369 = vmatpush1.bf16.xpose.msra.mxu0 0
        %3370 = vmatprep.subr.bf16.mxu0 0
        %3371 = vmatpush1.bf16.xpose.msra.mxu0 0
        %3372 = vmatprep.subr.bf16.mxu0 0
        %3373 = vmatpush1.bf16.xpose.msra.mxu0 0
        %3374 = vmatprep.subr.bf16.mxu0 0
        %3375 = vmatpush1.bf16.xpose.msra.mxu0 0
        %3376 = vmatprep.subr.bf16.mxu0 0
        %3377 = vmatpush1.bf16.xpose.msra.mxu0 0
        %3378 = vmatprep.subr.bf16.mxu0 0
        %3379 = vmatpush1.bf16.xpose.msra.mxu0 0
        %3380 = vmatprep.subr.bf16.mxu0 0
        %3381 = vmatpush1.bf16.xpose.msra.mxu0 0
        %3382 = vmatprep.mubr.bf16.mxu0 0
        %3383 = vmatmul.mubr.bf16.gmra.mrb[0].mxu0 %v3345
        %v3384 = vpop.f32.mrb[0].mxu0
        %v3385 = vadd.f32 0.0, %v3384
        %v3386 = vpop.f32.mrb[0].mxu0
        %v3387 = vpop.f32.mrb[0].mxu0
        %v3388 = vadd.f32 0.0, %v3387
        %v3389 = vpop.f32.mrb[0].mxu0
        %3390 = vdwg.mxu0
        %3391 = vrot.lane.b32.xlu0 %v1648, 16
        %v3392 = vpop.permute.xlu0 %3391
        %3393 = vrot.lane.b32.xlu0 %v1650, 16
        %v3394 = vpop.permute.xlu0 %3393
        %v3396 = vsel %vm1653, %v3392, 0
        %v3399 = vsel %vm1653, %v3394, 0
        %3401 = vmatprep.subr.bf16.mxu0 0
        %3402 = vmatpush1.bf16.xpose.msra.mxu0 %v3399
        %3403 = vmatprep.subr.bf16.mxu0 0
        %3404 = vmatpush1.bf16.xpose.msra.mxu0 0
        %3405 = vmatprep.subr.bf16.mxu0 0
        %3406 = vmatpush1.bf16.xpose.msra.mxu0 0
        %3407 = vmatprep.subr.bf16.mxu0 0
        %3408 = vmatpush1.bf16.xpose.msra.mxu0 0
        %3409 = vmatprep.subr.bf16.mxu0 0
        %3410 = vmatpush1.bf16.xpose.msra.mxu0 0
        %3411 = vmatprep.subr.bf16.mxu0 0
        %3412 = vmatpush1.bf16.xpose.msra.mxu0 0
        %3413 = vmatprep.subr.bf16.mxu0 0
        %3414 = vmatpush1.bf16.xpose.msra.mxu0 0
        %3415 = vmatprep.subr.bf16.mxu0 0
        %3416 = vmatpush1.bf16.xpose.msra.mxu0 0
        %3417 = vmatprep.subr.bf16.mxu0 0
        %3418 = vmatpush1.bf16.xpose.msra.mxu0 0
        %3419 = vmatprep.subr.bf16.mxu0 0
        %3420 = vmatpush1.bf16.xpose.msra.mxu0 0
        %3421 = vmatprep.subr.bf16.mxu0 0
        %3422 = vmatpush1.bf16.xpose.msra.mxu0 0
        %3423 = vmatprep.subr.bf16.mxu0 0
        %3424 = vmatpush1.bf16.xpose.msra.mxu0 0
        %3425 = vmatprep.subr.bf16.mxu0 0
        %3426 = vmatpush1.bf16.xpose.msra.mxu0 0
        %3427 = vmatprep.subr.bf16.mxu0 0
        %3428 = vmatpush1.bf16.xpose.msra.mxu0 0
        %3429 = vmatprep.subr.bf16.mxu0 0
        %3430 = vmatpush1.bf16.xpose.msra.mxu0 0
        %3431 = vmatprep.subr.bf16.mxu0 0
        %3432 = vmatpush1.bf16.xpose.msra.mxu0 0
        %3433 = vmatprep.mubr.bf16.mxu0 0
        %3434 = vmatmul.mubr.bf16.gmra.mrb[0].mxu0 %v3396
        %v3435 = vpop.f32.mrb[0].mxu0
        %v3436 = vadd.f32 0.0, %v3435
        %v3437 = vpop.f32.mrb[0].mxu0
        %v3438 = vpop.f32.mrb[0].mxu0
        %v3439 = vadd.f32 0.0, %v3438
        %v3440 = vpop.f32.mrb[0].mxu0
        %3441 = vdwg.mxu0
        %v3442 = vsel %vm1653, %v3385, -inf
        %3443 = vmax.xlane.f32.xlu0 %v3442
        %v3444 = vpop.xlane.xlu0 %3443
        %v3445 = vsel %vm1653, %v3388, -inf
        %3446 = vmax.xlane.f32.xlu0 %v3445
        %v3447 = vpop.xlane.xlu0 %3446
        %v3448 = vsel %vm1653, %v3436, -inf
        %3449 = vmax.xlane.f32.xlu0 %v3448
        %v3450 = vpop.xlane.xlu0 %3449
        %v3451 = vsel %vm1653, %v3439, -inf
        %3452 = vmax.xlane.f32.xlu0 %v3451
        %v3453 = vpop.xlane.xlu0 %3452
        %v3454 = vsub.f32 %v3385, %v3444
        %v3455 = vsub.f32 %v3388, %v3447
        %v3456 = vsub.f32 %v3436, %v3450
        %v3457 = vsub.f32 %v3439, %v3453
        %v3458 = vmul.f32 %v3454, 1.442695
        %v3459 = vpow.pop %v3458
        %v3460 = vmul.f32 %v3455, 1.442695
        %v3461 = vpow.pop %v3460
        %v3462 = vmul.f32 %v3456, 1.442695
        %v3463 = vpow.pop %v3462
        %v3464 = vmul.f32 %v3457, 1.442695
        %v3465 = vpow.pop %v3464
        %v3466 = vsel %vm1653, %v3459, 0.0
        %3467 = vadd.xlane.f32.xlu0 %v3466
        %v3468 = vpop.xlane.xlu0 %3467
        %v3469 = vsel %vm1653, %v3461, 0.0
        %3470 = vadd.xlane.f32.xlu0 %v3469
        %v3471 = vpop.xlane.xlu0 %3470
        %v3472 = vsel %vm1653, %v3463, 0.0
        %3473 = vadd.xlane.f32.xlu0 %v3472
        %v3474 = vpop.xlane.xlu0 %3473
        %v3475 = vsel %vm1653, %v3465, 0.0
        %3476 = vadd.xlane.f32.xlu0 %v3475
        %v3477 = vpop.xlane.xlu0 %3476
        %v3478 = vrcp.pop %v3468
        %v3479 = vrcp.pop %v3471
        %v3480 = vrcp.pop %v3474
        %v3481 = vrcp.pop %v3477
        %v3482 = vmul.f32 %v3459, %v3478
        %v3483 = vmul.f32 %v3461, %v3479
        %v3484 = vmul.f32 %v3463, %v3480
        %v3485 = vmul.f32 %v3465, %v3481
        %v3486 = vpack.c.bf16 %v3483, %v3482
        %v3487 = vpack.c.bf16 %v3485, %v3484
        %3488 = vrot.lane.b32.xlu0 %v1651, 16
        %v3489 = vpop.permute.xlu0 %3488
        %v3492 = vsel %vm1653, %v3486, 0
        %3494 = vmatprep.subr.bf16.mxu0 0
        %3495 = vmatpush1.bf16.msra.mxu0 %v3489
        %3496 = vmatprep.subr.bf16.mxu0 0
        %3497 = vmatpush1.bf16.msra.mxu0 0
        %3498 = vmatprep.subr.bf16.mxu0 0
        %3499 = vmatpush1.bf16.msra.mxu0 0
        %3500 = vmatprep.subr.bf16.mxu0 0
        %3501 = vmatpush1.bf16.msra.mxu0 0
        %3502 = vmatprep.subr.bf16.mxu0 0
        %3503 = vmatpush1.bf16.msra.mxu0 0
        %3504 = vmatprep.subr.bf16.mxu0 0
        %3505 = vmatpush1.bf16.msra.mxu0 0
        %3506 = vmatprep.subr.bf16.mxu0 0
        %3507 = vmatpush1.bf16.msra.mxu0 0
        %3508 = vmatprep.subr.bf16.mxu0 0
        %3509 = vmatpush1.bf16.msra.mxu0 0
        %3510 = vmatprep.subr.bf16.mxu0 0
        %3511 = vmatpush1.bf16.msra.mxu0 0
        %3512 = vmatprep.subr.bf16.mxu0 0
        %3513 = vmatpush1.bf16.msra.mxu0 0
        %3514 = vmatprep.subr.bf16.mxu0 0
        %3515 = vmatpush1.bf16.msra.mxu0 0
        %3516 = vmatprep.subr.bf16.mxu0 0
        %3517 = vmatpush1.bf16.msra.mxu0 0
        %3518 = vmatprep.subr.bf16.mxu0 0
        %3519 = vmatpush1.bf16.msra.mxu0 0
        %3520 = vmatprep.subr.bf16.mxu0 0
        %3521 = vmatpush1.bf16.msra.mxu0 0
        %3522 = vmatprep.subr.bf16.mxu0 0
        %3523 = vmatpush1.bf16.msra.mxu0 0
        %3524 = vmatprep.subr.bf16.mxu0 0
        %3525 = vmatpush1.bf16.msra.mxu0 0
        %3526 = vmatprep.mubr.bf16.mxu0 0
        %3527 = vmatmul.mubr.bf16.gmra.mrb[0].mxu0 %v3492
        %v3528 = vpop.f32.mrb[0].mxu0
        %v3529 = vadd.f32 0.0, %v3528
        %v3530 = vpop.f32.mrb[0].mxu0
        %v3531 = vpop.f32.mrb[0].mxu0
        %v3532 = vadd.f32 0.0, %v3531
        %v3533 = vpop.f32.mrb[0].mxu0
        %3534 = vdwg.mxu0
        %3535 = vrot.lane.b32.xlu0 %v1652, 16
        %v3536 = vpop.permute.xlu0 %3535
        %v3539 = vsel %vm1653, %v3487, 0
        %3541 = vmatprep.subr.bf16.mxu0 0
        %3542 = vmatpush1.bf16.msra.mxu0 %v3536
        %3543 = vmatprep.subr.bf16.mxu0 0
        %3544 = vmatpush1.bf16.msra.mxu0 0
        %3545 = vmatprep.subr.bf16.mxu0 0
        %3546 = vmatpush1.bf16.msra.mxu0 0
        %3547 = vmatprep.subr.bf16.mxu0 0
        %3548 = vmatpush1.bf16.msra.mxu0 0
        %3549 = vmatprep.subr.bf16.mxu0 0
        %3550 = vmatpush1.bf16.msra.mxu0 0
        %3551 = vmatprep.subr.bf16.mxu0 0
        %3552 = vmatpush1.bf16.msra.mxu0 0
        %3553 = vmatprep.subr.bf16.mxu0 0
        %3554 = vmatpush1.bf16.msra.mxu0 0
        %3555 = vmatprep.subr.bf16.mxu0 0
        %3556 = vmatpush1.bf16.msra.mxu0 0
        %3557 = vmatprep.subr.bf16.mxu0 0
        %3558 = vmatpush1.bf16.msra.mxu0 0
        %3559 = vmatprep.subr.bf16.mxu0 0
        %3560 = vmatpush1.bf16.msra.mxu0 0
        %3561 = vmatprep.subr.bf16.mxu0 0
        %3562 = vmatpush1.bf16.msra.mxu0 0
        %3563 = vmatprep.subr.bf16.mxu0 0
        %3564 = vmatpush1.bf16.msra.mxu0 0
        %3565 = vmatprep.subr.bf16.mxu0 0
        %3566 = vmatpush1.bf16.msra.mxu0 0
        %3567 = vmatprep.subr.bf16.mxu0 0
        %3568 = vmatpush1.bf16.msra.mxu0 0
        %3569 = vmatprep.subr.bf16.mxu0 0
        %3570 = vmatpush1.bf16.msra.mxu0 0
        %3571 = vmatprep.subr.bf16.mxu0 0
        %3572 = vmatpush1.bf16.msra.mxu0 0
        %3573 = vmatprep.mubr.bf16.mxu0 0
        %3574 = vmatmul.mubr.bf16.gmra.mrb[0].mxu0 %v3539
        %v3575 = vpop.f32.mrb[0].mxu0
        %v3576 = vadd.f32 0.0, %v3575
        %v3577 = vpop.f32.mrb[0].mxu0
        %v3578 = vpop.f32.mrb[0].mxu0
        %v3579 = vadd.f32 0.0, %v3578
        %v3580 = vpop.f32.mrb[0].mxu0
        %3581 = vdwg.mxu0
        %3586 = vrot.lane.b32.xlu0 %v2076, 16
        %v3587 = vpop.permute.xlu0 %3586
        %3588 = vrot.lane.b32.xlu0 %v2079, 16
        %v3589 = vpop.permute.xlu0 %3588
        %3590 = vrot.lane.b32.xlu0 %v2124, 16
        %v3591 = vpop.permute.xlu0 %3590
        %3592 = vrot.lane.b32.xlu0 %v2127, 16
        %v3593 = vpop.permute.xlu0 %3592
        %3602 = vrot.lane.b32.xlu0 %v2319, 32
        %v3603 = vpop.permute.xlu0 %3602
        %3604 = vrot.lane.b32.xlu0 %v2322, 32
        %v3605 = vpop.permute.xlu0 %3604
        %3606 = vrot.lane.b32.xlu0 %v2366, 32
        %v3607 = vpop.permute.xlu0 %3606
        %3608 = vrot.lane.b32.xlu0 %v2369, 32
        %v3609 = vpop.permute.xlu0 %3608
        %3618 = vrot.lane.b32.xlu0 %v2561, 48
        %v3619 = vpop.permute.xlu0 %3618
        %3620 = vrot.lane.b32.xlu0 %v2564, 48
        %v3621 = vpop.permute.xlu0 %3620
        %3622 = vrot.lane.b32.xlu0 %v2608, 48
        %v3623 = vpop.permute.xlu0 %3622
        %3624 = vrot.lane.b32.xlu0 %v2611, 48
        %v3625 = vpop.permute.xlu0 %3624
        %3634 = vrot.lane.b32.xlu0 %v2803, 64
        %v3635 = vpop.permute.xlu0 %3634
        %3636 = vrot.lane.b32.xlu0 %v2806, 64
        %v3637 = vpop.permute.xlu0 %3636
        %3638 = vrot.lane.b32.xlu0 %v2850, 64
        %v3639 = vpop.permute.xlu0 %3638
        %3640 = vrot.lane.b32.xlu0 %v2853, 64
        %v3641 = vpop.permute.xlu0 %3640
        %3650 = vrot.lane.b32.xlu0 %v3045, 80
        %v3651 = vpop.permute.xlu0 %3650
        %3652 = vrot.lane.b32.xlu0 %v3048, 80
        %v3653 = vpop.permute.xlu0 %3652
        %3654 = vrot.lane.b32.xlu0 %v3092, 80
        %v3655 = vpop.permute.xlu0 %3654
        %3656 = vrot.lane.b32.xlu0 %v3095, 80
        %v3657 = vpop.permute.xlu0 %3656
        %3666 = vrot.lane.b32.xlu0 %v3287, 96
        %v3667 = vpop.permute.xlu0 %3666
        %3668 = vrot.lane.b32.xlu0 %v3290, 96
        %v3669 = vpop.permute.xlu0 %3668
        %3670 = vrot.lane.b32.xlu0 %v3334, 96
        %v3671 = vpop.permute.xlu0 %3670
        %3672 = vrot.lane.b32.xlu0 %v3337, 96
        %v3673 = vpop.permute.xlu0 %3672
        %3682 = vrot.lane.b32.xlu0 %v3529, 112
        %v3683 = vpop.permute.xlu0 %3682
        %3684 = vrot.lane.b32.xlu0 %v3532, 112
        %v3685 = vpop.permute.xlu0 %3684
        %3686 = vrot.lane.b32.xlu0 %v3576, 112
        %v3687 = vpop.permute.xlu0 %3686
        %3688 = vrot.lane.b32.xlu0 %v3579, 112
        %v3689 = vpop.permute.xlu0 %3688
        %v3694 = vsel %vm1653, %v1832, %v3587
        %v3695 = vsel %vm1653, %v1835, %v3589
        %v3696 = vsel %vm1653, %v1876, %v3591
        %v3697 = vsel %vm1653, %v1879, %v3593
        %vm3698 = vcmask 261120
        %v3699 = vsel %vm3698, %v3694, %v3603
        %v3700 = vsel %vm3698, %v3695, %v3605
        %v3701 = vsel %vm3698, %v3696, %v3607
        %v3702 = vsel %vm3698, %v3697, %v3609
        %vm3703 = vcmask 392192
        %v3704 = vsel %vm3703, %v3699, %v3619
        %v3705 = vsel %vm3703, %v3700, %v3621
        %v3706 = vsel %vm3703, %v3701, %v3623
        %v3707 = vsel %vm3703, %v3702, %v3625
        %vm3708 = vcmask 523264
        %v3709 = vsel %vm3708, %v3704, %v3635
        %v3710 = vsel %vm3708, %v3705, %v3637
        %v3711 = vsel %vm3708, %v3706, %v3639
        %v3712 = vsel %vm3708, %v3707, %v3641
        %vm3713 = vcmask 654336
        %v3714 = vsel %vm3713, %v3709, %v3651
        %v3715 = vsel %vm3713, %v3710, %v3653
        %v3716 = vsel %vm3713, %v3711, %v3655
        %v3717 = vsel %vm3713, %v3712, %v3657
        %vm3718 = vcmask 785408
        %v3719 = vsel %vm3718, %v3714, %v3667
        %v3720 = vsel %vm3718, %v3715, %v3669
        %v3721 = vsel %vm3718, %v3716, %v3671
        %v3722 = vsel %vm3718, %v3717, %v3673
        %vm3723 = vcmask 916480
        %v3724 = vsel %vm3723, %v3719, %v3683
        %v3725 = vsel %vm3723, %v3720, %v3685
        %v3726 = vsel %vm3723, %v3721, %v3687
        %v3727 = vsel %vm3723, %v3722, %v3689
        %v3728 = vpack.c.bf16 %v3725, %v3724
        %v3729 = vpack.c.bf16 %v3727, %v3726
        %v3730 = vld [vmem:[%s679] sm:$0xf]
        %v3731 = vld [vmem:[%s679 + $0x4] sm:$0xf]
        %v3732 = vld [vmem:[%s679 + $0x8] sm:$0xf]
        %v3733 = vld [vmem:[%s679 + $0xc] sm:$0xf]
        %v3734 = vld [vmem:[%s679 + $0x10] sm:$0xf]
        %v3735 = vld [vmem:[%s679 + $0x14] sm:$0xf]
        %v3736 = vld [vmem:[%s679 + $0x18] sm:$0xf]
        %v3737 = vld [vmem:[%s679 + $0x1c] sm:$0xf]
        %v3738 = vld [vmem:[%s679 + $0x20] sm:$0xf]
        %v3739 = vld [vmem:[%s679 + $0x24] sm:$0xf]
        %v3740 = vld [vmem:[%s679 + $0x28] sm:$0xf]
        %v3741 = vld [vmem:[%s679 + $0x2c] sm:$0xf]
        %v3742 = vld [vmem:[%s679 + $0x30] sm:$0xf]
        %v3743 = vld [vmem:[%s679 + $0x34] sm:$0xf]
        %v3744 = vld [vmem:[%s679 + $0x38] sm:$0xf]
        %v3745 = vld [vmem:[%s679 + $0x3c] sm:$0xf]
        %v3762 = vunpack.c.l.b16 %v3730
        %v3763 = vunpack.c.l.b16 %v3731
        %v3764 = vunpack.c.l.b16 %v3732
        %v3765 = vunpack.c.l.b16 %v3733
        %v3766 = vunpack.c.l.b16 %v3734
        %v3767 = vunpack.c.l.b16 %v3735
        %v3768 = vunpack.c.l.b16 %v3736
        %v3769 = vunpack.c.l.b16 %v3737
        %v3770 = vunpack.c.l.b16 %v3738
        %v3771 = vunpack.c.l.b16 %v3739
        %v3772 = vunpack.c.l.b16 %v3740
        %v3773 = vunpack.c.l.b16 %v3741
        %v3774 = vunpack.c.l.b16 %v3742
        %v3775 = vunpack.c.l.b16 %v3743
        %v3776 = vunpack.c.l.b16 %v3744
        %v3777 = vunpack.c.l.b16 %v3745
        %v3778 = vpack.c.b16 %v3763, %v3762
        %v3779 = vpack.c.b16 %v3765, %v3764
        %v3780 = vpack.c.b16 %v3767, %v3766
        %v3781 = vpack.c.b16 %v3769, %v3768
        %v3782 = vpack.c.b16 %v3771, %v3770
        %v3783 = vpack.c.b16 %v3773, %v3772
        %v3784 = vpack.c.b16 %v3775, %v3774
        %v3785 = vpack.c.b16 %v3777, %v3776
        %3794 = vmatprep.subr.bf16.mxu0 0
        %3795 = vmatpush1.bf16.msra.mxu0 %v3778
        %3796 = vmatprep.subr.bf16.mxu0 0
        %3797 = vmatpush1.bf16.msra.mxu0 %v3779
        %3798 = vmatprep.subr.bf16.mxu0 0
        %3799 = vmatpush1.bf16.msra.mxu0 %v3780
        %3800 = vmatprep.subr.bf16.mxu0 0
        %3801 = vmatpush1.bf16.msra.mxu0 %v3781
        %3802 = vmatprep.subr.bf16.mxu0 0
        %3803 = vmatpush1.bf16.msra.mxu0 %v3782
        %3804 = vmatprep.subr.bf16.mxu0 0
        %3805 = vmatpush1.bf16.msra.mxu0 %v3783
        %3806 = vmatprep.subr.bf16.mxu0 0
        %3807 = vmatpush1.bf16.msra.mxu0 %v3784
        %3808 = vmatprep.subr.bf16.mxu0 0
        %3809 = vmatpush1.bf16.msra.mxu0 %v3785
        %3810 = vmatprep.subr.bf16.mxu0 0
        %3811 = vmatpush1.bf16.msra.mxu0 0
        %3812 = vmatprep.subr.bf16.mxu0 0
        %3813 = vmatpush1.bf16.msra.mxu0 0
        %3814 = vmatprep.subr.bf16.mxu0 0
        %3815 = vmatpush1.bf16.msra.mxu0 0
        %3816 = vmatprep.subr.bf16.mxu0 0
        %3817 = vmatpush1.bf16.msra.mxu0 0
        %3818 = vmatprep.subr.bf16.mxu0 0
        %3819 = vmatpush1.bf16.msra.mxu0 0
        %3820 = vmatprep.subr.bf16.mxu0 0
        %3821 = vmatpush1.bf16.msra.mxu0 0
        %3822 = vmatprep.subr.bf16.mxu0 0
        %3823 = vmatpush1.bf16.msra.mxu0 0
        %3824 = vmatprep.subr.bf16.mxu0 0
        %3825 = vmatpush1.bf16.msra.mxu0 0
        %3826 = vmatprep.mubr.bf16.mxu0 0
        %3827 = vmatmul.mubr.bf16.gmra.mrb[0].mxu0 %v3728
        %v3828 = vpop.f32.mrb[0].mxu0
        %v3829 = vadd.f32 0.0, %v3828
        %v3830 = vpop.f32.mrb[0].mxu0
        %v3831 = vpop.f32.mrb[0].mxu0
        %v3832 = vadd.f32 0.0, %v3831
        %v3833 = vpop.f32.mrb[0].mxu0
        %3834 = vmatprep.mubr.bf16.mxu0 0
        %3835 = vmatmul.mubr.bf16.gmra.mrb[0].mxu0 %v3729
        %v3836 = vpop.f32.mrb[0].mxu0
        %v3837 = vadd.f32 0.0, %v3836
        %v3838 = vpop.f32.mrb[0].mxu0
        %v3839 = vpop.f32.mrb[0].mxu0
        %v3840 = vadd.f32 0.0, %v3839
        %v3841 = vpop.f32.mrb[0].mxu0
        %3842 = vdwg.mxu0
        %v3843 = vadd.f32 %v1300, %v3829
        %v3844 = vadd.f32 %v1301, %v3832
        %v3845 = vadd.f32 %v1302, %v3837
        %v3846 = vadd.f32 %v1303, %v3840
        %v3847 = vld [vmem:[%s687] sm:$0x1]
        %v3849 = vlaneseq
        %v3850 = vshrl.u32 %v3849, 7
        %v3851 = vsub.s32 0, %v3850
        %v3852 = vrot.slane %v3847, %v3851
        %v3854 = vadd.f32 %v3843, %v3852
        %v3855 = vadd.f32 %v3844, %v3852
        %v3856 = vadd.f32 %v3845, %v3852
        %v3857 = vadd.f32 %v3846, %v3852
        %3858 = vadd.xlane.f32.xlu0 %v3854
        %v3859 = vpop.xlane.xlu0 %3858
        %3860 = vadd.xlane.f32.xlu0 %v3855
        %v3861 = vpop.xlane.xlu0 %3860
        %3862 = vadd.xlane.f32.xlu0 %v3856
        %v3863 = vpop.xlane.xlu0 %3862
        %3864 = vadd.xlane.f32.xlu0 %v3857
        %v3865 = vpop.xlane.xlu0 %3864
        %v3866 = vmul.f32 %v3859, %v1312
        %v3867 = vmul.f32 %v3861, %v1312
        %v3868 = vmul.f32 %v3863, %v1312
        %v3869 = vmul.f32 %v3865, %v1312
        %v3870 = vmul.f32 %v3854, %v3854
        %v3871 = vmul.f32 %v3855, %v3855
        %v3872 = vmul.f32 %v3856, %v3856
        %v3873 = vmul.f32 %v3857, %v3857
        %3874 = vadd.xlane.f32.xlu0 %v3870
        %v3875 = vpop.xlane.xlu0 %3874
        %3876 = vadd.xlane.f32.xlu0 %v3871
        %v3877 = vpop.xlane.xlu0 %3876
        %3878 = vadd.xlane.f32.xlu0 %v3872
        %v3879 = vpop.xlane.xlu0 %3878
        %3880 = vadd.xlane.f32.xlu0 %v3873
        %v3881 = vpop.xlane.xlu0 %3880
        %v3882 = vmul.f32 %v3875, %v1312
        %v3883 = vmul.f32 %v3877, %v1312
        %v3884 = vmul.f32 %v3879, %v1312
        %v3885 = vmul.f32 %v3881, %v1312
        %v3886 = vmul.f32 %v3866, %v3866
        %v3887 = vmul.f32 %v3867, %v3867
        %v3888 = vmul.f32 %v3868, %v3868
        %v3889 = vmul.f32 %v3869, %v3869
        %v3890 = vsub.f32 %v3882, %v3886
        %v3891 = vsub.f32 %v3883, %v3887
        %v3892 = vsub.f32 %v3884, %v3888
        %v3893 = vsub.f32 %v3885, %v3889
        %v3894 = vmax.f32 %v3890, 0.0
        %v3895 = vmax.f32 %v3891, 0.0
        %v3896 = vmax.f32 %v3892, 0.0
        %v3897 = vmax.f32 %v3893, 0.0
        %v3898 = vsub.f32 %v3854, %v3866
        %v3899 = vsub.f32 %v3855, %v3867
        %v3900 = vsub.f32 %v3856, %v3868
        %v3901 = vsub.f32 %v3857, %v3869
        %v3902 = vadd.f32 %v3894, 1e-05
        %v3903 = vadd.f32 %v3895, 1e-05
        %v3904 = vadd.f32 %v3896, 1e-05
        %v3905 = vadd.f32 %v3897, 1e-05
        %v3906 = vrsqrt.pop %v3902
        %v3907 = vrsqrt.pop %v3903
        %v3908 = vrsqrt.pop %v3904
        %v3909 = vrsqrt.pop %v3905
        %v3910 = vmul.f32 %v3898, %v3906
        %v3911 = vmul.f32 %v3899, %v3907
        %v3912 = vmul.f32 %v3900, %v3908
        %v3913 = vmul.f32 %v3901, %v3909
        %v3914 = vld [vmem:[%s821] sm:$0x1]
        %v3916 = vlaneseq
        %v3917 = vshrl.u32 %v3916, 7
        %v3918 = vsub.s32 0, %v3917
        %v3919 = vrot.slane %v3914, %v3918
        %v3921 = vmul.f32 %v3910, %v3919
        %v3922 = vmul.f32 %v3911, %v3919
        %v3923 = vmul.f32 %v3912, %v3919
        %v3924 = vmul.f32 %v3913, %v3919
        %v3925 = vld [vmem:[%s824] sm:$0x1]
        %v3927 = vlaneseq
        %v3928 = vshrl.u32 %v3927, 7
        %v3929 = vsub.s32 0, %v3928
        %v3930 = vrot.slane %v3925, %v3929
        %v3932 = vadd.f32 %v3921, %v3930
        %v3933 = vadd.f32 %v3922, %v3930
        %v3934 = vadd.f32 %v3923, %v3930
        %v3935 = vadd.f32 %v3924, %v3930
        %v3936 = vpack.c.bf16 %v3933, %v3932
        %v3937 = vpack.c.bf16 %v3935, %v3934
        %v3938 = vld [vmem:[%s696] sm:$0xff]
        %v3939 = vld [vmem:[%s696 + $0x8] sm:$0xff]
        %v3940 = vld [vmem:[%s696 + $0x10] sm:$0xff]
        %v3941 = vld [vmem:[%s696 + $0x18] sm:$0xff]
        %v3942 = vld [vmem:[%s696 + $0x20] sm:$0xff]
        %v3943 = vld [vmem:[%s696 + $0x28] sm:$0xff]
        %v3944 = vld [vmem:[%s696 + $0x30] sm:$0xff]
        %v3945 = vld [vmem:[%s696 + $0x38] sm:$0xff]
        %v3946 = vld [vmem:[%s696 + $0x40] sm:$0xff]
        %v3947 = vld [vmem:[%s696 + $0x48] sm:$0xff]
        %v3948 = vld [vmem:[%s696 + $0x50] sm:$0xff]
        %v3949 = vld [vmem:[%s696 + $0x58] sm:$0xff]
        %v3950 = vld [vmem:[%s696 + $0x60] sm:$0xff]
        %v3951 = vld [vmem:[%s696 + $0x68] sm:$0xff]
        %v3952 = vld [vmem:[%s696 + $0x70] sm:$0xff]
        %v3953 = vld [vmem:[%s696 + $0x78] sm:$0xff]
        %v3954 = vld [vmem:[%s705] sm:$0x3]
        %v3956 = vlaneseq
        %v3957 = vshrl.u32 %v3956, 7
        %v3958 = vsub.s32 0, %v3957
        %v3959 = vrot.slane %v3954, %v3958
        %v3960 = vlaneseq
        %v3961 = vshrl.u32 %v3960, 7
        %v3962 = vsub.s32 1, %v3961
        %v3963 = vrot.slane %v3954, %v3962
        %v3982 = vunpack.c.l.b16 %v3938
        %v3983 = vunpack.c.h.b16 %v3938
        %v3984 = vunpack.c.l.b16 %v3939
        %v3985 = vunpack.c.h.b16 %v3939
        %v3986 = vunpack.c.l.b16 %v3940
        %v3987 = vunpack.c.h.b16 %v3940
        %v3988 = vunpack.c.l.b16 %v3941
        %v3989 = vunpack.c.h.b16 %v3941
        %v3990 = vunpack.c.l.b16 %v3942
        %v3991 = vunpack.c.h.b16 %v3942
        %v3992 = vunpack.c.l.b16 %v3943
        %v3993 = vunpack.c.h.b16 %v3943
        %v3994 = vunpack.c.l.b16 %v3944
        %v3995 = vunpack.c.h.b16 %v3944
        %v3996 = vunpack.c.l.b16 %v3945
        %v3997 = vunpack.c.h.b16 %v3945
        %v3998 = vunpack.c.l.b16 %v3946
        %v3999 = vunpack.c.h.b16 %v3946
        %v4000 = vunpack.c.l.b16 %v3947
        %v4001 = vunpack.c.h.b16 %v3947
        %v4002 = vunpack.c.l.b16 %v3948
        %v4003 = vunpack.c.h.b16 %v3948
        %v4004 = vunpack.c.l.b16 %v3949
        %v4005 = vunpack.c.h.b16 %v3949
        %v4006 = vunpack.c.l.b16 %v3950
        %v4007 = vunpack.c.h.b16 %v3950
        %v4008 = vunpack.c.l.b16 %v3951
        %v4009 = vunpack.c.h.b16 %v3951
        %v4010 = vunpack.c.l.b16 %v3952
        %v4011 = vunpack.c.h.b16 %v3952
        %v4012 = vunpack.c.l.b16 %v3953
        %v4013 = vunpack.c.h.b16 %v3953
        %v4014 = vpack.c.b16 %v3984, %v3982
        %v4015 = vpack.c.b16 %v3985, %v3983
        %v4016 = vpack.c.b16 %v3988, %v3986
        %v4017 = vpack.c.b16 %v3989, %v3987
        %v4018 = vpack.c.b16 %v3992, %v3990
        %v4019 = vpack.c.b16 %v3993, %v3991
        %v4020 = vpack.c.b16 %v3996, %v3994
        %v4021 = vpack.c.b16 %v3997, %v3995
        %v4022 = vpack.c.b16 %v4000, %v3998
        %v4023 = vpack.c.b16 %v4001, %v3999
        %v4024 = vpack.c.b16 %v4004, %v4002
        %v4025 = vpack.c.b16 %v4005, %v4003
        %v4026 = vpack.c.b16 %v4008, %v4006
        %v4027 = vpack.c.b16 %v4009, %v4007
        %v4028 = vpack.c.b16 %v4012, %v4010
        %v4029 = vpack.c.b16 %v4013, %v4011
        %4046 = vmatprep.subr.bf16.mxu0 %v4015
        %4047 = vmatpush1.bf16.msra.mxu0 %v4014
        %4048 = vmatprep.subr.bf16.mxu0 %v4017
        %4049 = vmatpush1.bf16.msra.mxu0 %v4016
        %4050 = vmatprep.subr.bf16.mxu0 %v4019
        %4051 = vmatpush1.bf16.msra.mxu0 %v4018
        %4052 = vmatprep.subr.bf16.mxu0 %v4021
        %4053 = vmatpush1.bf16.msra.mxu0 %v4020
        %4054 = vmatprep.subr.bf16.mxu0 %v4023
        %4055 = vmatpush1.bf16.msra.mxu0 %v4022
        %4056 = vmatprep.subr.bf16.mxu0 %v4025
        %4057 = vmatpush1.bf16.msra.mxu0 %v4024
        %4058 = vmatprep.subr.bf16.mxu0 %v4027
        %4059 = vmatpush1.bf16.msra.mxu0 %v4026
        %4060 = vmatprep.subr.bf16.mxu0 %v4029
        %4061 = vmatpush1.bf16.msra.mxu0 %v4028
        %4062 = vmatprep.subr.bf16.mxu0 0
        %4063 = vmatpush1.bf16.msra.mxu0 0
        %4064 = vmatprep.subr.bf16.mxu0 0
        %4065 = vmatpush1.bf16.msra.mxu0 0
        %4066 = vmatprep.subr.bf16.mxu0 0
        %4067 = vmatpush1.bf16.msra.mxu0 0
        %4068 = vmatprep.subr.bf16.mxu0 0
        %4069 = vmatpush1.bf16.msra.mxu0 0
        %4070 = vmatprep.subr.bf16.mxu0 0
        %4071 = vmatpush1.bf16.msra.mxu0 0
        %4072 = vmatprep.subr.bf16.mxu0 0
        %4073 = vmatpush1.bf16.msra.mxu0 0
        %4074 = vmatprep.subr.bf16.mxu0 0
        %4075 = vmatpush1.bf16.msra.mxu0 0
        %4076 = vmatprep.subr.bf16.mxu0 0
        %4077 = vmatpush1.bf16.msra.mxu0 0
        %4078 = vmatprep.mubr.bf16.mxu0 0
        %4079 = vmatmul.mubr.bf16.gmra.mrb[0].mxu0 %v3936
        %v4080 = vpop.f32.mrb[0].mxu0
        %v4081 = vadd.f32 %v3959, %v4080
        %v4082 = vpop.f32.mrb[0].mxu0
        %v4083 = vadd.f32 %v3963, %v4082
        %v4084 = vpop.f32.mrb[0].mxu0
        %v4085 = vadd.f32 %v3959, %v4084
        %v4086 = vpop.f32.mrb[0].mxu0
        %v4087 = vadd.f32 %v3963, %v4086
        %4088 = vmatprep.mubr.bf16.mxu0 0
        %4089 = vmatmul.mubr.bf16.gmra.mrb[0].mxu0 %v3937
        %v4090 = vpop.f32.mrb[0].mxu0
        %v4091 = vadd.f32 %v3959, %v4090
        %v4092 = vpop.f32.mrb[0].mxu0
        %v4093 = vadd.f32 %v3963, %v4092
        %v4094 = vpop.f32.mrb[0].mxu0
        %v4095 = vadd.f32 %v3959, %v4094
        %v4096 = vpop.f32.mrb[0].mxu0
        %v4097 = vadd.f32 %v3963, %v4096
        %4098 = vdwg.mxu0
        %v4099 = vmax.f32 %v4081, 0.0
        %v4100 = vmax.f32 %v4083, 0.0
        %v4101 = vmax.f32 %v4085, 0.0
        %v4102 = vmax.f32 %v4087, 0.0
        %v4103 = vmax.f32 %v4091, 0.0
        %v4104 = vmax.f32 %v4093, 0.0
        %v4105 = vmax.f32 %v4095, 0.0
        %v4106 = vmax.f32 %v4097, 0.0
        %v4107 = vpack.c.bf16 %v4101, %v4099
        %v4108 = vpack.c.bf16 %v4102, %v4100
        %v4109 = vpack.c.bf16 %v4105, %v4103
        %v4110 = vpack.c.bf16 %v4106, %v4104
        %v4111 = vld [vmem:[%s714] sm:$0xf]
        %v4112 = vld [vmem:[%s714 + $0x4] sm:$0xf]
        %v4113 = vld [vmem:[%s714 + $0x8] sm:$0xf]
        %v4114 = vld [vmem:[%s714 + $0xc] sm:$0xf]
        %v4115 = vld [vmem:[%s714 + $0x10] sm:$0xf]
        %v4116 = vld [vmem:[%s714 + $0x14] sm:$0xf]
        %v4117 = vld [vmem:[%s714 + $0x18] sm:$0xf]
        %v4118 = vld [vmem:[%s714 + $0x1c] sm:$0xf]
        %v4119 = vld [vmem:[%s714 + $0x20] sm:$0xf]
        %v4120 = vld [vmem:[%s714 + $0x24] sm:$0xf]
        %v4121 = vld [vmem:[%s714 + $0x28] sm:$0xf]
        %v4122 = vld [vmem:[%s714 + $0x2c] sm:$0xf]
        %v4123 = vld [vmem:[%s714 + $0x30] sm:$0xf]
        %v4124 = vld [vmem:[%s714 + $0x34] sm:$0xf]
        %v4125 = vld [vmem:[%s714 + $0x38] sm:$0xf]
        %v4126 = vld [vmem:[%s714 + $0x3c] sm:$0xf]
        %v4127 = vld [vmem:[%s714 + $0x40] sm:$0xf]
        %v4128 = vld [vmem:[%s714 + $0x44] sm:$0xf]
        %v4129 = vld [vmem:[%s714 + $0x48] sm:$0xf]
        %v4130 = vld [vmem:[%s714 + $0x4c] sm:$0xf]
        %v4131 = vld [vmem:[%s714 + $0x50] sm:$0xf]
        %v4132 = vld [vmem:[%s714 + $0x54] sm:$0xf]
        %v4133 = vld [vmem:[%s714 + $0x58] sm:$0xf]
        %v4134 = vld [vmem:[%s714 + $0x5c] sm:$0xf]
        %v4135 = vld [vmem:[%s714 + $0x60] sm:$0xf]
        %v4136 = vld [vmem:[%s714 + $0x64] sm:$0xf]
        %v4137 = vld [vmem:[%s714 + $0x68] sm:$0xf]
        %v4138 = vld [vmem:[%s714 + $0x6c] sm:$0xf]
        %v4139 = vld [vmem:[%s714 + $0x70] sm:$0xf]
        %v4140 = vld [vmem:[%s714 + $0x74] sm:$0xf]
        %v4141 = vld [vmem:[%s714 + $0x78] sm:$0xf]
        %v4142 = vld [vmem:[%s714 + $0x7c] sm:$0xf]
        %v4175 = vunpack.c.l.b16 %v4111
        %v4176 = vunpack.c.l.b16 %v4112
        %v4177 = vunpack.c.l.b16 %v4113
        %v4178 = vunpack.c.l.b16 %v4114
        %v4179 = vunpack.c.l.b16 %v4115
        %v4180 = vunpack.c.l.b16 %v4116
        %v4181 = vunpack.c.l.b16 %v4117
        %v4182 = vunpack.c.l.b16 %v4118
        %v4183 = vunpack.c.l.b16 %v4119
        %v4184 = vunpack.c.l.b16 %v4120
        %v4185 = vunpack.c.l.b16 %v4121
        %v4186 = vunpack.c.l.b16 %v4122
        %v4187 = vunpack.c.l.b16 %v4123
        %v4188 = vunpack.c.l.b16 %v4124
        %v4189 = vunpack.c.l.b16 %v4125
        %v4190 = vunpack.c.l.b16 %v4126
        %v4191 = vunpack.c.l.b16 %v4127
        %v4192 = vunpack.c.l.b16 %v4128
        %v4193 = vunpack.c.l.b16 %v4129
        %v4194 = vunpack.c.l.b16 %v4130
        %v4195 = vunpack.c.l.b16 %v4131
        %v4196 = vunpack.c.l.b16 %v4132
        %v4197 = vunpack.c.l.b16 %v4133
        %v4198 = vunpack.c.l.b16 %v4134
        %v4199 = vunpack.c.l.b16 %v4135
        %v4200 = vunpack.c.l.b16 %v4136
        %v4201 = vunpack.c.l.b16 %v4137
        %v4202 = vunpack.c.l.b16 %v4138
        %v4203 = vunpack.c.l.b16 %v4139
        %v4204 = vunpack.c.l.b16 %v4140
        %v4205 = vunpack.c.l.b16 %v4141
        %v4206 = vunpack.c.l.b16 %v4142
        %v4207 = vpack.c.b16 %v4176, %v4175
        %v4208 = vpack.c.b16 %v4178, %v4177
        %v4209 = vpack.c.b16 %v4180, %v4179
        %v4210 = vpack.c.b16 %v4182, %v4181
        %v4211 = vpack.c.b16 %v4184, %v4183
        %v4212 = vpack.c.b16 %v4186, %v4185
        %v4213 = vpack.c.b16 %v4188, %v4187
        %v4214 = vpack.c.b16 %v4190, %v4189
        %v4215 = vpack.c.b16 %v4192, %v4191
        %v4216 = vpack.c.b16 %v4194, %v4193
        %v4217 = vpack.c.b16 %v4196, %v4195
        %v4218 = vpack.c.b16 %v4198, %v4197
        %v4219 = vpack.c.b16 %v4200, %v4199
        %v4220 = vpack.c.b16 %v4202, %v4201
        %v4221 = vpack.c.b16 %v4204, %v4203
        %v4222 = vpack.c.b16 %v4206, %v4205
        %4239 = vmatprep.subr.bf16.mxu0 0
        %4240 = vmatpush1.bf16.msra.mxu0 %v4207
        %4241 = vmatprep.subr.bf16.mxu0 0
        %4242 = vmatpush1.bf16.msra.mxu0 %v4208
        %4243 = vmatprep.subr.bf16.mxu0 0
        %4244 = vmatpush1.bf16.msra.mxu0 %v4209
        %4245 = vmatprep.subr.bf16.mxu0 0
        %4246 = vmatpush1.bf16.msra.mxu0 %v4210
        %4247 = vmatprep.subr.bf16.mxu0 0
        %4248 = vmatpush1.bf16.msra.mxu0 %v4211
        %4249 = vmatprep.subr.bf16.mxu0 0
        %4250 = vmatpush1.bf16.msra.mxu0 %v4212
        %4251 = vmatprep.subr.bf16.mxu0 0
        %4252 = vmatpush1.bf16.msra.mxu0 %v4213
        %4253 = vmatprep.subr.bf16.mxu0 0
        %4254 = vmatpush1.bf16.msra.mxu0 %v4214
        %4255 = vmatprep.subr.bf16.mxu0 0
        %4256 = vmatpush1.bf16.msra.mxu0 %v4215
        %4257 = vmatprep.subr.bf16.mxu0 0
        %4258 = vmatpush1.bf16.msra.mxu0 %v4216
        %4259 = vmatprep.subr.bf16.mxu0 0
        %4260 = vmatpush1.bf16.msra.mxu0 %v4217
        %4261 = vmatprep.subr.bf16.mxu0 0
        %4262 = vmatpush1.bf16.msra.mxu0 %v4218
        %4263 = vmatprep.subr.bf16.mxu0 0
        %4264 = vmatpush1.bf16.msra.mxu0 %v4219
        %4265 = vmatprep.subr.bf16.mxu0 0
        %4266 = vmatpush1.bf16.msra.mxu0 %v4220
        %4267 = vmatprep.subr.bf16.mxu0 0
        %4268 = vmatpush1.bf16.msra.mxu0 %v4221
        %4269 = vmatprep.subr.bf16.mxu0 0
        %4270 = vmatpush1.bf16.msra.mxu0 %v4222
        %4271 = vmatprep.mubr.bf16.mxu0 %v4108
        %4272 = vmatmul.mubr.bf16.gmra.mrb[0].mxu0 %v4107
        %v4273 = vpop.f32.mrb[0].mxu0
        %v4274 = vadd.f32 0.0, %v4273
        %v4275 = vpop.f32.mrb[0].mxu0
        %v4276 = vpop.f32.mrb[0].mxu0
        %v4277 = vadd.f32 0.0, %v4276
        %v4278 = vpop.f32.mrb[0].mxu0
        %4279 = vmatprep.mubr.bf16.mxu0 %v4110
        %4280 = vmatmul.mubr.bf16.gmra.mrb[0].mxu0 %v4109
        %v4281 = vpop.f32.mrb[0].mxu0
        %v4282 = vadd.f32 0.0, %v4281
        %v4283 = vpop.f32.mrb[0].mxu0
        %v4284 = vpop.f32.mrb[0].mxu0
        %v4285 = vadd.f32 0.0, %v4284
        %v4286 = vpop.f32.mrb[0].mxu0
        %4287 = vdwg.mxu0
        %v4288 = vadd.f32 %v3854, %v4274
        %v4289 = vadd.f32 %v3855, %v4277
        %v4290 = vadd.f32 %v3856, %v4282
        %v4291 = vadd.f32 %v3857, %v4285
        %v4292 = vld [vmem:[%s722] sm:$0x1]
        %v4294 = vlaneseq
        %v4295 = vshrl.u32 %v4294, 7
        %v4296 = vsub.s32 0, %v4295
        %v4297 = vrot.slane %v4292, %v4296
        %v4299 = vadd.f32 %v4288, %v4297
        %v4300 = vadd.f32 %v4289, %v4297
        %v4301 = vadd.f32 %v4290, %v4297
        %v4302 = vadd.f32 %v4291, %v4297
        %4303 = vst [vmem:[#allocation2] sm:$0xff] %v4299
        %4304 = vst [vmem:[#allocation2 + $0x8] sm:$0xff] %v4300
        %4305 = vst [vmem:[#allocation2 + $0x10] sm:$0xff] %v4301
        %4306 = vst [vmem:[#allocation2 + $0x18] sm:$0xff] %v4302
        %p4307 = scmp.eq.s32.totalorder %s45, 1
        // Predicated region
        $region117: #{transformer_mapper.1} parent=79 // pred_check
          %p4308 = pneg %p4307
        $region118: #{transformer_mapper.1} parent=79 // pred_check_branch
          %4310 = sbr.rel (%p4308) target = $region120
        $region119: #{transformer_mapper.1} parent=79 // pred_region
          %4311 = vst [vmem:[#allocation17] sm:$0xff] %v4300
          %4312 = vst [vmem:[#allocation17 + $0x8] sm:$0xff] %v4302
        $region120: #{transformer_mapper.1} parent=79 // pred_fallthru
          _
        // Predicated region
        $region121: #{transformer_mapper.1} parent=79 // pred_check
          %p4313 = pneg %p445
        $region122: #{transformer_mapper.1} parent=79 // pred_check_branch
          %4315 = sbr.rel (%p4313) target = $region124
        $region123: #{transformer_mapper.1} parent=79 // pred_region
          %s4316 = smul.u32 2, %s44
          %s4318 = ssub.s32 256, 256
          %4319 = vsyncadd [#allocation5], %s4318
          %s4320 = smul.addr %s4316, 128
          %s4321 = scalar_lea.hbm %s15, %s4320
          %s4322 = sshll.u32 [#allocation17], 4
          %s4323 = int_to_ptr.vmem [resolvable:$true] %s4322
          %4328 = dma.vmem_to_hbm [thread:$0]  %s4323, 256, %s4321, [#allocation5], 128, 128, 8
        $region124: #{transformer_mapper.1} parent=79 // pred_fallthru
          _
        // Predicated region
        $region125: #{transformer_mapper.1} parent=79 // pred_check
          %p4329 = pneg %p445
        $region126: #{transformer_mapper.1} parent=79 // pred_check_branch
          %4331 = sbr.rel (%p4329) target = $region128
        $region127: #{transformer_mapper.1} parent=79 // pred_region
          %4332 = dma.done [#allocation5], 256
        $region128: #{transformer_mapper.1} parent=79 // pred_fallthru
          _
      $region80: #{transformer_mapper.1} parent=5 // pred_fallthru
        _
      %p4333 = scmp.le.s32.totalorder 2, %s35
      // Predicated region
      $region129: #{transformer_mapper.1} parent=5 // pred_check
        %p4334 = pneg %p4333
      $region130: #{transformer_mapper.1} parent=5 // pred_check_branch
        %4336 = sbr.rel (%p4334) target = $region132
      $region131: #{transformer_mapper.1} parent=5 // pred_region
        %s4337 = ssub.s32 %s35, 2
      $region132: #{transformer_mapper.1} parent=5 // pred_fallthru
        _
    $region6: #{transformer_mapper.1} parent=1 // loop_footer
      %s39 = sadd.s32 1, %s35
    $region7: #{transformer_mapper.1} parent=1 // loop_footer_branch
      %34 = sbr.rel target = $region3
    $region8: #{transformer_mapper.1} parent=1 // loop_exit
      _
    %4338 = vsyncpa [#allocation4], 1
    %s4339 = scalar_lea.sflag [#allocation4], 1
    %4340 = vsyncpa %s4339, 1
    %4341 = vsyncpa [#allocation7], 1
    %s4342 = scalar_lea.sflag [#allocation7], 1
    %4343 = vsyncpa %s4342, 1
    %4344 = vsyncpa [#allocation10], 1
    %s4345 = scalar_lea.sflag [#allocation10], 1
    %4346 = vsyncpa %s4345, 1
    %4347 = vsyncpa [#allocation13], 1
    %s4348 = scalar_lea.sflag [#allocation13], 1
    %4349 = vsyncpa %s4348, 1
    %4350 = vsyncpa [#allocation16], 1
    %s4351 = scalar_lea.sflag [#allocation16], 1
    %4352 = vsyncpa %s4351, 1
    %4353 = vsyncpa [#allocation5], 1
    %s4354 = scalar_lea.sflag [#allocation5], 1
    %4355 = vsyncpa %s4354, 1

</llo_original>
